<compile_context>
chip_gen: v6e
topology: v6e:2x2x1
jax: 0.10.0
libtpu: 0.0.40
codegen_flags: <defaults>
</compile_context>

<pallas_src>
import jax
import jax.numpy as jnp
from jax.experimental import pallas as pl
from jax.experimental.pallas import tpu as pltpu

LN_EPS = 1e-5  # torch.nn.LayerNorm default


def _round_up(v, m):
    return ((v + m - 1) // m) * m


def _layer_norm(h, d_real, gamma, beta, mask):
    """LayerNorm over the real (unpadded) feature lanes.

    Padded lanes of `h`, `gamma`, `beta` are exactly zero, so sums only need
    dividing by the real feature count.  `mask` is a precomputed [1, Dp] f32
    lane mask (hoisted to the host) that keeps padded lanes out of the
    variance; it is None (statically skipped) when d_real == d_pad.
    """
    inv_d = 1.0 / d_real
    mean = jnp.sum(h, axis=-1, keepdims=True) * inv_d
    c = h - mean
    if mask is not None:
        c = c * mask
    var = jnp.sum(c * c, axis=-1, keepdims=True) * inv_d
    return c * jax.lax.rsqrt(var + LN_EPS) * gamma + beta


def global_model_pallas(x, batch, u, params, *, tm=2048, n_cores=2,
                        compute_dtype=jnp.bfloat16,
                        vmem_limit_bytes=48 * 1024 * 1024):
    (w1, b1, w2, b2, w3, b3, g1, be1,
     w4, b4, w5, b5, w6, b6, g2, be2) = params

    N, L = x.shape
    B, G = u.shape
    H = w1.shape[1]
    P = w3.shape[1]

    LANE, SUB = 128, 8
    Hp = _round_up(H, LANE)
    Pp = _round_up(P, LANE)
    Gp = _round_up(G, LANE)
    Bp = _round_up(B, SUB)

    NC = max(1, int(n_cores))                       # node-axis shards (2 TCs on v7x)
    TM = min(_round_up(tm, SUB), _round_up(pl.cdiv(N, NC), SUB))
    T = pl.cdiv(pl.cdiv(N, TM), NC)                 # node tiles per core
    Np = NC * T * TM

    f32 = jnp.float32
    cdt = compute_dtype

    def pad2(a, rows, cols, dtype=f32):
        a = jnp.asarray(a, f32)
        return jnp.pad(a, ((0, rows - a.shape[0]), (0, cols - a.shape[1]))).astype(dtype)

    # Node stream.  Padded rows get batch id == Bp, which matches no graph id,
    # so they contribute nothing to the aggregation.
    x_p = jnp.pad(jnp.asarray(x, f32), ((0, Np - N), (0, 0))).astype(cdt)
    batch_p = jnp.pad(jnp.asarray(batch, jnp.int32).reshape(-1, 1),
                      ((0, Np - N), (0, 0)), constant_values=Bp)
    u_p = pad2(u, Bp, Gp)

    # Hoisted LayerNorm lane masks (opt: no per-tile iota/compare in-kernel).
    mask_pre = (jnp.arange(Pp) < P).astype(f32).reshape(1, Pp)
    mask_post = (jnp.arange(Gp) < G).astype(f32).reshape(1, Gp)
    use_mask_pre = P != Pp
    use_mask_post = G != Gp

    pre_weights = (
        pad2(w1[:L], L, Hp, cdt),    # W1 | x block
        pad2(w1[L:], Gp, Hp, cdt),   # W1 | u block
        pad2(b1, 1, Hp),
        pad2(w2, Hp, Hp, cdt), pad2(b2, 1, Hp),
        pad2(w3, Hp, Pp, cdt), pad2(b3, 1, Pp),
        pad2(g1, 1, Pp), pad2(be1, 1, Pp),
        mask_pre,
    )
    # Post-aggr MLP stays fully in f32 (only Bp rows; keeps the f32 segment-sum
    # accumulator exact through the [Bp,.]x[.,Hp] matmuls).
    post_weights = (
        pad2(w4[:P], Pp, Hp), pad2(w4[P:], Gp, Hp), pad2(b4, 1, Hp),
        pad2(w5, Hp, Hp), pad2(b5, 1, Hp),
        pad2(w6, Hp, Gp), pad2(b6, 1, Gp),
        pad2(g2, 1, Gp), pad2(be2, 1, Gp),
        mask_post,
    )

    def mm(a, b):
        # MXU matmul in the compute dtype, f32 accumulate.
        return jnp.dot(a.astype(cdt), b, preferred_element_type=f32)

    # ---------------- kernel 1: per-node MLP + segment-sum partials ----------------
    def node_kernel(x_ref, batch_ref, u_ref,
                    w1x_ref, w1u_ref, b1_ref, w2_ref, b2_ref, w3_ref, b3_ref,
                    g1_ref, be1_ref, mask_pre_ref,
                    part_ref, uproj_ref):
        c = pl.program_id(0)          # core shard (parallel)
        t = pl.program_id(1)          # node tile within shard (reduction)

        @pl.when(t == 0)
        def _init():
            part_ref[...] = jnp.zeros_like(part_ref)
            # Grid-invariant: project per-graph globals through W1's u-block
            # once per core (tiny [Bp,Gp]x[Gp,Hp] matmul).
            uproj_ref[...] = mm(u_ref[...], w1u_ref[...]).astype(uproj_ref.dtype)

        tile_start = (c * T + t) * TM

        @pl.when(tile_start < N)       # skip tiles that are pure padding
        def _tile():
            # One-hot gather/scatter in the compute dtype (0/1 exact in bf16).
            # TODO(synk): scalar-prefetched segment offsets (sorted batch) to
            #             remove the O(N*B) one-hot matmuls for large B.
            onehot = (batch_ref[...] ==
                      jax.lax.broadcasted_iota(jnp.int32, (TM, Bp), 1)).astype(cdt)

            u_gath = jnp.dot(onehot, uproj_ref[...], preferred_element_type=f32)
            h = jnp.maximum(mm(x_ref[...], w1x_ref[...]) + u_gath + b1_ref[...], 0.0)
            h = jnp.maximum(mm(h, w2_ref[...]) + b2_ref[...], 0.0)
            h = mm(h, w3_ref[...]) + b3_ref[...]
            h = _layer_norm(h, P, g1_ref[...], be1_ref[...],
                            mask_pre_ref[...] if use_mask_pre else None)  # [TM,Pp] f32

            # scatter_add(h, batch): contract the node axis directly, f32 accumulate.
            scat = jax.lax.dot_general(
                onehot, h.astype(cdt),
                dimension_numbers=(((0,), (0,)), ((), ())),
                preferred_element_type=f32)                                # [Bp,Pp]
            part_ref[...] += scat[None, :, :]

    node_map = lambda c, t: (c * T + t, 0)
    const2 = lambda c, t: (0, 0)

    def build_node_call(single_buffer_resident):
        def resident(a):
            if single_buffer_resident:
                # Constant block index -> no need for double buffering; halves
                # the resident VMEM footprint (matters on v7x's 64 MiB VMEM).
                return pl.BlockSpec(a.shape, const2, pipeline_mode=pl.Buffered(1))
            return pl.BlockSpec(a.shape, const2)

        in_specs = ([pl.BlockSpec((TM, L), node_map),
                     pl.BlockSpec((TM, 1), node_map),
                     resident(u_p)]
                    + [resident(w) for w in pre_weights])

        # Advisory cost, computed from the padded shapes actually executed.
        flops = (2.0 * Np * (L * Hp + Bp * Hp + Hp * Hp + Hp * Pp + Bp * Pp)
                 + 2.0 * NC * Bp * Gp * Hp)
        bytes_accessed = int(
            x_p.size * x_p.dtype.itemsize + batch_p.size * 4 + u_p.size * 4
            + NC * Bp * Pp * 4
            + sum(int(w.size) * w.dtype.itemsize for w in pre_weights))

        return pl.pallas_call(
            node_kernel,
            out_shape=jax.ShapeDtypeStruct((NC, Bp, Pp), f32),
            grid=(NC, T),
            in_specs=in_specs,
            out_specs=pl.BlockSpec((1, Bp, Pp), lambda c, t: (c, 0, 0)),
            scratch_shapes=[pltpu.VMEM((Bp, Hp), cdt)],     # u @ W1u (grid-invariant)
            compiler_params=pltpu.CompilerParams(
                dimension_semantics=("parallel", "arbitrary"),
                vmem_limit_bytes=vmem_limit_bytes),
            cost_estimate=pl.CostEstimate(
                flops=int(flops), transcendentals=int(Np),
                bytes_accessed=bytes_accessed),
        )(x_p, batch_p, u_p, *pre_weights)

    try:
        partials = build_node_call(True)
    except Exception:
        # Older JAX without BlockSpec.pipeline_mode / Buffered(1) support:
        # fall back to default double-buffered resident inputs.
        partials = build_node_call(False)

    # ---------------- kernel 2: combine partials + post-aggr MLP (f32, tiny) ----------------
    def post_kernel(part_ref, u_ref,
                    w4a_ref, w4u_ref, b4_ref, w5_ref, b5_ref, w6_ref, b6_ref,
                    g2_ref, be2_ref, mask_post_ref, out_ref):
        agg = jnp.sum(part_ref[...], axis=0)                       # [Bp, Pp] f32
        u_v = u_ref[...]
        g = jnp.maximum(jnp.dot(agg, w4a_ref[...], preferred_element_type=f32)
                        + jnp.dot(u_v, w4u_ref[...], preferred_element_type=f32)
                        + b4_ref[...], 0.0)
        g = jnp.maximum(jnp.dot(g, w5_ref[...], preferred_element_type=f32)
                        + b5_ref[...], 0.0)
        g = jnp.dot(g, w6_ref[...], preferred_element_type=f32) + b6_ref[...]
        g = _layer_norm(g, G, g2_ref[...], be2_ref[...],
                        mask_post_ref[...] if use_mask_post else None)
        out_ref[...] = g + u_v

    out = pl.pallas_call(
        post_kernel,
        out_shape=jax.ShapeDtypeStruct((Bp, Gp), f32),
    )(partials, u_p, *post_weights)

    return out[:B, :G]


def init_params(key, dim_local, dim_global, dim_hidden, dim_pre_aggr):
    """Deterministic synthetic parameters. Linear weights stored as [in, out]."""
    dim_concat = dim_local + dim_global
    dims = [
        (dim_concat, dim_hidden),                 # W1
        (dim_hidden, dim_hidden),                 # W2
        (dim_hidden, dim_pre_aggr),               # W3
        (dim_pre_aggr + dim_global, dim_hidden),  # W4
        (dim_hidden, dim_hidden),                 # W5
        (dim_hidden, dim_global),                 # W6
    ]
    keys = jax.random.split(key, 2 * len(dims) + 4)
    params = []
    # mlp_pre_aggr
    for i in range(3):
        din, dout = dims[i]
        params.append(jax.random.normal(keys[2 * i], (din, dout), jnp.float32) * 0.1)
        params.append(jax.random.normal(keys[2 * i + 1], (1, dout), jnp.float32) * 0.05)
    params.append(1.0 + 0.1 * jax.random.normal(keys[12], (1, dim_pre_aggr), jnp.float32))  # gamma1
    params.append(0.05 * jax.random.normal(keys[13], (1, dim_pre_aggr), jnp.float32))        # beta1
    # mlp_post_aggr
    for i in range(3, 6):
        din, dout = dims[i]
        params.append(jax.random.normal(keys[2 * i], (din, dout), jnp.float32) * 0.1)
        params.append(jax.random.normal(keys[2 * i + 1], (1, dout), jnp.float32) * 0.05)
    params.append(1.0 + 0.1 * jax.random.normal(keys[14], (1, dim_global), jnp.float32))     # gamma2
    params.append(0.05 * jax.random.normal(keys[15], (1, dim_global), jnp.float32))          # beta2
    return params


def global_model_ref(x, batch, u, params):
    """Pure-JAX reference (mirrors the torch forward exactly)."""
    (w1, b1, w2, b2, w3, b3, g1, be1,
     w4, b4, w5, b5, w6, b6, g2, be2) = params

    def ln(h, g, b):
        m = jnp.mean(h, axis=-1, keepdims=True)
        v = jnp.mean((h - m) ** 2, axis=-1, keepdims=True)
        return (h - m) / jnp.sqrt(v + LN_EPS) * g + b

    out = jnp.concatenate([x, u[batch]], axis=-1)
    out = jax.nn.relu(out @ w1 + b1)
    out = jax.nn.relu(out @ w2 + b2)
    out = ln(out @ w3 + b3, g1, be1)
    agg = jax.ops.segment_sum(out, batch, num_segments=u.shape[0])
    out = jnp.concatenate([agg, u], axis=-1)
    out = jax.nn.relu(out @ w4 + b4)
    out = jax.nn.relu(out @ w5 + b5)
    out = ln(out @ w6 + b6, g2, be2)
    return out + u


if __name__ == "__main__":
    dim_local, dim_global, dim_hidden, dim_pre_aggr = 8, 16, 32, 16
    N, B = 100, 4  # 100 nodes over 4 graphs (25 each); exercises node-tile padding

    key = jax.random.PRNGKey(0)
    kx, ku, kp = jax.random.split(key, 3)
    x = jax.random.normal(kx, (N, dim_local), jnp.float32)
    u = jax.random.normal(ku, (B, dim_global), jnp.float32)
    batch = jnp.repeat(jnp.arange(B, dtype=jnp.int32), N // B)   # node -> graph id

    params = init_params(kp, dim_local, dim_global, dim_hidden, dim_pre_aggr)
    ref = global_model_ref(x, batch, u, params)

    # f32 MXU path, small tiles: exercises 2 core-shards x 2 tiles each + the
    # per-shard accumulator.  Tight numerical check.
    out_f32 = jax.block_until_ready(
        global_model_pallas(x, batch, u, params, tm=32, n_cores=2,
                            compute_dtype=jnp.float32))
    assert out_f32.shape == (B, dim_global)
    assert jnp.allclose(out_f32, ref, rtol=1e-3, atol=1e-3), "f32 kernel mismatch vs reference"

    # Default path: bf16 MXU matmuls (incl. the one-hot gather/scatter), large
    # node tile, single-buffered resident weights.  Looser numerical band.
    out_bf16 = jax.block_until_ready(
        global_model_pallas(x, batch, u, params))
    assert out_bf16.shape == (B, dim_global)
    assert jnp.allclose(out_bf16, ref, rtol=1e-1, atol=1e-1), "bf16 kernel mismatch vs reference"

    print("KERNEL_OK")
</pallas_src>

<mosaic_0001>
module attributes {stable_mosaic.version = 11 : i64} {
  func.func @node_kernel(%arg0: i32, %arg1: i32, %arg2: memref<32x8xf32, #tpu.memory_space<vmem>>, %arg3: memref<32x1xi32, #tpu.memory_space<vmem>>, %arg4: memref<8x128xf32, #tpu.memory_space<vmem>>, %arg5: memref<8x128xf32, #tpu.memory_space<vmem>>, %arg6: memref<128x128xf32, #tpu.memory_space<vmem>>, %arg7: memref<1x128xf32, #tpu.memory_space<vmem>>, %arg8: memref<128x128xf32, #tpu.memory_space<vmem>>, %arg9: memref<1x128xf32, #tpu.memory_space<vmem>>, %arg10: memref<128x128xf32, #tpu.memory_space<vmem>>, %arg11: memref<1x128xf32, #tpu.memory_space<vmem>>, %arg12: memref<1x128xf32, #tpu.memory_space<vmem>>, %arg13: memref<1x128xf32, #tpu.memory_space<vmem>>, %arg14: memref<1x128xf32, #tpu.memory_space<vmem>>, %arg15: memref<1x8x128xf32, #tpu.memory_space<vmem>>, %arg16: memref<8x128xf32, #tpu.memory_space<vmem>>) attributes {dimension_semantics = [#tpu.dimension_semantics<parallel>, #tpu.dimension_semantics<arbitrary>], iteration_bounds = array<i64: 2, 2>, scalar_prefetch = 0 : i64, scratch_operands = 1 : i64, tpu.core_type = #tpu.core_type<tc>, window_params = [{transform_indices = @transform_0, window_bounds = array<i64: 32, 8>}, {transform_indices = @transform_1, window_bounds = array<i64: 32, 1>}, {pipeline_mode = #tpu.pipeline_mode<synchronous>, transform_indices = @transform_2, window_bounds = array<i64: 8, 128>}, {pipeline_mode = #tpu.pipeline_mode<synchronous>, transform_indices = @transform_3, window_bounds = array<i64: 8, 128>}, {pipeline_mode = #tpu.pipeline_mode<synchronous>, transform_indices = @transform_4, window_bounds = array<i64: 128, 128>}, {pipeline_mode = #tpu.pipeline_mode<synchronous>, transform_indices = @transform_5, window_bounds = array<i64: 1, 128>}, {pipeline_mode = #tpu.pipeline_mode<synchronous>, transform_indices = @transform_6, window_bounds = array<i64: 128, 128>}, {pipeline_mode = #tpu.pipeline_mode<synchronous>, transform_indices = @transform_7, window_bounds = array<i64: 1, 128>}, {pipeline_mode = #tpu.pipeline_mode<synchronous>, transform_indices = @transform_8, window_bounds = array<i64: 128, 128>}, {pipeline_mode = #tpu.pipeline_mode<synchronous>, transform_indices = @transform_9, window_bounds = array<i64: 1, 128>}, {pipeline_mode = #tpu.pipeline_mode<synchronous>, transform_indices = @transform_10, window_bounds = array<i64: 1, 128>}, {pipeline_mode = #tpu.pipeline_mode<synchronous>, transform_indices = @transform_11, window_bounds = array<i64: 1, 128>}, {pipeline_mode = #tpu.pipeline_mode<synchronous>, transform_indices = @transform_12, window_bounds = array<i64: 1, 128>}, {transform_indices = @transform_13, window_bounds = array<i64: 1, 8, 128>}]} {
    %c0_i32 = arith.constant 0 : i32
    %0 = arith.cmpi eq, %arg1, %c0_i32 : i32
    %1 = arith.extui %0 : i1 to i32
    %c0_i32_0 = arith.constant 0 : i32
    %2 = arith.cmpi ne, %1, %c0_i32_0 : i32
    scf.if %2 {
      %cst = arith.constant 0.000000e+00 : f32
      %9 = vector.broadcast %cst : f32 to vector<1x8x128xf32>
      %c0 = arith.constant 0 : index
      %c0_2 = arith.constant 0 : index
      %c0_3 = arith.constant 0 : index
      %10 = vector.load %arg15[%c0, %c0_2, %c0_3] : memref<1x8x128xf32, #tpu.memory_space<vmem>>, vector<1x8x128xf32>
      tpu.vector_store %arg15[%c0, %c0_2, %c0_3], %9 {strides = array<i32>} : memref<1x8x128xf32, #tpu.memory_space<vmem>>, vector<1x8x128xf32>,
      %c0_4 = arith.constant 0 : index
      %c0_5 = arith.constant 0 : index
      %11 = vector.load %arg4[%c0_4, %c0_5] : memref<8x128xf32, #tpu.memory_space<vmem>>, vector<8x128xf32>
      %c0_6 = arith.constant 0 : index
      %c0_7 = arith.constant 0 : index
      %12 = vector.load %arg6[%c0_6, %c0_7] : memref<128x128xf32, #tpu.memory_space<vmem>>, vector<128x128xf32>
      %cst_8 = arith.constant dense<0.000000e+00> : vector<8x128xf32>
      %13 = tpu.matmul %11, %12, %cst_8 {dimension_numbers = #tpu.dot_dimension_numbers<[1], [0], [0], [1], [0, 0, 1, 1], [], []>} : vector<8x128xf32>, vector<128x128xf32>, vector<8x128xf32> -> vector<8x128xf32>
      %c0_9 = arith.constant 0 : index
      %c0_10 = arith.constant 0 : index
      %14 = vector.load %arg16[%c0_9, %c0_10] : memref<8x128xf32, #tpu.memory_space<vmem>>, vector<8x128xf32>
      tpu.vector_store %arg16[%c0_9, %c0_10], %13 {strides = array<i32>} : memref<8x128xf32, #tpu.memory_space<vmem>>, vector<8x128xf32>,
    } else {
    }
    %c2_i32 = arith.constant 2 : i32
    %3 = arith.muli %arg0, %c2_i32 : i32
    %4 = arith.addi %3, %arg1 : i32
    %c32_i32 = arith.constant 32 : i32
    %5 = arith.muli %4, %c32_i32 : i32
    %c100_i32 = arith.constant 100 : i32
    %6 = arith.cmpi slt, %5, %c100_i32 : i32
    %7 = arith.extui %6 : i1 to i32
    %c0_i32_1 = arith.constant 0 : i32
    %8 = arith.cmpi ne, %7, %c0_i32_1 : i32
    scf.if %8 {
      %c0 = arith.constant 0 : index
      %c0_2 = arith.constant 0 : index
      %9 = vector.load %arg3[%c0, %c0_2] : memref<32x1xi32, #tpu.memory_space<vmem>>, vector<32x1xi32>
      %10 = tpu.iota {dimensions = array<i32: 1>} : vector<32x8xi32>
      %11 = vector.broadcast %9 : vector<32x1xi32> to vector<32x8xi32>
      %12 = arith.cmpi eq, %11, %10 : vector<32x8xi32>
      %13 = arith.extui %12 : vector<32x8xi1> to vector<32x8xi32>
      %14 = arith.sitofp %13 : vector<32x8xi32> to vector<32x8xf32>
      %c0_3 = arith.constant 0 : index
      %c0_4 = arith.constant 0 : index
      %15 = vector.load %arg16[%c0_3, %c0_4] : memref<8x128xf32, #tpu.memory_space<vmem>>, vector<8x128xf32>
      %cst = arith.constant dense<0.000000e+00> : vector<32x128xf32>
      %16 = tpu.matmul %14, %15, %cst {dimension_numbers = #tpu.dot_dimension_numbers<[1], [0], [0], [1], [0, 0, 1, 1], [], []>} : vector<32x8xf32>, vector<8x128xf32>, vector<32x128xf32> -> vector<32x128xf32>
      %c0_5 = arith.constant 0 : index
      %c0_6 = arith.constant 0 : index
      %17 = vector.load %arg2[%c0_5, %c0_6] : memref<32x8xf32, #tpu.memory_space<vmem>>, vector<32x8xf32>
      %c0_7 = arith.constant 0 : index
      %c0_8 = arith.constant 0 : index
      %18 = vector.load %arg5[%c0_7, %c0_8] : memref<8x128xf32, #tpu.memory_space<vmem>>, vector<8x128xf32>
      %cst_9 = arith.constant dense<0.000000e+00> : vector<32x128xf32>
      %19 = tpu.matmul %17, %18, %cst_9 {dimension_numbers = #tpu.dot_dimension_numbers<[1], [0], [0], [1], [0, 0, 1, 1], [], []>} : vector<32x8xf32>, vector<8x128xf32>, vector<32x128xf32> -> vector<32x128xf32>
      %20 = arith.addf %19, %16 : vector<32x128xf32>
      %c0_10 = arith.constant 0 : index
      %c0_11 = arith.constant 0 : index
      %21 = vector.load %arg7[%c0_10, %c0_11] : memref<1x128xf32, #tpu.memory_space<vmem>>, vector<1x128xf32>
      %22 = vector.broadcast %21 : vector<1x128xf32> to vector<32x128xf32>
      %23 = arith.addf %20, %22 : vector<32x128xf32>
      %cst_12 = arith.constant 0.000000e+00 : f32
      %24 = vector.broadcast %cst_12 : f32 to vector<32x128xf32>
      %25 = arith.maximumf %23, %24 : vector<32x128xf32>
      %c0_13 = arith.constant 0 : index
      %c0_14 = arith.constant 0 : index
      %26 = vector.load %arg8[%c0_13, %c0_14] : memref<128x128xf32, #tpu.memory_space<vmem>>, vector<128x128xf32>
      %cst_15 = arith.constant dense<0.000000e+00> : vector<32x128xf32>
      %27 = tpu.matmul %25, %26, %cst_15 {dimension_numbers = #tpu.dot_dimension_numbers<[1], [0], [0], [1], [0, 0, 1, 1], [], []>} : vector<32x128xf32>, vector<128x128xf32>, vector<32x128xf32> -> vector<32x128xf32>
      %c0_16 = arith.constant 0 : index
      %c0_17 = arith.constant 0 : index
      %28 = vector.load %arg9[%c0_16, %c0_17] : memref<1x128xf32, #tpu.memory_space<vmem>>, vector<1x128xf32>
      %29 = vector.broadcast %28 : vector<1x128xf32> to vector<32x128xf32>
      %30 = arith.addf %27, %29 : vector<32x128xf32>
      %cst_18 = arith.constant 0.000000e+00 : f32
      %31 = vector.broadcast %cst_18 : f32 to vector<32x128xf32>
      %32 = arith.maximumf %30, %31 : vector<32x128xf32>
      %c0_19 = arith.constant 0 : index
      %c0_20 = arith.constant 0 : index
      %33 = vector.load %arg10[%c0_19, %c0_20] : memref<128x128xf32, #tpu.memory_space<vmem>>, vector<128x128xf32>
      %cst_21 = arith.constant dense<0.000000e+00> : vector<32x128xf32>
      %34 = tpu.matmul %32, %33, %cst_21 {dimension_numbers = #tpu.dot_dimension_numbers<[1], [0], [0], [1], [0, 0, 1, 1], [], []>} : vector<32x128xf32>, vector<128x128xf32>, vector<32x128xf32> -> vector<32x128xf32>
      %c0_22 = arith.constant 0 : index
      %c0_23 = arith.constant 0 : index
      %35 = vector.load %arg11[%c0_22, %c0_23] : memref<1x128xf32, #tpu.memory_space<vmem>>, vector<1x128xf32>
      %36 = vector.broadcast %35 : vector<1x128xf32> to vector<32x128xf32>
      %37 = arith.addf %34, %36 : vector<32x128xf32>
      %c0_24 = arith.constant 0 : index
      %c0_25 = arith.constant 0 : index
      %38 = vector.load %arg12[%c0_24, %c0_25] : memref<1x128xf32, #tpu.memory_space<vmem>>, vector<1x128xf32>
      %c0_26 = arith.constant 0 : index
      %c0_27 = arith.constant 0 : index
      %39 = vector.load %arg13[%c0_26, %c0_27] : memref<1x128xf32, #tpu.memory_space<vmem>>, vector<1x128xf32>
      %c0_28 = arith.constant 0 : index
      %c0_29 = arith.constant 0 : index
      %40 = vector.load %arg14[%c0_28, %c0_29] : memref<1x128xf32, #tpu.memory_space<vmem>>, vector<1x128xf32>
      %cst_30 = arith.constant dense<0.000000e+00> : vector<32xf32>
      %41 = vector.multi_reduction <add>, %37, %cst_30 [1] : vector<32x128xf32> to vector<32xf32>
      %42 = vector.shape_cast %41 : vector<32xf32> to vector<32x1xf32>
      %cst_31 = arith.constant 6.250000e-02 : f32
      %43 = vector.broadcast %cst_31 : f32 to vector<32x1xf32>
      %44 = arith.mulf %42, %43 : vector<32x1xf32>
      %45 = vector.broadcast %44 : vector<32x1xf32> to vector<32x128xf32>
      %46 = arith.subf %37, %45 : vector<32x128xf32>
      %47 = vector.broadcast %40 : vector<1x128xf32> to vector<32x128xf32>
      %48 = arith.mulf %46, %47 : vector<32x128xf32>
      %49 = arith.mulf %48, %48 : vector<32x128xf32>
      %cst_32 = arith.constant dense<0.000000e+00> : vector<32xf32>
      %50 = vector.multi_reduction <add>, %49, %cst_32 [1] : vector<32x128xf32> to vector<32xf32>
      %51 = vector.shape_cast %50 : vector<32xf32> to vector<32x1xf32>
      %cst_33 = arith.constant 6.250000e-02 : f32
      %52 = vector.broadcast %cst_33 : f32 to vector<32x1xf32>
      %53 = arith.mulf %51, %52 : vector<32x1xf32>
      %cst_34 = arith.constant 9.99999974E-6 : f32
      %54 = vector.broadcast %cst_34 : f32 to vector<32x1xf32>
      %55 = arith.addf %53, %54 : vector<32x1xf32>
      %56 = math.rsqrt %55 : vector<32x1xf32>
      %57 = vector.broadcast %56 : vector<32x1xf32> to vector<32x128xf32>
      %58 = arith.mulf %48, %57 : vector<32x128xf32>
      %59 = vector.broadcast %38 : vector<1x128xf32> to vector<32x128xf32>
      %60 = arith.mulf %58, %59 : vector<32x128xf32>
      %61 = vector.broadcast %39 : vector<1x128xf32> to vector<32x128xf32>
      %62 = arith.addf %60, %61 : vector<32x128xf32>
      %cst_35 = arith.constant dense<0.000000e+00> : vector<8x128xf32>
      %63 = tpu.matmul %14, %62, %cst_35 {dimension_numbers = #tpu.dot_dimension_numbers<[0], [0], [1], [1], [0, 1, 1, 1], [], []>} : vector<32x8xf32>, vector<32x128xf32>, vector<8x128xf32> -> vector<8x128xf32>
      %c0_36 = arith.constant 0 : index
      %c0_37 = arith.constant 0 : index
      %c0_38 = arith.constant 0 : index
      %64 = vector.load %arg15[%c0_36, %c0_37, %c0_38] : memref<1x8x128xf32, #tpu.memory_space<vmem>>, vector<1x8x128xf32>
      %65 = vector.shape_cast %63 : vector<8x128xf32> to vector<1x8x128xf32>
      %66 = arith.addf %64, %65 : vector<1x8x128xf32>
      %c0_39 = arith.constant 0 : index
      %c0_40 = arith.constant 0 : index
      %c0_41 = arith.constant 0 : index
      %67 = vector.load %arg15[%c0_39, %c0_40, %c0_41] : memref<1x8x128xf32, #tpu.memory_space<vmem>>, vector<1x8x128xf32>
      tpu.vector_store %arg15[%c0_39, %c0_40, %c0_41], %66 {strides = array<i32>} : memref<1x8x128xf32, #tpu.memory_space<vmem>>, vector<1x8x128xf32>,
    } else {
    }
    return
  }
  func.func @transform_0(%arg0: i32, %arg1: i32) -> (i32, i32) {
    %c2_i32 = arith.constant 2 : i32
    %0 = arith.muli %arg0, %c2_i32 : i32
    %1 = arith.addi %0, %arg1 : i32
    %c0_i32 = arith.constant 0 : i32
    %c0_i32_0 = arith.constant 0 : i32
    return %1, %c0_i32 : i32, i32
  }
  func.func @transform_1(%arg0: i32, %arg1: i32) -> (i32, i32) {
    %c2_i32 = arith.constant 2 : i32
    %0 = arith.muli %arg0, %c2_i32 : i32
    %1 = arith.addi %0, %arg1 : i32
    %c0_i32 = arith.constant 0 : i32
    %c0_i32_0 = arith.constant 0 : i32
    return %1, %c0_i32 : i32, i32
  }
  func.func @transform_2(%arg0: i32, %arg1: i32) -> (i32, i32) {
    %c0_i32 = arith.constant 0 : i32
    %c0_i32_0 = arith.constant 0 : i32
    %c0_i32_1 = arith.constant 0 : i32
    return %c0_i32, %c0_i32_0 : i32, i32
  }
  func.func @transform_3(%arg0: i32, %arg1: i32) -> (i32, i32) {
    %c0_i32 = arith.constant 0 : i32
    %c0_i32_0 = arith.constant 0 : i32
    %c0_i32_1 = arith.constant 0 : i32
    return %c0_i32, %c0_i32_0 : i32, i32
  }
  func.func @transform_4(%arg0: i32, %arg1: i32) -> (i32, i32) {
    %c0_i32 = arith.constant 0 : i32
    %c0_i32_0 = arith.constant 0 : i32
    %c0_i32_1 = arith.constant 0 : i32
    return %c0_i32, %c0_i32_0 : i32, i32
  }
  func.func @transform_5(%arg0: i32, %arg1: i32) -> (i32, i32) {
    %c0_i32 = arith.constant 0 : i32
    %c0_i32_0 = arith.constant 0 : i32
    %c0_i32_1 = arith.constant 0 : i32
    return %c0_i32, %c0_i32_0 : i32, i32
  }
  func.func @transform_6(%arg0: i32, %arg1: i32) -> (i32, i32) {
    %c0_i32 = arith.constant 0 : i32
    %c0_i32_0 = arith.constant 0 : i32
    %c0_i32_1 = arith.constant 0 : i32
    return %c0_i32, %c0_i32_0 : i32, i32
  }
  func.func @transform_7(%arg0: i32, %arg1: i32) -> (i32, i32) {
    %c0_i32 = arith.constant 0 : i32
    %c0_i32_0 = arith.constant 0 : i32
    %c0_i32_1 = arith.constant 0 : i32
    return %c0_i32, %c0_i32_0 : i32, i32
  }
  func.func @transform_8(%arg0: i32, %arg1: i32) -> (i32, i32) {
    %c0_i32 = arith.constant 0 : i32
    %c0_i32_0 = arith.constant 0 : i32
    %c0_i32_1 = arith.constant 0 : i32
    return %c0_i32, %c0_i32_0 : i32, i32
  }
  func.func @transform_9(%arg0: i32, %arg1: i32) -> (i32, i32) {
    %c0_i32 = arith.constant 0 : i32
    %c0_i32_0 = arith.constant 0 : i32
    %c0_i32_1 = arith.constant 0 : i32
    return %c0_i32, %c0_i32_0 : i32, i32
  }
  func.func @transform_10(%arg0: i32, %arg1: i32) -> (i32, i32) {
    %c0_i32 = arith.constant 0 : i32
    %c0_i32_0 = arith.constant 0 : i32
    %c0_i32_1 = arith.constant 0 : i32
    return %c0_i32, %c0_i32_0 : i32, i32
  }
  func.func @transform_11(%arg0: i32, %arg1: i32) -> (i32, i32) {
    %c0_i32 = arith.constant 0 : i32
    %c0_i32_0 = arith.constant 0 : i32
    %c0_i32_1 = arith.constant 0 : i32
    return %c0_i32, %c0_i32_0 : i32, i32
  }
  func.func @transform_12(%arg0: i32, %arg1: i32) -> (i32, i32) {
    %c0_i32 = arith.constant 0 : i32
    %c0_i32_0 = arith.constant 0 : i32
    %c0_i32_1 = arith.constant 0 : i32
    return %c0_i32, %c0_i32_0 : i32, i32
  }
  func.func @transform_13(%arg0: i32, %arg1: i32) -> (i32, i32, i32) {
    %c0_i32 = arith.constant 0 : i32
    %c0_i32_0 = arith.constant 0 : i32
    %c0_i32_1 = arith.constant 0 : i32
    return %arg0, %c0_i32, %c0_i32_0 : i32, i32, i32
  }
}

module attributes {stable_mosaic.version = 11 : i64} {
  func.func @node_kernel(%arg0: i32, %arg1: i32, %arg2: memref<32x8xf32, #tpu.memory_space<vmem>>, %arg3: memref<32x1xi32, #tpu.memory_space<vmem>>, %arg4: memref<8x128xf32, #tpu.memory_space<vmem>>, %arg5: memref<8x128xf32, #tpu.memory_space<vmem>>, %arg6: memref<128x128xf32, #tpu.memory_space<vmem>>, %arg7: memref<1x128xf32, #tpu.memory_space<vmem>>, %arg8: memref<128x128xf32, #tpu.memory_space<vmem>>, %arg9: memref<1x128xf32, #tpu.memory_space<vmem>>, %arg10: memref<128x128xf32, #tpu.memory_space<vmem>>, %arg11: memref<1x128xf32, #tpu.memory_space<vmem>>, %arg12: memref<1x128xf32, #tpu.memory_space<vmem>>, %arg13: memref<1x128xf32, #tpu.memory_space<vmem>>, %arg14: memref<1x128xf32, #tpu.memory_space<vmem>>, %arg15: memref<1x8x128xf32, #tpu.memory_space<vmem>>, %arg16: memref<8x128xf32, #tpu.memory_space<vmem>>) attributes {dimension_semantics = [#tpu.dimension_semantics<parallel>, #tpu.dimension_semantics<arbitrary>], iteration_bounds = array<i64: 2, 2>, scalar_prefetch = 0 : i64, scratch_operands = 1 : i64, tpu.core_type = #tpu.core_type<tc>, window_params = [{transform_indices = @transform_0, window_bounds = array<i64: 32, 8>}, {transform_indices = @transform_1, window_bounds = array<i64: 32, 1>}, {pipeline_mode = #tpu.pipeline_mode<synchronous>, transform_indices = @transform_2, window_bounds = array<i64: 8, 128>}, {pipeline_mode = #tpu.pipeline_mode<synchronous>, transform_indices = @transform_3, window_bounds = array<i64: 8, 128>}, {pipeline_mode = #tpu.pipeline_mode<synchronous>, transform_indices = @transform_4, window_bounds = array<i64: 128, 128>}, {pipeline_mode = #tpu.pipeline_mode<synchronous>, transform_indices = @transform_5, window_bounds = array<i64: 1, 128>}, {pipeline_mode = #tpu.pipeline_mode<synchronous>, transform_indices = @transform_6, window_bounds = array<i64: 128, 128>}, {pipeline_mode = #tpu.pipeline_mode<synchronous>, transform_indices = @transform_7, window_bounds = array<i64: 1, 128>}, {pipeline_mode = #tpu.pipeline_mode<synchronous>, transform_indices = @transform_8, window_bounds = array<i64: 128, 128>}, {pipeline_mode = #tpu.pipeline_mode<synchronous>, transform_indices = @transform_9, window_bounds = array<i64: 1, 128>}, {pipeline_mode = #tpu.pipeline_mode<synchronous>, transform_indices = @transform_10, window_bounds = array<i64: 1, 128>}, {pipeline_mode = #tpu.pipeline_mode<synchronous>, transform_indices = @transform_11, window_bounds = array<i64: 1, 128>}, {pipeline_mode = #tpu.pipeline_mode<synchronous>, transform_indices = @transform_12, window_bounds = array<i64: 1, 128>}, {transform_indices = @transform_13, window_bounds = array<i64: 1, 8, 128>}]} {
    %c0_i32 = arith.constant 0 : i32
    %0 = arith.cmpi eq, %arg1, %c0_i32 : i32
    %1 = arith.extui %0 : i1 to i32
    %c0_i32_0 = arith.constant 0 : i32
    %2 = arith.cmpi ne, %1, %c0_i32_0 : i32
    scf.if %2 {
      %cst = arith.constant 0.000000e+00 : f32
      %9 = vector.broadcast %cst : f32 to vector<1x8x128xf32>
      %c0 = arith.constant 0 : index
      %c0_2 = arith.constant 0 : index
      %c0_3 = arith.constant 0 : index
      %10 = vector.load %arg15[%c0, %c0_2, %c0_3] : memref<1x8x128xf32, #tpu.memory_space<vmem>>, vector<1x8x128xf32>
      tpu.vector_store %arg15[%c0, %c0_2, %c0_3], %9 {strides = array<i32>} : memref<1x8x128xf32, #tpu.memory_space<vmem>>, vector<1x8x128xf32>,
      %c0_4 = arith.constant 0 : index
      %c0_5 = arith.constant 0 : index
      %11 = vector.load %arg4[%c0_4, %c0_5] : memref<8x128xf32, #tpu.memory_space<vmem>>, vector<8x128xf32>
      %c0_6 = arith.constant 0 : index
      %c0_7 = arith.constant 0 : index
      %12 = vector.load %arg6[%c0_6, %c0_7] : memref<128x128xf32, #tpu.memory_space<vmem>>, vector<128x128xf32>
      %cst_8 = arith.constant dense<0.000000e+00> : vector<8x128xf32>
      %13 = tpu.matmul %11, %12, %cst_8 {dimension_numbers = #tpu.dot_dimension_numbers<[1], [0], [0], [1], [0, 0, 1, 1], [], []>} : vector<8x128xf32>, vector<128x128xf32>, vector<8x128xf32> -> vector<8x128xf32>
      %c0_9 = arith.constant 0 : index
      %c0_10 = arith.constant 0 : index
      %14 = vector.load %arg16[%c0_9, %c0_10] : memref<8x128xf32, #tpu.memory_space<vmem>>, vector<8x128xf32>
      tpu.vector_store %arg16[%c0_9, %c0_10], %13 {strides = array<i32>} : memref<8x128xf32, #tpu.memory_space<vmem>>, vector<8x128xf32>,
    } else {
    }
    %c2_i32 = arith.constant 2 : i32
    %3 = arith.muli %arg0, %c2_i32 : i32
    %4 = arith.addi %3, %arg1 : i32
    %c32_i32 = arith.constant 32 : i32
    %5 = arith.muli %4, %c32_i32 : i32
    %c100_i32 = arith.constant 100 : i32
    %6 = arith.cmpi slt, %5, %c100_i32 : i32
    %7 = arith.extui %6 : i1 to i32
    %c0_i32_1 = arith.constant 0 : i32
    %8 = arith.cmpi ne, %7, %c0_i32_1 : i32
    scf.if %8 {
      %c0 = arith.constant 0 : index
      %c0_2 = arith.constant 0 : index
      %9 = vector.load %arg3[%c0, %c0_2] : memref<32x1xi32, #tpu.memory_space<vmem>>, vector<32x1xi32>
      %10 = tpu.iota {dimensions = array<i32: 1>} : vector<32x8xi32>
      %11 = vector.broadcast %9 : vector<32x1xi32> to vector<32x8xi32>
      %12 = arith.cmpi eq, %11, %10 : vector<32x8xi32>
      %13 = arith.extui %12 : vector<32x8xi1> to vector<32x8xi32>
      %14 = arith.sitofp %13 : vector<32x8xi32> to vector<32x8xf32>
      %c0_3 = arith.constant 0 : index
      %c0_4 = arith.constant 0 : index
      %15 = vector.load %arg16[%c0_3, %c0_4] : memref<8x128xf32, #tpu.memory_space<vmem>>, vector<8x128xf32>
      %cst = arith.constant dense<0.000000e+00> : vector<32x128xf32>
      %16 = tpu.matmul %14, %15, %cst {dimension_numbers = #tpu.dot_dimension_numbers<[1], [0], [0], [1], [0, 0, 1, 1], [], []>} : vector<32x8xf32>, vector<8x128xf32>, vector<32x128xf32> -> vector<32x128xf32>
      %c0_5 = arith.constant 0 : index
      %c0_6 = arith.constant 0 : index
      %17 = vector.load %arg2[%c0_5, %c0_6] : memref<32x8xf32, #tpu.memory_space<vmem>>, vector<32x8xf32>
      %c0_7 = arith.constant 0 : index
      %c0_8 = arith.constant 0 : index
      %18 = vector.load %arg5[%c0_7, %c0_8] : memref<8x128xf32, #tpu.memory_space<vmem>>, vector<8x128xf32>
      %cst_9 = arith.constant dense<0.000000e+00> : vector<32x128xf32>
      %19 = tpu.matmul %17, %18, %cst_9 {dimension_numbers = #tpu.dot_dimension_numbers<[1], [0], [0], [1], [0, 0, 1, 1], [], []>} : vector<32x8xf32>, vector<8x128xf32>, vector<32x128xf32> -> vector<32x128xf32>
      %20 = arith.addf %19, %16 : vector<32x128xf32>
      %c0_10 = arith.constant 0 : index
      %c0_11 = arith.constant 0 : index
      %21 = vector.load %arg7[%c0_10, %c0_11] : memref<1x128xf32, #tpu.memory_space<vmem>>, vector<1x128xf32>
      %22 = vector.broadcast %21 : vector<1x128xf32> to vector<32x128xf32>
      %23 = arith.addf %20, %22 : vector<32x128xf32>
      %cst_12 = arith.constant 0.000000e+00 : f32
      %24 = vector.broadcast %cst_12 : f32 to vector<32x128xf32>
      %25 = arith.maximumf %23, %24 : vector<32x128xf32>
      %c0_13 = arith.constant 0 : index
      %c0_14 = arith.constant 0 : index
      %26 = vector.load %arg8[%c0_13, %c0_14] : memref<128x128xf32, #tpu.memory_space<vmem>>, vector<128x128xf32>
      %cst_15 = arith.constant dense<0.000000e+00> : vector<32x128xf32>
      %27 = tpu.matmul %25, %26, %cst_15 {dimension_numbers = #tpu.dot_dimension_numbers<[1], [0], [0], [1], [0, 0, 1, 1], [], []>} : vector<32x128xf32>, vector<128x128xf32>, vector<32x128xf32> -> vector<32x128xf32>
      %c0_16 = arith.constant 0 : index
      %c0_17 = arith.constant 0 : index
      %28 = vector.load %arg9[%c0_16, %c0_17] : memref<1x128xf32, #tpu.memory_space<vmem>>, vector<1x128xf32>
      %29 = vector.broadcast %28 : vector<1x128xf32> to vector<32x128xf32>
      %30 = arith.addf %27, %29 : vector<32x128xf32>
      %cst_18 = arith.constant 0.000000e+00 : f32
      %31 = vector.broadcast %cst_18 : f32 to vector<32x128xf32>
      %32 = arith.maximumf %30, %31 : vector<32x128xf32>
      %c0_19 = arith.constant 0 : index
      %c0_20 = arith.constant 0 : index
      %33 = vector.load %arg10[%c0_19, %c0_20] : memref<128x128xf32, #tpu.memory_space<vmem>>, vector<128x128xf32>
      %cst_21 = arith.constant dense<0.000000e+00> : vector<32x128xf32>
      %34 = tpu.matmul %32, %33, %cst_21 {dimension_numbers = #tpu.dot_dimension_numbers<[1], [0], [0], [1], [0, 0, 1, 1], [], []>} : vector<32x128xf32>, vector<128x128xf32>, vector<32x128xf32> -> vector<32x128xf32>
      %c0_22 = arith.constant 0 : index
      %c0_23 = arith.constant 0 : index
      %35 = vector.load %arg11[%c0_22, %c0_23] : memref<1x128xf32, #tpu.memory_space<vmem>>, vector<1x128xf32>
      %36 = vector.broadcast %35 : vector<1x128xf32> to vector<32x128xf32>
      %37 = arith.addf %34, %36 : vector<32x128xf32>
      %c0_24 = arith.constant 0 : index
      %c0_25 = arith.constant 0 : index
      %38 = vector.load %arg12[%c0_24, %c0_25] : memref<1x128xf32, #tpu.memory_space<vmem>>, vector<1x128xf32>
      %c0_26 = arith.constant 0 : index
      %c0_27 = arith.constant 0 : index
      %39 = vector.load %arg13[%c0_26, %c0_27] : memref<1x128xf32, #tpu.memory_space<vmem>>, vector<1x128xf32>
      %c0_28 = arith.constant 0 : index
      %c0_29 = arith.constant 0 : index
      %40 = vector.load %arg14[%c0_28, %c0_29] : memref<1x128xf32, #tpu.memory_space<vmem>>, vector<1x128xf32>
      %cst_30 = arith.constant dense<0.000000e+00> : vector<32xf32>
      %41 = vector.multi_reduction <add>, %37, %cst_30 [1] : vector<32x128xf32> to vector<32xf32>
      %42 = vector.shape_cast %41 : vector<32xf32> to vector<32x1xf32>
      %cst_31 = arith.constant 6.250000e-02 : f32
      %43 = vector.broadcast %cst_31 : f32 to vector<32x1xf32>
      %44 = arith.mulf %42, %43 : vector<32x1xf32>
      %45 = vector.broadcast %44 : vector<32x1xf32> to vector<32x128xf32>
      %46 = arith.subf %37, %45 : vector<32x128xf32>
      %47 = vector.broadcast %40 : vector<1x128xf32> to vector<32x128xf32>
      %48 = arith.mulf %46, %47 : vector<32x128xf32>
      %49 = arith.mulf %48, %48 : vector<32x128xf32>
      %cst_32 = arith.constant dense<0.000000e+00> : vector<32xf32>
      %50 = vector.multi_reduction <add>, %49, %cst_32 [1] : vector<32x128xf32> to vector<32xf32>
      %51 = vector.shape_cast %50 : vector<32xf32> to vector<32x1xf32>
      %cst_33 = arith.constant 6.250000e-02 : f32
      %52 = vector.broadcast %cst_33 : f32 to vector<32x1xf32>
      %53 = arith.mulf %51, %52 : vector<32x1xf32>
      %cst_34 = arith.constant 9.99999974E-6 : f32
      %54 = vector.broadcast %cst_34 : f32 to vector<32x1xf32>
      %55 = arith.addf %53, %54 : vector<32x1xf32>
      %56 = math.rsqrt %55 : vector<32x1xf32>
      %57 = vector.broadcast %56 : vector<32x1xf32> to vector<32x128xf32>
      %58 = arith.mulf %48, %57 : vector<32x128xf32>
      %59 = vector.broadcast %38 : vector<1x128xf32> to vector<32x128xf32>
      %60 = arith.mulf %58, %59 : vector<32x128xf32>
      %61 = vector.broadcast %39 : vector<1x128xf32> to vector<32x128xf32>
      %62 = arith.addf %60, %61 : vector<32x128xf32>
      %cst_35 = arith.constant dense<0.000000e+00> : vector<8x128xf32>
      %63 = tpu.matmul %14, %62, %cst_35 {dimension_numbers = #tpu.dot_dimension_numbers<[0], [0], [1], [1], [0, 1, 1, 1], [], []>} : vector<32x8xf32>, vector<32x128xf32>, vector<8x128xf32> -> vector<8x128xf32>
      %c0_36 = arith.constant 0 : index
      %c0_37 = arith.constant 0 : index
      %c0_38 = arith.constant 0 : index
      %64 = vector.load %arg15[%c0_36, %c0_37, %c0_38] : memref<1x8x128xf32, #tpu.memory_space<vmem>>, vector<1x8x128xf32>
      %65 = vector.shape_cast %63 : vector<8x128xf32> to vector<1x8x128xf32>
      %66 = arith.addf %64, %65 : vector<1x8x128xf32>
      %c0_39 = arith.constant 0 : index
      %c0_40 = arith.constant 0 : index
      %c0_41 = arith.constant 0 : index
      %67 = vector.load %arg15[%c0_39, %c0_40, %c0_41] : memref<1x8x128xf32, #tpu.memory_space<vmem>>, vector<1x8x128xf32>
      tpu.vector_store %arg15[%c0_39, %c0_40, %c0_41], %66 {strides = array<i32>} : memref<1x8x128xf32, #tpu.memory_space<vmem>>, vector<1x8x128xf32>,
    } else {
    }
    return
  }
  func.func @transform_0(%arg0: i32, %arg1: i32) -> (i32, i32) {
    %c2_i32 = arith.constant 2 : i32
    %0 = arith.muli %arg0, %c2_i32 : i32
    %1 = arith.addi %0, %arg1 : i32
    %c0_i32 = arith.constant 0 : i32
    %c0_i32_0 = arith.constant 0 : i32
    return %1, %c0_i32 : i32, i32
  }
  func.func @transform_1(%arg0: i32, %arg1: i32) -> (i32, i32) {
    %c2_i32 = arith.constant 2 : i32
    %0 = arith.muli %arg0, %c2_i32 : i32
    %1 = arith.addi %0, %arg1 : i32
    %c0_i32 = arith.constant 0 : i32
    %c0_i32_0 = arith.constant 0 : i32
    return %1, %c0_i32 : i32, i32
  }
  func.func @transform_2(%arg0: i32, %arg1: i32) -> (i32, i32) {
    %c0_i32 = arith.constant 0 : i32
    %c0_i32_0 = arith.constant 0 : i32
    %c0_i32_1 = arith.constant 0 : i32
    return %c0_i32, %c0_i32_0 : i32, i32
  }
  func.func @transform_3(%arg0: i32, %arg1: i32) -> (i32, i32) {
    %c0_i32 = arith.constant 0 : i32
    %c0_i32_0 = arith.constant 0 : i32
    %c0_i32_1 = arith.constant 0 : i32
    return %c0_i32, %c0_i32_0 : i32, i32
  }
  func.func @transform_4(%arg0: i32, %arg1: i32) -> (i32, i32) {
    %c0_i32 = arith.constant 0 : i32
    %c0_i32_0 = arith.constant 0 : i32
    %c0_i32_1 = arith.constant 0 : i32
    return %c0_i32, %c0_i32_0 : i32, i32
  }
  func.func @transform_5(%arg0: i32, %arg1: i32) -> (i32, i32) {
    %c0_i32 = arith.constant 0 : i32
    %c0_i32_0 = arith.constant 0 : i32
    %c0_i32_1 = arith.constant 0 : i32
    return %c0_i32, %c0_i32_0 : i32, i32
  }
  func.func @transform_6(%arg0: i32, %arg1: i32) -> (i32, i32) {
    %c0_i32 = arith.constant 0 : i32
    %c0_i32_0 = arith.constant 0 : i32
    %c0_i32_1 = arith.constant 0 : i32
    return %c0_i32, %c0_i32_0 : i32, i32
  }
  func.func @transform_7(%arg0: i32, %arg1: i32) -> (i32, i32) {
    %c0_i32 = arith.constant 0 : i32
    %c0_i32_0 = arith.constant 0 : i32
    %c0_i32_1 = arith.constant 0 : i32
    return %c0_i32, %c0_i32_0 : i32, i32
  }
  func.func @transform_8(%arg0: i32, %arg1: i32) -> (i32, i32) {
    %c0_i32 = arith.constant 0 : i32
    %c0_i32_0 = arith.constant 0 : i32
    %c0_i32_1 = arith.constant 0 : i32
    return %c0_i32, %c0_i32_0 : i32, i32
  }
  func.func @transform_9(%arg0: i32, %arg1: i32) -> (i32, i32) {
    %c0_i32 = arith.constant 0 : i32
    %c0_i32_0 = arith.constant 0 : i32
    %c0_i32_1 = arith.constant 0 : i32
    return %c0_i32, %c0_i32_0 : i32, i32
  }
  func.func @transform_10(%arg0: i32, %arg1: i32) -> (i32, i32) {
    %c0_i32 = arith.constant 0 : i32
    %c0_i32_0 = arith.constant 0 : i32
    %c0_i32_1 = arith.constant 0 : i32
    return %c0_i32, %c0_i32_0 : i32, i32
  }
  func.func @transform_11(%arg0: i32, %arg1: i32) -> (i32, i32) {
    %c0_i32 = arith.constant 0 : i32
    %c0_i32_0 = arith.constant 0 : i32
    %c0_i32_1 = arith.constant 0 : i32
    return %c0_i32, %c0_i32_0 : i32, i32
  }
  func.func @transform_12(%arg0: i32, %arg1: i32) -> (i32, i32) {
    %c0_i32 = arith.constant 0 : i32
    %c0_i32_0 = arith.constant 0 : i32
    %c0_i32_1 = arith.constant 0 : i32
    return %c0_i32, %c0_i32_0 : i32, i32
  }
  func.func @transform_13(%arg0: i32, %arg1: i32) -> (i32, i32, i32) {
    %c0_i32 = arith.constant 0 : i32
    %c0_i32_0 = arith.constant 0 : i32
    %c0_i32_1 = arith.constant 0 : i32
    return %arg0, %c0_i32, %c0_i32_0 : i32, i32, i32
  }
}

</mosaic_0001>

<llo_original>
// kernel: tpu_custom_call.1
$region0: #{tpu_custom_call.1}
  #allocation0 [shape = 'u32[]', space=smem, size = 0x4, offset = 0x4, fixed_abs, tag = 'smem constant byte address 0x4 - core index']
  #allocation1 [shape = 'u32[144,128]{1,0:T(1,128)}', space=vmem, size = 0x12000, scoped, tag = 'internal scratch']
  #allocation2 [shape = 'f32[8,128]{1,0:T(8,128)}', space=vmem, size = 0x1000, scoped, tag = 'scratch operand']
  %s0 = inlined_call_operand.vmem [shape: f32[128,8], index: 0, kind: input, shape index: {}]
  %s1 = inlined_call_operand.vmem [shape: s32[128,1], index: 1, kind: input, shape index: {}]
  %s2 = inlined_call_operand.vmem [shape: f32[8,128], index: 2, kind: input, shape index: {}]
  %s3 = inlined_call_operand.hbm [shape: f32[8,128], index: 3, kind: input, shape index: {}]
  %s4 = inlined_call_operand.vmem [shape: f32[128,128], index: 4, kind: input, shape index: {}]
  %s5 = inlined_call_operand.vmem [shape: f32[1,128], index: 5, kind: input, shape index: {}]
  %s6 = inlined_call_operand.vmem [shape: f32[128,128], index: 6, kind: input, shape index: {}]
  %s7 = inlined_call_operand.vmem [shape: f32[1,128], index: 7, kind: input, shape index: {}]
  %s8 = inlined_call_operand.hbm [shape: f32[128,128], index: 8, kind: input, shape index: {}]
  %s9 = inlined_call_operand.vmem [shape: f32[1,128], index: 9, kind: input, shape index: {}]
  %s10 = inlined_call_operand.vmem [shape: f32[1,128], index: 10, kind: input, shape index: {}]
  %s11 = inlined_call_operand.vmem [shape: f32[1,128], index: 11, kind: input, shape index: {}]
  %s12 = inlined_call_operand.vmem [shape: f32[1,128], index: 12, kind: input, shape index: {}]
  %s13 = inlined_call_operand.hbm [shape: f32[2,8,128], index: 13, kind: output, shape index: {}]
  %s14 = sld [smem:[#allocation0]]
  $region101: #{tpu_custom_call.1} parent=0
    _
  %s16 = ssub.s32 1, %s14
  %s17 = scalar_select 0, %s16, %s14
  $region1: #{tpu_custom_call.1} parent=0
    #allocation3 [shape = 'u8[4096]{0}', space=vmem, size = 0x1000, scoped, tag = 'input window, operand 3, single buffered']
    #allocation4 [shape = 's32[2]{0}', space=sflag, size = 0x8, scoped, tag = 'scoped memory for tpu_custom_call.1']
    #allocation5 [shape = 's32[2]{0}', space=sflag, size = 0x8, scoped, tag = 'scoped memory for tpu_custom_call.1']
    #allocation6 [shape = 'u8[65536]{0}', space=vmem, size = 0x10000, scoped, tag = 'input window, operand 8, single buffered']
    #allocation7 [shape = 's32[1]{0}', space=sflag, size = 0x4, scoped, tag = 'scoped memory for tpu_custom_call.1']
    #allocation8 [shape = 'u8[8192]{0}', space=vmem, size = 0x2000, scoped, tag = 'output window, operand 0']
    %18 = vsyncpa [#allocation4], 0
    %19 = vsyncpa [#allocation7], 0
    %20 = vsyncpa [#allocation5], 0
    %s21 = scalar_lea.sflag [#allocation5], 1
    %22 = vsyncpa %s21, 0
    loop: start=0, step=1, limit=6
    $region2: #{tpu_custom_call.1} parent=1 // loop_pre_header
      _
    $region3: #{tpu_custom_call.1} parent=1 // loop_header
      %s24 = sphi 0, %s28
      %p25 = scmp.ge.s32.totalorder %s24, 6
      %s31 = sphi 0, %s43
      %s32 = sphi 0, %s39
      %s33 = sphi 0, %s31
      %s34 = sphi 0, %s32
      %s35 = sphi 0, %s33
      %s36 = sphi 0, %s34
      %s50 = sphi 0, %s52
      %s53 = sphi 0, %s50
      %s54 = sphi 0, %s53
      %s70 = sphi 0, %s54
      %s80 = sphi 0, %s82
      %s83 = sphi 0, %s80
      %s84 = sphi 0, %s83
      %s100 = sphi 0, %s84
      %s104 = sphi 0, %s104
      %s106 = sphi 0, %s104
      %s107 = sphi 0, %s106
      %s121 = sphi 0, %s107
      %s125 = sphi 0, %s125
      %s127 = sphi 0, %s125
      %s128 = sphi 0, %s127
      %s142 = sphi 0, %s128
      %s146 = sphi 0, %s146
      %s148 = sphi 0, %s146
      %s149 = sphi 0, %s148
      %s163 = sphi 0, %s149
      %s167 = sphi 0, %s167
      %s169 = sphi 0, %s167
      %s170 = sphi 0, %s169
      %s184 = sphi 0, %s170
      %s188 = sphi 0, %s188
      %s190 = sphi 0, %s188
      %s191 = sphi 0, %s190
      %s205 = sphi 0, %s191
      %s209 = sphi 0, %s209
      %s211 = sphi 0, %s209
      %s212 = sphi 0, %s211
      %s226 = sphi 0, %s212
      %s230 = sphi 0, %s230
      %s232 = sphi 0, %s230
      %s233 = sphi 0, %s232
      %s247 = sphi 0, %s233
      %s251 = sphi 0, %s251
      %s253 = sphi 0, %s251
      %s254 = sphi 0, %s253
      %s268 = sphi 0, %s254
      %s272 = sphi 0, %s272
      %s274 = sphi 0, %s272
      %s275 = sphi 0, %s274
      %s289 = sphi 0, %s275
      %s293 = sphi 0, %s293
      %s295 = sphi 0, %s293
      %s296 = sphi 0, %s295
      %s310 = sphi 0, %s296
      %s314 = sphi 0, %s314
      %s316 = sphi 0, %s314
      %s317 = sphi 0, %s316
      %s331 = sphi 0, %s317
      %s337 = sphi 0, %s339
      %s340 = sphi 0, %s337
      %s341 = sphi 0, %s340
      %s357 = sphi 0, %s341
    $region4: #{tpu_custom_call.1} parent=1 // loop_header_branch
      %27 = sbr.rel (%p25) target = $region8
    $region5: #{tpu_custom_call.1} parent=1 // loop_body
      %s29 = ssub.s32 %s24, 1
      %s30 = ssub.s32 %s24, 2
      %s37 = sadd.s32 1, %s32
      %p38 = scmp.ge.s32.totalorder %s37, 2
      %s39 = scalar_select %p38, 0, %s37
      %s40 = sadd.s32 1, %s31
      %s41 = scalar_select %p38, %s40, %s31
      %p42 = scmp.ge.s32.totalorder %s41, 2
      %s43 = scalar_select %p42, 0, %s41
      %s44 = smul.u32 %s31, 2
      %s45 = sadd.s32 %s44, %s32
      %s46 = smul.u32 %s43, 2
      %s47 = sadd.s32 %s46, %s39
      %s48 = ssub.s32 %s45, %s47
      %p49 = scmp.eq.s32.totalorder %s48, 0
      %s51 = sadd.s32 %s50, 1
      %s52 = scalar_select %p49, %s50, %s51
      %p55 = pneg %p49
      %p56 = scmp.eq.s32.totalorder %s24, 3
      %p57 = por %p55, %p56
      %p58 = scmp.ne.s32.totalorder %s50, %s53
      %p59 = scmp.eq.s32.totalorder %s24, 0
      %p60 = por %p58, %p59
      %p61 = scmp.ne.s32.totalorder %s50, %s53
      %p62 = scmp.eq.s32.totalorder %s29, 3
      %p63 = por %p61, %p62
      %p64 = scmp.ne.s32.totalorder %s53, %s54
      %p65 = scmp.eq.s32.totalorder %s29, 0
      %p66 = por %p64, %p65
      %p67 = scmp.ne.s32.totalorder %s53, %s54
      %p68 = scmp.eq.s32.totalorder %s30, 3
      %p69 = por %p67, %p68
      %p71 = scmp.ne.s32.totalorder %s54, %s70
      %p72 = scmp.eq.s32.totalorder %s30, 0
      %p73 = por %p71, %p72
      %s74 = smul.u32 %s31, 2
      %s75 = sadd.s32 %s74, %s32
      %s76 = smul.u32 %s43, 2
      %s77 = sadd.s32 %s76, %s39
      %s78 = ssub.s32 %s75, %s77
      %p79 = scmp.eq.s32.totalorder %s78, 0
      %s81 = sadd.s32 %s80, 1
      %s82 = scalar_select %p79, %s80, %s81
      %p85 = pneg %p79
      %p86 = scmp.eq.s32.totalorder %s24, 3
      %p87 = por %p85, %p86
      %p88 = scmp.ne.s32.totalorder %s80, %s83
      %p89 = scmp.eq.s32.totalorder %s24, 0
      %p90 = por %p88, %p89
      %p91 = scmp.ne.s32.totalorder %s80, %s83
      %p92 = scmp.eq.s32.totalorder %s29, 3
      %p93 = por %p91, %p92
      %p94 = scmp.ne.s32.totalorder %s83, %s84
      %p95 = scmp.eq.s32.totalorder %s29, 0
      %p96 = por %p94, %p95
      %p97 = scmp.ne.s32.totalorder %s83, %s84
      %p98 = scmp.eq.s32.totalorder %s30, 3
      %p99 = por %p97, %p98
      %p101 = scmp.ne.s32.totalorder %s84, %s100
      %p102 = scmp.eq.s32.totalorder %s30, 0
      %p103 = por %p101, %p102
      %s105 = sadd.s32 %s104, 1
      %p108 = scmp.eq.s32.totalorder %s24, 3
      %p109 = scmp.ne.s32.totalorder %s104, %s106
      %p110 = scmp.eq.s32.totalorder %s24, 0
      %p111 = por %p109, %p110
      %p112 = scmp.ne.s32.totalorder %s104, %s106
      %p113 = scmp.eq.s32.totalorder %s29, 3
      %p114 = por %p112, %p113
      %p115 = scmp.ne.s32.totalorder %s106, %s107
      %p116 = scmp.eq.s32.totalorder %s29, 0
      %p117 = por %p115, %p116
      %p118 = scmp.ne.s32.totalorder %s106, %s107
      %p119 = scmp.eq.s32.totalorder %s30, 3
      %p120 = por %p118, %p119
      %p122 = scmp.ne.s32.totalorder %s107, %s121
      %p123 = scmp.eq.s32.totalorder %s30, 0
      %p124 = por %p122, %p123
      %s126 = sadd.s32 %s125, 1
      %p129 = scmp.eq.s32.totalorder %s24, 3
      %p130 = scmp.ne.s32.totalorder %s125, %s127
      %p131 = scmp.eq.s32.totalorder %s24, 0
      %p132 = por %p130, %p131
      %p133 = scmp.ne.s32.totalorder %s125, %s127
      %p134 = scmp.eq.s32.totalorder %s29, 3
      %p135 = por %p133, %p134
      %p136 = scmp.ne.s32.totalorder %s127, %s128
      %p137 = scmp.eq.s32.totalorder %s29, 0
      %p138 = por %p136, %p137
      %p139 = scmp.ne.s32.totalorder %s127, %s128
      %p140 = scmp.eq.s32.totalorder %s30, 3
      %p141 = por %p139, %p140
      %p143 = scmp.ne.s32.totalorder %s128, %s142
      %p144 = scmp.eq.s32.totalorder %s30, 0
      %p145 = por %p143, %p144
      %s147 = sadd.s32 %s146, 1
      %p150 = scmp.eq.s32.totalorder %s24, 3
      %p151 = scmp.ne.s32.totalorder %s146, %s148
      %p152 = scmp.eq.s32.totalorder %s24, 0
      %p153 = por %p151, %p152
      %p154 = scmp.ne.s32.totalorder %s146, %s148
      %p155 = scmp.eq.s32.totalorder %s29, 3
      %p156 = por %p154, %p155
      %p157 = scmp.ne.s32.totalorder %s148, %s149
      %p158 = scmp.eq.s32.totalorder %s29, 0
      %p159 = por %p157, %p158
      %p160 = scmp.ne.s32.totalorder %s148, %s149
      %p161 = scmp.eq.s32.totalorder %s30, 3
      %p162 = por %p160, %p161
      %p164 = scmp.ne.s32.totalorder %s149, %s163
      %p165 = scmp.eq.s32.totalorder %s30, 0
      %p166 = por %p164, %p165
      %s168 = sadd.s32 %s167, 1
      %p171 = scmp.eq.s32.totalorder %s24, 3
      %p172 = scmp.ne.s32.totalorder %s167, %s169
      %p173 = scmp.eq.s32.totalorder %s24, 0
      %p174 = por %p172, %p173
      %p175 = scmp.ne.s32.totalorder %s167, %s169
      %p176 = scmp.eq.s32.totalorder %s29, 3
      %p177 = por %p175, %p176
      %p178 = scmp.ne.s32.totalorder %s169, %s170
      %p179 = scmp.eq.s32.totalorder %s29, 0
      %p180 = por %p178, %p179
      %p181 = scmp.ne.s32.totalorder %s169, %s170
      %p182 = scmp.eq.s32.totalorder %s30, 3
      %p183 = por %p181, %p182
      %p185 = scmp.ne.s32.totalorder %s170, %s184
      %p186 = scmp.eq.s32.totalorder %s30, 0
      %p187 = por %p185, %p186
      %s189 = sadd.s32 %s188, 1
      %p192 = scmp.eq.s32.totalorder %s24, 3
      %p193 = scmp.ne.s32.totalorder %s188, %s190
      %p194 = scmp.eq.s32.totalorder %s24, 0
      %p195 = por %p193, %p194
      %p196 = scmp.ne.s32.totalorder %s188, %s190
      %p197 = scmp.eq.s32.totalorder %s29, 3
      %p198 = por %p196, %p197
      %p199 = scmp.ne.s32.totalorder %s190, %s191
      %p200 = scmp.eq.s32.totalorder %s29, 0
      %p201 = por %p199, %p200
      %p202 = scmp.ne.s32.totalorder %s190, %s191
      %p203 = scmp.eq.s32.totalorder %s30, 3
      %p204 = por %p202, %p203
      %p206 = scmp.ne.s32.totalorder %s191, %s205
      %p207 = scmp.eq.s32.totalorder %s30, 0
      %p208 = por %p206, %p207
      %s210 = sadd.s32 %s209, 1
      %p213 = scmp.eq.s32.totalorder %s24, 3
      %p214 = scmp.ne.s32.totalorder %s209, %s211
      %p215 = scmp.eq.s32.totalorder %s24, 0
      %p216 = por %p214, %p215
      %p217 = scmp.ne.s32.totalorder %s209, %s211
      %p218 = scmp.eq.s32.totalorder %s29, 3
      %p219 = por %p217, %p218
      %p220 = scmp.ne.s32.totalorder %s211, %s212
      %p221 = scmp.eq.s32.totalorder %s29, 0
      %p222 = por %p220, %p221
      %p223 = scmp.ne.s32.totalorder %s211, %s212
      %p224 = scmp.eq.s32.totalorder %s30, 3
      %p225 = por %p223, %p224
      %p227 = scmp.ne.s32.totalorder %s212, %s226
      %p228 = scmp.eq.s32.totalorder %s30, 0
      %p229 = por %p227, %p228
      %s231 = sadd.s32 %s230, 1
      %p234 = scmp.eq.s32.totalorder %s24, 3
      %p235 = scmp.ne.s32.totalorder %s230, %s232
      %p236 = scmp.eq.s32.totalorder %s24, 0
      %p237 = por %p235, %p236
      %p238 = scmp.ne.s32.totalorder %s230, %s232
      %p239 = scmp.eq.s32.totalorder %s29, 3
      %p240 = por %p238, %p239
      %p241 = scmp.ne.s32.totalorder %s232, %s233
      %p242 = scmp.eq.s32.totalorder %s29, 0
      %p243 = por %p241, %p242
      %p244 = scmp.ne.s32.totalorder %s232, %s233
      %p245 = scmp.eq.s32.totalorder %s30, 3
      %p246 = por %p244, %p245
      %p248 = scmp.ne.s32.totalorder %s233, %s247
      %p249 = scmp.eq.s32.totalorder %s30, 0
      %p250 = por %p248, %p249
      %s252 = sadd.s32 %s251, 1
      %p255 = scmp.eq.s32.totalorder %s24, 3
      %p256 = scmp.ne.s32.totalorder %s251, %s253
      %p257 = scmp.eq.s32.totalorder %s24, 0
      %p258 = por %p256, %p257
      %p259 = scmp.ne.s32.totalorder %s251, %s253
      %p260 = scmp.eq.s32.totalorder %s29, 3
      %p261 = por %p259, %p260
      %p262 = scmp.ne.s32.totalorder %s253, %s254
      %p263 = scmp.eq.s32.totalorder %s29, 0
      %p264 = por %p262, %p263
      %p265 = scmp.ne.s32.totalorder %s253, %s254
      %p266 = scmp.eq.s32.totalorder %s30, 3
      %p267 = por %p265, %p266
      %p269 = scmp.ne.s32.totalorder %s254, %s268
      %p270 = scmp.eq.s32.totalorder %s30, 0
      %p271 = por %p269, %p270
      %s273 = sadd.s32 %s272, 1
      %p276 = scmp.eq.s32.totalorder %s24, 3
      %p277 = scmp.ne.s32.totalorder %s272, %s274
      %p278 = scmp.eq.s32.totalorder %s24, 0
      %p279 = por %p277, %p278
      %p280 = scmp.ne.s32.totalorder %s272, %s274
      %p281 = scmp.eq.s32.totalorder %s29, 3
      %p282 = por %p280, %p281
      %p283 = scmp.ne.s32.totalorder %s274, %s275
      %p284 = scmp.eq.s32.totalorder %s29, 0
      %p285 = por %p283, %p284
      %p286 = scmp.ne.s32.totalorder %s274, %s275
      %p287 = scmp.eq.s32.totalorder %s30, 3
      %p288 = por %p286, %p287
      %p290 = scmp.ne.s32.totalorder %s275, %s289
      %p291 = scmp.eq.s32.totalorder %s30, 0
      %p292 = por %p290, %p291
      %s294 = sadd.s32 %s293, 1
      %p297 = scmp.eq.s32.totalorder %s24, 3
      %p298 = scmp.ne.s32.totalorder %s293, %s295
      %p299 = scmp.eq.s32.totalorder %s24, 0
      %p300 = por %p298, %p299
      %p301 = scmp.ne.s32.totalorder %s293, %s295
      %p302 = scmp.eq.s32.totalorder %s29, 3
      %p303 = por %p301, %p302
      %p304 = scmp.ne.s32.totalorder %s295, %s296
      %p305 = scmp.eq.s32.totalorder %s29, 0
      %p306 = por %p304, %p305
      %p307 = scmp.ne.s32.totalorder %s295, %s296
      %p308 = scmp.eq.s32.totalorder %s30, 3
      %p309 = por %p307, %p308
      %p311 = scmp.ne.s32.totalorder %s296, %s310
      %p312 = scmp.eq.s32.totalorder %s30, 0
      %p313 = por %p311, %p312
      %s315 = sadd.s32 %s314, 1
      %p318 = scmp.eq.s32.totalorder %s24, 3
      %p319 = scmp.ne.s32.totalorder %s314, %s316
      %p320 = scmp.eq.s32.totalorder %s24, 0
      %p321 = por %p319, %p320
      %p322 = scmp.ne.s32.totalorder %s314, %s316
      %p323 = scmp.eq.s32.totalorder %s29, 3
      %p324 = por %p322, %p323
      %p325 = scmp.ne.s32.totalorder %s316, %s317
      %p326 = scmp.eq.s32.totalorder %s29, 0
      %p327 = por %p325, %p326
      %p328 = scmp.ne.s32.totalorder %s316, %s317
      %p329 = scmp.eq.s32.totalorder %s30, 3
      %p330 = por %p328, %p329
      %p332 = scmp.ne.s32.totalorder %s317, %s331
      %p333 = scmp.eq.s32.totalorder %s30, 0
      %p334 = por %p332, %p333
      %s335 = ssub.s32 %s31, %s43
      %p336 = scmp.eq.s32.totalorder %s335, 0
      %s338 = sadd.s32 %s337, 1
      %s339 = scalar_select %p336, %s337, %s338
      %p342 = pneg %p336
      %p343 = scmp.eq.s32.totalorder %s24, 3
      %p344 = por %p342, %p343
      %p345 = scmp.ne.s32.totalorder %s337, %s340
      %p346 = scmp.eq.s32.totalorder %s24, 0
      %p347 = por %p345, %p346
      %p348 = scmp.ne.s32.totalorder %s337, %s340
      %p349 = scmp.eq.s32.totalorder %s29, 3
      %p350 = por %p348, %p349
      %p351 = scmp.ne.s32.totalorder %s340, %s341
      %p352 = scmp.eq.s32.totalorder %s29, 0
      %p353 = por %p351, %p352
      %p354 = scmp.ne.s32.totalorder %s340, %s341
      %p355 = scmp.eq.s32.totalorder %s30, 3
      %p356 = por %p354, %p355
      %p358 = scmp.ne.s32.totalorder %s341, %s357
      %p359 = scmp.eq.s32.totalorder %s30, 0
      %p360 = por %p358, %p359
      %p361 = scmp.le.s32.totalorder 1, %s24
      %p362 = scmp.lt.s32.totalorder %s24, 5
      %p363 = pnand %p361, %p362
      %p364 = pneg %p363
      // Predicated region
      $region9: #{tpu_custom_call.1} parent=5 // pred_check
        _
      $region10: #{tpu_custom_call.1} parent=5 // pred_check_branch
        %366 = sbr.rel (%p363) target = $region12
      $region11: #{tpu_custom_call.1} parent=5 // pred_region
        %s367 = ssub.s32 %s24, 1
        // Predicated region
        $region13: #{tpu_custom_call.1} parent=11 // pred_check
          %p368 = pneg %p117
        $region14: #{tpu_custom_call.1} parent=11 // pred_check_branch
          %370 = sbr.rel (%p368) target = $region16
        $region15: #{tpu_custom_call.1} parent=11 // pred_region
          _
        $region16: #{tpu_custom_call.1} parent=11 // pred_fallthru
          _
        // Predicated region
        $region17: #{tpu_custom_call.1} parent=11 // pred_check
          %p371 = pneg %p138
        $region18: #{tpu_custom_call.1} parent=11 // pred_check_branch
          %373 = sbr.rel (%p371) target = $region20
        $region19: #{tpu_custom_call.1} parent=11 // pred_region
          %s375 = ssub.s32 128, 128
          %376 = vsyncadd [#allocation4], %s375
          %s378 = sshll.u32 [#allocation3], 4
          %s379 = int_to_ptr.vmem [resolvable:$true] %s378
          %381 = dma.hbm_to_vmem [thread:$0]  %s3, 128, %s379, [#allocation4]
        $region20: #{tpu_custom_call.1} parent=11 // pred_fallthru
          _
        // Predicated region
        $region21: #{tpu_custom_call.1} parent=11 // pred_check
          %p382 = pneg %p159
        $region22: #{tpu_custom_call.1} parent=11 // pred_check_branch
          %384 = sbr.rel (%p382) target = $region24
        $region23: #{tpu_custom_call.1} parent=11 // pred_region
          _
        $region24: #{tpu_custom_call.1} parent=11 // pred_fallthru
          _
        // Predicated region
        $region25: #{tpu_custom_call.1} parent=11 // pred_check
          %p385 = pneg %p180
        $region26: #{tpu_custom_call.1} parent=11 // pred_check_branch
          %387 = sbr.rel (%p385) target = $region28
        $region27: #{tpu_custom_call.1} parent=11 // pred_region
          _
        $region28: #{tpu_custom_call.1} parent=11 // pred_fallthru
          _
        // Predicated region
        $region29: #{tpu_custom_call.1} parent=11 // pred_check
          %p388 = pneg %p201
        $region30: #{tpu_custom_call.1} parent=11 // pred_check_branch
          %390 = sbr.rel (%p388) target = $region32
        $region31: #{tpu_custom_call.1} parent=11 // pred_region
          _
        $region32: #{tpu_custom_call.1} parent=11 // pred_fallthru
          _
        // Predicated region
        $region33: #{tpu_custom_call.1} parent=11 // pred_check
          %p391 = pneg %p222
        $region34: #{tpu_custom_call.1} parent=11 // pred_check_branch
          %393 = sbr.rel (%p391) target = $region36
        $region35: #{tpu_custom_call.1} parent=11 // pred_region
          _
        $region36: #{tpu_custom_call.1} parent=11 // pred_fallthru
          _
        // Predicated region
        $region37: #{tpu_custom_call.1} parent=11 // pred_check
          %p394 = pneg %p243
        $region38: #{tpu_custom_call.1} parent=11 // pred_check_branch
          %396 = sbr.rel (%p394) target = $region40
        $region39: #{tpu_custom_call.1} parent=11 // pred_region
          %s398 = ssub.s32 2048, 2048
          %399 = vsyncadd [#allocation7], %s398
          %s400 = sshll.u32 [#allocation6], 4
          %s401 = int_to_ptr.vmem [resolvable:$true] %s400
          %406 = dma.hbm_to_vmem [thread:$0]  %s8, 2048, %s401, [#allocation7], 128, 128, 8
        $region40: #{tpu_custom_call.1} parent=11 // pred_fallthru
          _
        // Predicated region
        $region41: #{tpu_custom_call.1} parent=11 // pred_check
          %p407 = pneg %p264
        $region42: #{tpu_custom_call.1} parent=11 // pred_check_branch
          %409 = sbr.rel (%p407) target = $region44
        $region43: #{tpu_custom_call.1} parent=11 // pred_region
          _
        $region44: #{tpu_custom_call.1} parent=11 // pred_fallthru
          _
        // Predicated region
        $region45: #{tpu_custom_call.1} parent=11 // pred_check
          %p410 = pneg %p285
        $region46: #{tpu_custom_call.1} parent=11 // pred_check_branch
          %412 = sbr.rel (%p410) target = $region48
        $region47: #{tpu_custom_call.1} parent=11 // pred_region
          _
        $region48: #{tpu_custom_call.1} parent=11 // pred_fallthru
          _
        // Predicated region
        $region49: #{tpu_custom_call.1} parent=11 // pred_check
          %p413 = pneg %p306
        $region50: #{tpu_custom_call.1} parent=11 // pred_check_branch
          %415 = sbr.rel (%p413) target = $region52
        $region51: #{tpu_custom_call.1} parent=11 // pred_region
          _
        $region52: #{tpu_custom_call.1} parent=11 // pred_fallthru
          _
        // Predicated region
        $region53: #{tpu_custom_call.1} parent=11 // pred_check
          %p416 = pneg %p327
        $region54: #{tpu_custom_call.1} parent=11 // pred_check_branch
          %418 = sbr.rel (%p416) target = $region56
        $region55: #{tpu_custom_call.1} parent=11 // pred_region
          _
        $region56: #{tpu_custom_call.1} parent=11 // pred_fallthru
          _
      $region12: #{tpu_custom_call.1} parent=5 // pred_fallthru
        _
      %p419 = scmp.lt.s32.totalorder %s24, 4
      // Predicated region
      $region57: #{tpu_custom_call.1} parent=5 // pred_check
        %p420 = pneg %p419
      $region58: #{tpu_custom_call.1} parent=5 // pred_check_branch
        %422 = sbr.rel (%p420) target = $region60
      $region59: #{tpu_custom_call.1} parent=5 // pred_region
        // Predicated region
        $region61: #{tpu_custom_call.1} parent=59 // pred_check
          %p423 = pneg %p60
        $region62: #{tpu_custom_call.1} parent=59 // pred_check_branch
          %425 = sbr.rel (%p423) target = $region64
        $region63: #{tpu_custom_call.1} parent=59 // pred_region
          %s426 = smul.u32 %s31, 2
          %s427 = sadd.s32 %s426, %s32
          %s428 = smul.u32 4, %s427
          %p429 = scmp.lt.s32.totalorder %s428, 15
          %s430 = scalar_select %p429, %s428, 15
          %s431 = smul.addr %s430, 8
          %s432 = scalar_lea.vmem %s0, %s431
          %s433 = smul.u32 %s31, 2
          %s434 = sadd.s32 %s433, %s32
          %s435 = smul.u32 4, %s434
        $region64: #{tpu_custom_call.1} parent=59 // pred_fallthru
          _
        // Predicated region
        $region65: #{tpu_custom_call.1} parent=59 // pred_check
          %p436 = pneg %p90
        $region66: #{tpu_custom_call.1} parent=59 // pred_check_branch
          %438 = sbr.rel (%p436) target = $region68
        $region67: #{tpu_custom_call.1} parent=59 // pred_region
          %s439 = smul.u32 %s31, 2
          %s440 = sadd.s32 %s439, %s32
          %s441 = smul.u32 4, %s440
          %p442 = scmp.lt.s32.totalorder %s441, 15
          %s443 = scalar_select %p442, %s441, 15
          %s444 = smul.addr %s443, 8
          %s445 = scalar_lea.vmem %s1, %s444
          %s446 = smul.u32 %s31, 2
          %s447 = sadd.s32 %s446, %s32
          %s448 = smul.u32 4, %s447
        $region68: #{tpu_custom_call.1} parent=59 // pred_fallthru
          _
      $region60: #{tpu_custom_call.1} parent=5 // pred_fallthru
        _
      %p449 = scmp.le.s32.totalorder 1, %s24
      %p450 = scmp.lt.s32.totalorder %s24, 5
      %p451 = pnand %p449, %p450
      %p452 = pneg %p451
      // Predicated region
      $region69: #{tpu_custom_call.1} parent=5 // pred_check
        _
      $region70: #{tpu_custom_call.1} parent=5 // pred_check_branch
        %454 = sbr.rel (%p451) target = $region72
      $region71: #{tpu_custom_call.1} parent=5 // pred_region
        %s455 = ssub.s32 %s24, 1
        // Predicated region
        $region73: #{tpu_custom_call.1} parent=71 // pred_check
          %p456 = pneg %p138
        $region74: #{tpu_custom_call.1} parent=71 // pred_check_branch
          %458 = sbr.rel (%p456) target = $region76
        $region75: #{tpu_custom_call.1} parent=71 // pred_region
          %459 = dma.done [#allocation4], 128
        $region76: #{tpu_custom_call.1} parent=71 // pred_fallthru
          _
        // Predicated region
        $region77: #{tpu_custom_call.1} parent=71 // pred_check
          %p460 = pneg %p243
        $region78: #{tpu_custom_call.1} parent=71 // pred_check_branch
          %462 = sbr.rel (%p460) target = $region80
        $region79: #{tpu_custom_call.1} parent=71 // pred_region
          %463 = dma.done [#allocation7], 2048
        $region80: #{tpu_custom_call.1} parent=71 // pred_fallthru
          _
        %s464 = smul.u32 %s33, 2
        %s465 = sadd.s32 %s464, %s34
        %s466 = smul.u32 4, %s465
        %p467 = scmp.lt.s32.totalorder %s466, 15
        %s468 = scalar_select %p467, %s466, 15
        %s469 = smul.addr %s468, 8
        %s470 = scalar_lea.vmem %s0, %s469
        %p471 = pneg %p66
        %p472 = pneg %p63
        %s473 = smul.u32 %s33, 2
        %s474 = sadd.s32 %s473, %s34
        %s475 = smul.u32 4, %s474
        %p476 = scmp.lt.s32.totalorder %s475, 15
        %s477 = scalar_select %p476, %s475, 15
        %s478 = smul.addr %s477, 8
        %s479 = scalar_lea.vmem %s1, %s478
        %p480 = pneg %p96
        %p481 = pneg %p93
        %p482 = pneg %p117
        %p483 = pneg %p114
        %p484 = pneg %p138
        %p485 = pneg %p135
        %p486 = pneg %p159
        %p487 = pneg %p156
        %p488 = pneg %p180
        %p489 = pneg %p177
        %p490 = pneg %p201
        %p491 = pneg %p198
        %p492 = pneg %p222
        %p493 = pneg %p219
        %p494 = pneg %p243
        %p495 = pneg %p240
        %p496 = pneg %p264
        %p497 = pneg %p261
        %p498 = pneg %p285
        %p499 = pneg %p282
        %p500 = pneg %p306
        %p501 = pneg %p303
        %p502 = pneg %p327
        %p503 = pneg %p324
        %p504 = pneg %p353
        %p505 = pneg %p350
        %s506 = sand.u32 %s340, 1
        %s507 = scalar_lea.sflag [#allocation5], %s506
        %s508 = sand.u32 %s340, 1
        %s509 = smul.addr %s508, 8
        %s510 = scalar_lea.vmem [#allocation8], %s509
        %s511 = smul.u32 %s33, 2
        %s512 = sadd.s32 %s511, %s34
        %s513 = smul.u32 4, %s512
        %p514 = scmp.lt.s32.totalorder %s513, 15
        %s515 = scalar_select %p514, %s513, 15
        %s516 = smul.addr %s515, 8
        %s517 = scalar_lea.vmem %s0, %s516
        %s518 = smul.u32 %s33, 2
        %s519 = sadd.s32 %s518, %s34
        %s520 = smul.u32 4, %s519
        %s521 = smul.u32 %s33, 2
        %s522 = sadd.s32 %s521, %s34
        %s523 = smul.u32 4, %s522
        %p524 = scmp.lt.s32.totalorder %s523, 15
        %s525 = scalar_select %p524, %s523, 15
        %s526 = smul.addr %s525, 8
        %s527 = scalar_lea.vmem %s1, %s526
        %s528 = smul.u32 %s33, 2
        %s529 = sadd.s32 %s528, %s34
        %s530 = smul.u32 4, %s529
        %p531 = scmp.eq.s32.totalorder %s34, 0
        // Predicated region
        $region81: #{tpu_custom_call.1} parent=71 // pred_check
          %p532 = pneg %p531
        $region82: #{tpu_custom_call.1} parent=71 // pred_check_branch
          %534 = sbr.rel (%p532) target = $region84
        $region83: #{tpu_custom_call.1} parent=71 // pred_region
          %535 = vst [vmem:[%s510] sm:$0xff] 0.0
          %v536 = vld [vmem:[%s2] sm:$0xff]
          %v537 = vld [vmem:[%s4] sm:$0xff]
          %v538 = vld [vmem:[%s4 + $0x8] sm:$0xff]
          %v539 = vld [vmem:[%s4 + $0x10] sm:$0xff]
          %v540 = vld [vmem:[%s4 + $0x18] sm:$0xff]
          %v541 = vld [vmem:[%s4 + $0x20] sm:$0xff]
          %v542 = vld [vmem:[%s4 + $0x28] sm:$0xff]
          %v543 = vld [vmem:[%s4 + $0x30] sm:$0xff]
          %v544 = vld [vmem:[%s4 + $0x38] sm:$0xff]
          %v545 = vld [vmem:[%s4 + $0x40] sm:$0xff]
          %v546 = vld [vmem:[%s4 + $0x48] sm:$0xff]
          %v547 = vld [vmem:[%s4 + $0x50] sm:$0xff]
          %v548 = vld [vmem:[%s4 + $0x58] sm:$0xff]
          %v549 = vld [vmem:[%s4 + $0x60] sm:$0xff]
          %v550 = vld [vmem:[%s4 + $0x68] sm:$0xff]
          %v551 = vld [vmem:[%s4 + $0x70] sm:$0xff]
          %v552 = vld [vmem:[%s4 + $0x78] sm:$0xff]
          %553 = vmatprep.subr.mxu0 0.0
          %554 = vmatpush1.msra.mxu0 %v552
          %555 = vmatprep.subr.mxu0 0.0
          %556 = vmatpush1.msra.mxu0 %v551
          %557 = vmatprep.subr.mxu0 0.0
          %558 = vmatpush1.msra.mxu0 %v550
          %559 = vmatprep.subr.mxu0 0.0
          %560 = vmatpush1.msra.mxu0 %v549
          %561 = vmatprep.subr.mxu0 0.0
          %562 = vmatpush1.msra.mxu0 %v548
          %563 = vmatprep.subr.mxu0 0.0
          %564 = vmatpush1.msra.mxu0 %v547
          %565 = vmatprep.subr.mxu0 0.0
          %566 = vmatpush1.msra.mxu0 %v546
          %567 = vmatprep.subr.mxu0 0.0
          %568 = vmatpush1.msra.mxu0 %v545
          %569 = vmatprep.subr.mxu0 0.0
          %570 = vmatpush1.msra.mxu0 %v544
          %571 = vmatprep.subr.mxu0 0.0
          %572 = vmatpush1.msra.mxu0 %v543
          %573 = vmatprep.subr.mxu0 0.0
          %574 = vmatpush1.msra.mxu0 %v542
          %575 = vmatprep.subr.mxu0 0.0
          %576 = vmatpush1.msra.mxu0 %v541
          %577 = vmatprep.subr.mxu0 0.0
          %578 = vmatpush1.msra.mxu0 %v540
          %579 = vmatprep.subr.mxu0 0.0
          %580 = vmatpush1.msra.mxu0 %v539
          %581 = vmatprep.subr.mxu0 0.0
          %582 = vmatpush1.msra.mxu0 %v538
          %583 = vmatprep.subr.mxu0 0.0
          %584 = vmatpush1.msra.mxu0 %v537
          %585 = vmatprep.subr.mxu0 0.0
          %586 = vmatpush2.msra.mxu0 0.0
          %587 = vmatprep.subr.mxu0 0.0
          %588 = vmatpush2.msra.mxu0 0.0
          %589 = vmatprep.subr.mxu0 0.0
          %590 = vmatpush2.msra.mxu0 0.0
          %591 = vmatprep.subr.mxu0 0.0
          %592 = vmatpush2.msra.mxu0 0.0
          %593 = vmatprep.subr.mxu0 0.0
          %594 = vmatpush2.msra.mxu0 0.0
          %595 = vmatprep.subr.mxu0 0.0
          %596 = vmatpush2.msra.mxu0 0.0
          %597 = vmatprep.subr.mxu0 0.0
          %598 = vmatpush2.msra.mxu0 0.0
          %599 = vmatprep.subr.mxu0 0.0
          %600 = vmatpush2.msra.mxu0 0.0
          %601 = vmatprep.subr.mxu0 0.0
          %602 = vmatpush2.msra.mxu0 0.0
          %603 = vmatprep.subr.mxu0 0.0
          %604 = vmatpush2.msra.mxu0 0.0
          %605 = vmatprep.subr.mxu0 0.0
          %606 = vmatpush2.msra.mxu0 0.0
          %607 = vmatprep.subr.mxu0 0.0
          %608 = vmatpush2.msra.mxu0 0.0
          %609 = vmatprep.subr.mxu0 0.0
          %610 = vmatpush2.msra.mxu0 0.0
          %611 = vmatprep.subr.mxu0 0.0
          %612 = vmatpush2.msra.mxu0 0.0
          %613 = vmatprep.subr.mxu0 0.0
          %614 = vmatpush2.msra.mxu0 0.0
          %615 = vmatprep.subr.mxu0 0.0
          %616 = vmatpush2.msra.mxu0 0.0
          %617 = vmatprep.mubr.f32.mxu0 0.0
          %618 = vmatmul.mubr.f32.gmra.mxu0 %v536
          %v619 = vpop.f32.mrf.mxu0
          %v620 = vadd.f32 0.0, %v619
          %v621 = vpop.f32.mrf.mxu0
          %622 = vdwg.mxu0
          %623 = vst [vmem:[#allocation2] sm:$0xff] %v620
        $region84: #{tpu_custom_call.1} parent=71 // pred_fallthru
          _
        %s624 = smul.u32 %s33, 2
        %s625 = sadd.s32 %s624, %s34
        %s626 = smul.u32 %s625, 32
        %p627 = scmp.lt.s32.totalorder %s626, 100
        // Predicated region
        $region85: #{tpu_custom_call.1} parent=71 // pred_check
          %p628 = pneg %p627
        $region86: #{tpu_custom_call.1} parent=71 // pred_check_branch
          %630 = sbr.rel (%p628) target = $region88
        $region87: #{tpu_custom_call.1} parent=71 // pred_region
          %v631 = vld [vmem:[%s527] sm:$0xff]
          %v632 = vld [vmem:[%s527 + $0x8] sm:$0xff]
          %v633 = vld [vmem:[%s527 + $0x10] sm:$0xff]
          %v634 = vld [vmem:[%s527 + $0x18] sm:$0xff]
          %v635 = vlaneseq
          %v636 = vand.u32 %v635, 127
          %637 = vset.pattern.permute.xlu0 0
          %638 = vperm.xlu0 %637, %v631
          %v639 = vpop.permute.xlu0 %638
          %640 = vset.pattern.permute.xlu0 0
          %641 = vperm.xlu0 %640, %v632
          %v642 = vpop.permute.xlu0 %641
          %643 = vset.pattern.permute.xlu0 0
          %644 = vperm.xlu0 %643, %v633
          %v645 = vpop.permute.xlu0 %644
          %646 = vset.pattern.permute.xlu0 0
          %647 = vperm.xlu0 %646, %v634
          %v648 = vpop.permute.xlu0 %647
          %vm649 = vcmp.eq.s32.totalorder %v639, %v636
          %vm650 = vcmp.eq.s32.totalorder %v642, %v636
          %vm651 = vcmp.eq.s32.totalorder %v645, %v636
          %vm652 = vcmp.eq.s32.totalorder %v648, %v636
          %v653 = vsel %vm649, 1, 0
          %v654 = vsel %vm650, 1, 0
          %v655 = vsel %vm651, 1, 0
          %v656 = vsel %vm652, 1, 0
          %v657 = vcvt.s32.f32 %v653
          %v658 = vcvt.s32.f32 %v654
          %v659 = vcvt.s32.f32 %v655
          %v660 = vcvt.s32.f32 %v656
          %v661 = vld [vmem:[#allocation2] sm:$0xff]
          %vm662 = vcmask 64512
          %v664 = vsel %vm662, %v657, 0
          %v667 = vsel %vm662, %v658, 0
          %v670 = vsel %vm662, %v659, 0
          %v673 = vsel %vm662, %v660, 0
          %675 = vmatprep.subr.mxu0 0.0
          %676 = vmatpush1.msra.mxu0 0.0
          %677 = vmatprep.subr.mxu0 0.0
          %678 = vmatpush1.msra.mxu0 0.0
          %679 = vmatprep.subr.mxu0 0.0
          %680 = vmatpush1.msra.mxu0 0.0
          %681 = vmatprep.subr.mxu0 0.0
          %682 = vmatpush1.msra.mxu0 0.0
          %683 = vmatprep.subr.mxu0 0.0
          %684 = vmatpush1.msra.mxu0 0.0
          %685 = vmatprep.subr.mxu0 0.0
          %686 = vmatpush1.msra.mxu0 0.0
          %687 = vmatprep.subr.mxu0 0.0
          %688 = vmatpush1.msra.mxu0 0.0
          %689 = vmatprep.subr.mxu0 0.0
          %690 = vmatpush1.msra.mxu0 0.0
          %691 = vmatprep.subr.mxu0 0.0
          %692 = vmatpush1.msra.mxu0 0.0
          %693 = vmatprep.subr.mxu0 0.0
          %694 = vmatpush1.msra.mxu0 0.0
          %695 = vmatprep.subr.mxu0 0.0
          %696 = vmatpush1.msra.mxu0 0.0
          %697 = vmatprep.subr.mxu0 0.0
          %698 = vmatpush1.msra.mxu0 0.0
          %699 = vmatprep.subr.mxu0 0.0
          %700 = vmatpush1.msra.mxu0 0.0
          %701 = vmatprep.subr.mxu0 0.0
          %702 = vmatpush1.msra.mxu0 0.0
          %703 = vmatprep.subr.mxu0 0.0
          %704 = vmatpush1.msra.mxu0 0.0
          %705 = vmatprep.subr.mxu0 0.0
          %706 = vmatpush1.msra.mxu0 %v661
          %707 = vmatprep.subr.mxu0 0.0
          %708 = vmatpush2.msra.mxu0 0.0
          %709 = vmatprep.subr.mxu0 0.0
          %710 = vmatpush2.msra.mxu0 0.0
          %711 = vmatprep.subr.mxu0 0.0
          %712 = vmatpush2.msra.mxu0 0.0
          %713 = vmatprep.subr.mxu0 0.0
          %714 = vmatpush2.msra.mxu0 0.0
          %715 = vmatprep.subr.mxu0 0.0
          %716 = vmatpush2.msra.mxu0 0.0
          %717 = vmatprep.subr.mxu0 0.0
          %718 = vmatpush2.msra.mxu0 0.0
          %719 = vmatprep.subr.mxu0 0.0
          %720 = vmatpush2.msra.mxu0 0.0
          %721 = vmatprep.subr.mxu0 0.0
          %722 = vmatpush2.msra.mxu0 0.0
          %723 = vmatprep.subr.mxu0 0.0
          %724 = vmatpush2.msra.mxu0 0.0
          %725 = vmatprep.subr.mxu0 0.0
          %726 = vmatpush2.msra.mxu0 0.0
          %727 = vmatprep.subr.mxu0 0.0
          %728 = vmatpush2.msra.mxu0 0.0
          %729 = vmatprep.subr.mxu0 0.0
          %730 = vmatpush2.msra.mxu0 0.0
          %731 = vmatprep.subr.mxu0 0.0
          %732 = vmatpush2.msra.mxu0 0.0
          %733 = vmatprep.subr.mxu0 0.0
          %734 = vmatpush2.msra.mxu0 0.0
          %735 = vmatprep.subr.mxu0 0.0
          %736 = vmatpush2.msra.mxu0 0.0
          %737 = vmatprep.subr.mxu0 0.0
          %738 = vmatpush2.msra.mxu0 0.0
          %739 = vmatprep.mubr.f32.mxu0 0.0
          %740 = vmatmul.mubr.f32.gmra.mxu0 %v664
          %v741 = vpop.f32.mrf.mxu0
          %v742 = vadd.f32 0.0, %v741
          %v743 = vpop.f32.mrf.mxu0
          %744 = vmatprep.mubr.f32.mxu0 0.0
          %745 = vmatmul.mubr.f32.gmra.mxu0 %v667
          %v746 = vpop.f32.mrf.mxu0
          %v747 = vadd.f32 0.0, %v746
          %v748 = vpop.f32.mrf.mxu0
          %749 = vmatprep.mubr.f32.mxu0 0.0
          %750 = vmatmul.mubr.f32.gmra.mxu0 %v670
          %v751 = vpop.f32.mrf.mxu0
          %v752 = vadd.f32 0.0, %v751
          %v753 = vpop.f32.mrf.mxu0
          %754 = vmatprep.mubr.f32.mxu0 0.0
          %755 = vmatmul.mubr.f32.gmra.mxu0 %v673
          %v756 = vpop.f32.mrf.mxu0
          %v757 = vadd.f32 0.0, %v756
          %v758 = vpop.f32.mrf.mxu0
          %759 = vdwg.mxu0
          %v760 = vld [vmem:[%s517] sm:$0xff]
          %v761 = vld [vmem:[%s517 + $0x8] sm:$0xff]
          %v762 = vld [vmem:[%s517 + $0x10] sm:$0xff]
          %v763 = vld [vmem:[%s517 + $0x18] sm:$0xff]
          %v764 = vld [vmem:[#allocation3] sm:$0xff]
          %v766 = vsel %vm662, %v760, 0
          %v769 = vsel %vm662, %v761, 0
          %v772 = vsel %vm662, %v762, 0
          %v775 = vsel %vm662, %v763, 0
          %777 = vmatprep.subr.mxu0 0.0
          %778 = vmatpush1.msra.mxu0 0.0
          %779 = vmatprep.subr.mxu0 0.0
          %780 = vmatpush1.msra.mxu0 0.0
          %781 = vmatprep.subr.mxu0 0.0
          %782 = vmatpush1.msra.mxu0 0.0
          %783 = vmatprep.subr.mxu0 0.0
          %784 = vmatpush1.msra.mxu0 0.0
          %785 = vmatprep.subr.mxu0 0.0
          %786 = vmatpush1.msra.mxu0 0.0
          %787 = vmatprep.subr.mxu0 0.0
          %788 = vmatpush1.msra.mxu0 0.0
          %789 = vmatprep.subr.mxu0 0.0
          %790 = vmatpush1.msra.mxu0 0.0
          %791 = vmatprep.subr.mxu0 0.0
          %792 = vmatpush1.msra.mxu0 0.0
          %793 = vmatprep.subr.mxu0 0.0
          %794 = vmatpush1.msra.mxu0 0.0
          %795 = vmatprep.subr.mxu0 0.0
          %796 = vmatpush1.msra.mxu0 0.0
          %797 = vmatprep.subr.mxu0 0.0
          %798 = vmatpush1.msra.mxu0 0.0
          %799 = vmatprep.subr.mxu0 0.0
          %800 = vmatpush1.msra.mxu0 0.0
          %801 = vmatprep.subr.mxu0 0.0
          %802 = vmatpush1.msra.mxu0 0.0
          %803 = vmatprep.subr.mxu0 0.0
          %804 = vmatpush1.msra.mxu0 0.0
          %805 = vmatprep.subr.mxu0 0.0
          %806 = vmatpush1.msra.mxu0 0.0
          %807 = vmatprep.subr.mxu0 0.0
          %808 = vmatpush1.msra.mxu0 %v764
          %809 = vmatprep.subr.mxu0 0.0
          %810 = vmatpush2.msra.mxu0 0.0
          %811 = vmatprep.subr.mxu0 0.0
          %812 = vmatpush2.msra.mxu0 0.0
          %813 = vmatprep.subr.mxu0 0.0
          %814 = vmatpush2.msra.mxu0 0.0
          %815 = vmatprep.subr.mxu0 0.0
          %816 = vmatpush2.msra.mxu0 0.0
          %817 = vmatprep.subr.mxu0 0.0
          %818 = vmatpush2.msra.mxu0 0.0
          %819 = vmatprep.subr.mxu0 0.0
          %820 = vmatpush2.msra.mxu0 0.0
          %821 = vmatprep.subr.mxu0 0.0
          %822 = vmatpush2.msra.mxu0 0.0
          %823 = vmatprep.subr.mxu0 0.0
          %824 = vmatpush2.msra.mxu0 0.0
          %825 = vmatprep.subr.mxu0 0.0
          %826 = vmatpush2.msra.mxu0 0.0
          %827 = vmatprep.subr.mxu0 0.0
          %828 = vmatpush2.msra.mxu0 0.0
          %829 = vmatprep.subr.mxu0 0.0
          %830 = vmatpush2.msra.mxu0 0.0
          %831 = vmatprep.subr.mxu0 0.0
          %832 = vmatpush2.msra.mxu0 0.0
          %833 = vmatprep.subr.mxu0 0.0
          %834 = vmatpush2.msra.mxu0 0.0
          %835 = vmatprep.subr.mxu0 0.0
          %836 = vmatpush2.msra.mxu0 0.0
          %837 = vmatprep.subr.mxu0 0.0
          %838 = vmatpush2.msra.mxu0 0.0
          %839 = vmatprep.subr.mxu0 0.0
          %840 = vmatpush2.msra.mxu0 0.0
          %841 = vmatprep.mubr.f32.mxu0 0.0
          %842 = vmatmul.mubr.f32.gmra.mxu0 %v766
          %v843 = vpop.f32.mrf.mxu0
          %v844 = vadd.f32 %v742, %v843
          %v845 = vpop.f32.mrf.mxu0
          %846 = vmatprep.mubr.f32.mxu0 0.0
          %847 = vmatmul.mubr.f32.gmra.mxu0 %v769
          %v848 = vpop.f32.mrf.mxu0
          %v849 = vadd.f32 %v747, %v848
          %v850 = vpop.f32.mrf.mxu0
          %851 = vmatprep.mubr.f32.mxu0 0.0
          %852 = vmatmul.mubr.f32.gmra.mxu0 %v772
          %v853 = vpop.f32.mrf.mxu0
          %v854 = vadd.f32 %v752, %v853
          %v855 = vpop.f32.mrf.mxu0
          %856 = vmatprep.mubr.f32.mxu0 0.0
          %857 = vmatmul.mubr.f32.gmra.mxu0 %v775
          %v858 = vpop.f32.mrf.mxu0
          %v859 = vadd.f32 %v757, %v858
          %v860 = vpop.f32.mrf.mxu0
          %861 = vdwg.mxu0
          %v862 = vld [vmem:[%s5] sm:$0x1]
          %v864 = vlaneseq
          %v865 = vshrl.u32 %v864, 7
          %v866 = vsub.s32 0, %v865
          %v867 = vrot.slane %v862, %v866
          %v869 = vadd.f32 %v844, %v867
          %v870 = vadd.f32 %v849, %v867
          %v871 = vadd.f32 %v854, %v867
          %v872 = vadd.f32 %v859, %v867
          %v873 = vmax.f32 %v869, 0.0
          %v874 = vmax.f32 %v870, 0.0
          %v875 = vmax.f32 %v871, 0.0
          %v876 = vmax.f32 %v872, 0.0
          %v877 = vld [vmem:[%s6] sm:$0xff]
          %v878 = vld [vmem:[%s6 + $0x8] sm:$0xff]
          %v879 = vld [vmem:[%s6 + $0x10] sm:$0xff]
          %v880 = vld [vmem:[%s6 + $0x18] sm:$0xff]
          %v881 = vld [vmem:[%s6 + $0x20] sm:$0xff]
          %v882 = vld [vmem:[%s6 + $0x28] sm:$0xff]
          %v883 = vld [vmem:[%s6 + $0x30] sm:$0xff]
          %v884 = vld [vmem:[%s6 + $0x38] sm:$0xff]
          %v885 = vld [vmem:[%s6 + $0x40] sm:$0xff]
          %v886 = vld [vmem:[%s6 + $0x48] sm:$0xff]
          %v887 = vld [vmem:[%s6 + $0x50] sm:$0xff]
          %v888 = vld [vmem:[%s6 + $0x58] sm:$0xff]
          %v889 = vld [vmem:[%s6 + $0x60] sm:$0xff]
          %v890 = vld [vmem:[%s6 + $0x68] sm:$0xff]
          %v891 = vld [vmem:[%s6 + $0x70] sm:$0xff]
          %v892 = vld [vmem:[%s6 + $0x78] sm:$0xff]
          %v893 = vld [vmem:[%s7] sm:$0x1]
          %v895 = vlaneseq
          %v896 = vshrl.u32 %v895, 7
          %v897 = vsub.s32 0, %v896
          %v898 = vrot.slane %v893, %v897
          %900 = vmatprep.subr.mxu0 0.0
          %901 = vmatpush1.msra.mxu0 %v892
          %902 = vmatprep.subr.mxu0 0.0
          %903 = vmatpush1.msra.mxu0 %v891
          %904 = vmatprep.subr.mxu0 0.0
          %905 = vmatpush1.msra.mxu0 %v890
          %906 = vmatprep.subr.mxu0 0.0
          %907 = vmatpush1.msra.mxu0 %v889
          %908 = vmatprep.subr.mxu0 0.0
          %909 = vmatpush1.msra.mxu0 %v888
          %910 = vmatprep.subr.mxu0 0.0
          %911 = vmatpush1.msra.mxu0 %v887
          %912 = vmatprep.subr.mxu0 0.0
          %913 = vmatpush1.msra.mxu0 %v886
          %914 = vmatprep.subr.mxu0 0.0
          %915 = vmatpush1.msra.mxu0 %v885
          %916 = vmatprep.subr.mxu0 0.0
          %917 = vmatpush1.msra.mxu0 %v884
          %918 = vmatprep.subr.mxu0 0.0
          %919 = vmatpush1.msra.mxu0 %v883
          %920 = vmatprep.subr.mxu0 0.0
          %921 = vmatpush1.msra.mxu0 %v882
          %922 = vmatprep.subr.mxu0 0.0
          %923 = vmatpush1.msra.mxu0 %v881
          %924 = vmatprep.subr.mxu0 0.0
          %925 = vmatpush1.msra.mxu0 %v880
          %926 = vmatprep.subr.mxu0 0.0
          %927 = vmatpush1.msra.mxu0 %v879
          %928 = vmatprep.subr.mxu0 0.0
          %929 = vmatpush1.msra.mxu0 %v878
          %930 = vmatprep.subr.mxu0 0.0
          %931 = vmatpush1.msra.mxu0 %v877
          %932 = vmatprep.subr.mxu0 0.0
          %933 = vmatpush2.msra.mxu0 0.0
          %934 = vmatprep.subr.mxu0 0.0
          %935 = vmatpush2.msra.mxu0 0.0
          %936 = vmatprep.subr.mxu0 0.0
          %937 = vmatpush2.msra.mxu0 0.0
          %938 = vmatprep.subr.mxu0 0.0
          %939 = vmatpush2.msra.mxu0 0.0
          %940 = vmatprep.subr.mxu0 0.0
          %941 = vmatpush2.msra.mxu0 0.0
          %942 = vmatprep.subr.mxu0 0.0
          %943 = vmatpush2.msra.mxu0 0.0
          %944 = vmatprep.subr.mxu0 0.0
          %945 = vmatpush2.msra.mxu0 0.0
          %946 = vmatprep.subr.mxu0 0.0
          %947 = vmatpush2.msra.mxu0 0.0
          %948 = vmatprep.subr.mxu0 0.0
          %949 = vmatpush2.msra.mxu0 0.0
          %950 = vmatprep.subr.mxu0 0.0
          %951 = vmatpush2.msra.mxu0 0.0
          %952 = vmatprep.subr.mxu0 0.0
          %953 = vmatpush2.msra.mxu0 0.0
          %954 = vmatprep.subr.mxu0 0.0
          %955 = vmatpush2.msra.mxu0 0.0
          %956 = vmatprep.subr.mxu0 0.0
          %957 = vmatpush2.msra.mxu0 0.0
          %958 = vmatprep.subr.mxu0 0.0
          %959 = vmatpush2.msra.mxu0 0.0
          %960 = vmatprep.subr.mxu0 0.0
          %961 = vmatpush2.msra.mxu0 0.0
          %962 = vmatprep.subr.mxu0 0.0
          %963 = vmatpush2.msra.mxu0 0.0
          %964 = vmatprep.mubr.f32.mxu0 0.0
          %965 = vmatmul.mubr.f32.gmra.mxu0 %v873
          %v966 = vpop.f32.mrf.mxu0
          %v967 = vadd.f32 %v898, %v966
          %v968 = vpop.f32.mrf.mxu0
          %969 = vmatprep.mubr.f32.mxu0 0.0
          %970 = vmatmul.mubr.f32.gmra.mxu0 %v874
          %v971 = vpop.f32.mrf.mxu0
          %v972 = vadd.f32 %v898, %v971
          %v973 = vpop.f32.mrf.mxu0
          %974 = vmatprep.mubr.f32.mxu0 0.0
          %975 = vmatmul.mubr.f32.gmra.mxu0 %v875
          %v976 = vpop.f32.mrf.mxu0
          %v977 = vadd.f32 %v898, %v976
          %v978 = vpop.f32.mrf.mxu0
          %979 = vmatprep.mubr.f32.mxu0 0.0
          %980 = vmatmul.mubr.f32.gmra.mxu0 %v876
          %v981 = vpop.f32.mrf.mxu0
          %v982 = vadd.f32 %v898, %v981
          %v983 = vpop.f32.mrf.mxu0
          %984 = vdwg.mxu0
          %v985 = vmax.f32 %v967, 0.0
          %v986 = vmax.f32 %v972, 0.0
          %v987 = vmax.f32 %v977, 0.0
          %v988 = vmax.f32 %v982, 0.0
          %v989 = vld [vmem:[#allocation6] sm:$0xff]
          %v990 = vld [vmem:[#allocation6 + $0x8] sm:$0xff]
          %v991 = vld [vmem:[#allocation6 + $0x10] sm:$0xff]
          %v992 = vld [vmem:[#allocation6 + $0x18] sm:$0xff]
          %v993 = vld [vmem:[#allocation6 + $0x20] sm:$0xff]
          %v994 = vld [vmem:[#allocation6 + $0x28] sm:$0xff]
          %v995 = vld [vmem:[#allocation6 + $0x30] sm:$0xff]
          %v996 = vld [vmem:[#allocation6 + $0x38] sm:$0xff]
          %v997 = vld [vmem:[#allocation6 + $0x40] sm:$0xff]
          %v998 = vld [vmem:[#allocation6 + $0x48] sm:$0xff]
          %v999 = vld [vmem:[#allocation6 + $0x50] sm:$0xff]
          %v1000 = vld [vmem:[#allocation6 + $0x58] sm:$0xff]
          %v1001 = vld [vmem:[#allocation6 + $0x60] sm:$0xff]
          %v1002 = vld [vmem:[#allocation6 + $0x68] sm:$0xff]
          %v1003 = vld [vmem:[#allocation6 + $0x70] sm:$0xff]
          %v1004 = vld [vmem:[#allocation6 + $0x78] sm:$0xff]
          %v1005 = vld [vmem:[%s9] sm:$0x1]
          %v1007 = vlaneseq
          %v1008 = vshrl.u32 %v1007, 7
          %v1009 = vsub.s32 0, %v1008
          %v1010 = vrot.slane %v1005, %v1009
          %1012 = vmatprep.subr.mxu0 0.0
          %1013 = vmatpush1.msra.mxu0 %v1004
          %1014 = vmatprep.subr.mxu0 0.0
          %1015 = vmatpush1.msra.mxu0 %v1003
          %1016 = vmatprep.subr.mxu0 0.0
          %1017 = vmatpush1.msra.mxu0 %v1002
          %1018 = vmatprep.subr.mxu0 0.0
          %1019 = vmatpush1.msra.mxu0 %v1001
          %1020 = vmatprep.subr.mxu0 0.0
          %1021 = vmatpush1.msra.mxu0 %v1000
          %1022 = vmatprep.subr.mxu0 0.0
          %1023 = vmatpush1.msra.mxu0 %v999
          %1024 = vmatprep.subr.mxu0 0.0
          %1025 = vmatpush1.msra.mxu0 %v998
          %1026 = vmatprep.subr.mxu0 0.0
          %1027 = vmatpush1.msra.mxu0 %v997
          %1028 = vmatprep.subr.mxu0 0.0
          %1029 = vmatpush1.msra.mxu0 %v996
          %1030 = vmatprep.subr.mxu0 0.0
          %1031 = vmatpush1.msra.mxu0 %v995
          %1032 = vmatprep.subr.mxu0 0.0
          %1033 = vmatpush1.msra.mxu0 %v994
          %1034 = vmatprep.subr.mxu0 0.0
          %1035 = vmatpush1.msra.mxu0 %v993
          %1036 = vmatprep.subr.mxu0 0.0
          %1037 = vmatpush1.msra.mxu0 %v992
          %1038 = vmatprep.subr.mxu0 0.0
          %1039 = vmatpush1.msra.mxu0 %v991
          %1040 = vmatprep.subr.mxu0 0.0
          %1041 = vmatpush1.msra.mxu0 %v990
          %1042 = vmatprep.subr.mxu0 0.0
          %1043 = vmatpush1.msra.mxu0 %v989
          %1044 = vmatprep.subr.mxu0 0.0
          %1045 = vmatpush2.msra.mxu0 0.0
          %1046 = vmatprep.subr.mxu0 0.0
          %1047 = vmatpush2.msra.mxu0 0.0
          %1048 = vmatprep.subr.mxu0 0.0
          %1049 = vmatpush2.msra.mxu0 0.0
          %1050 = vmatprep.subr.mxu0 0.0
          %1051 = vmatpush2.msra.mxu0 0.0
          %1052 = vmatprep.subr.mxu0 0.0
          %1053 = vmatpush2.msra.mxu0 0.0
          %1054 = vmatprep.subr.mxu0 0.0
          %1055 = vmatpush2.msra.mxu0 0.0
          %1056 = vmatprep.subr.mxu0 0.0
          %1057 = vmatpush2.msra.mxu0 0.0
          %1058 = vmatprep.subr.mxu0 0.0
          %1059 = vmatpush2.msra.mxu0 0.0
          %1060 = vmatprep.subr.mxu0 0.0
          %1061 = vmatpush2.msra.mxu0 0.0
          %1062 = vmatprep.subr.mxu0 0.0
          %1063 = vmatpush2.msra.mxu0 0.0
          %1064 = vmatprep.subr.mxu0 0.0
          %1065 = vmatpush2.msra.mxu0 0.0
          %1066 = vmatprep.subr.mxu0 0.0
          %1067 = vmatpush2.msra.mxu0 0.0
          %1068 = vmatprep.subr.mxu0 0.0
          %1069 = vmatpush2.msra.mxu0 0.0
          %1070 = vmatprep.subr.mxu0 0.0
          %1071 = vmatpush2.msra.mxu0 0.0
          %1072 = vmatprep.subr.mxu0 0.0
          %1073 = vmatpush2.msra.mxu0 0.0
          %1074 = vmatprep.subr.mxu0 0.0
          %1075 = vmatpush2.msra.mxu0 0.0
          %1076 = vmatprep.mubr.f32.mxu0 0.0
          %1077 = vmatmul.mubr.f32.gmra.mxu0 %v985
          %v1078 = vpop.f32.mrf.mxu0
          %v1079 = vadd.f32 %v1010, %v1078
          %v1080 = vpop.f32.mrf.mxu0
          %1081 = vmatprep.mubr.f32.mxu0 0.0
          %1082 = vmatmul.mubr.f32.gmra.mxu0 %v986
          %v1083 = vpop.f32.mrf.mxu0
          %v1084 = vadd.f32 %v1010, %v1083
          %v1085 = vpop.f32.mrf.mxu0
          %1086 = vmatprep.mubr.f32.mxu0 0.0
          %1087 = vmatmul.mubr.f32.gmra.mxu0 %v987
          %v1088 = vpop.f32.mrf.mxu0
          %v1089 = vadd.f32 %v1010, %v1088
          %v1090 = vpop.f32.mrf.mxu0
          %1091 = vmatprep.mubr.f32.mxu0 0.0
          %1092 = vmatmul.mubr.f32.gmra.mxu0 %v988
          %v1093 = vpop.f32.mrf.mxu0
          %v1094 = vadd.f32 %v1010, %v1093
          %v1095 = vpop.f32.mrf.mxu0
          %1096 = vdwg.mxu0
          %v1097 = vld [vmem:[%s10] sm:$0x1]
          %v1098 = vld [vmem:[%s11] sm:$0x1]
          %v1099 = vld [vmem:[%s12] sm:$0x1]
          %1100 = vadd.xlane.f32.xlu0 %v1079
          %v1101 = vpop.xlane.xlu0 %1100
          %1102 = vadd.xlane.f32.xlu0 %v1084
          %v1103 = vpop.xlane.xlu0 %1102
          %1104 = vadd.xlane.f32.xlu0 %v1089
          %v1105 = vpop.xlane.xlu0 %1104
          %1106 = vadd.xlane.f32.xlu0 %v1094
          %v1107 = vpop.xlane.xlu0 %1106
          %v1108 = vmul.f32 %v1101, 0.0625
          %v1109 = vmul.f32 %v1103, 0.0625
          %v1110 = vmul.f32 %v1105, 0.0625
          %v1111 = vmul.f32 %v1107, 0.0625
          %v1112 = vsub.f32 %v1079, %v1108
          %v1113 = vsub.f32 %v1084, %v1109
          %v1114 = vsub.f32 %v1089, %v1110
          %v1115 = vsub.f32 %v1094, %v1111
          %v1117 = vlaneseq
          %v1118 = vshrl.u32 %v1117, 7
          %v1119 = vsub.s32 0, %v1118
          %v1120 = vrot.slane %v1099, %v1119
          %v1122 = vmul.f32 %v1112, %v1120
          %v1123 = vmul.f32 %v1113, %v1120
          %v1124 = vmul.f32 %v1114, %v1120
          %v1125 = vmul.f32 %v1115, %v1120
          %v1126 = vmul.f32 %v1122, %v1122
          %v1127 = vmul.f32 %v1123, %v1123
          %v1128 = vmul.f32 %v1124, %v1124
          %v1129 = vmul.f32 %v1125, %v1125
          %1130 = vadd.xlane.f32.xlu0 %v1126
          %v1131 = vpop.xlane.xlu0 %1130
          %1132 = vadd.xlane.f32.xlu0 %v1127
          %v1133 = vpop.xlane.xlu0 %1132
          %1134 = vadd.xlane.f32.xlu0 %v1128
          %v1135 = vpop.xlane.xlu0 %1134
          %1136 = vadd.xlane.f32.xlu0 %v1129
          %v1137 = vpop.xlane.xlu0 %1136
          %v1138 = vmul.f32 %v1131, 0.0625
          %v1139 = vmul.f32 %v1133, 0.0625
          %v1140 = vmul.f32 %v1135, 0.0625
          %v1141 = vmul.f32 %v1137, 0.0625
          %v1142 = vadd.f32 %v1138, 1e-05
          %v1143 = vadd.f32 %v1139, 1e-05
          %v1144 = vadd.f32 %v1140, 1e-05
          %v1145 = vadd.f32 %v1141, 1e-05
          %v1146 = vrsqrt.pop %v1142
          %v1147 = vrsqrt.pop %v1143
          %v1148 = vrsqrt.pop %v1144
          %v1149 = vrsqrt.pop %v1145
          %v1150 = vmul.f32 %v1122, %v1146
          %v1151 = vmul.f32 %v1123, %v1147
          %v1152 = vmul.f32 %v1124, %v1148
          %v1153 = vmul.f32 %v1125, %v1149
          %v1155 = vlaneseq
          %v1156 = vshrl.u32 %v1155, 7
          %v1157 = vsub.s32 0, %v1156
          %v1158 = vrot.slane %v1097, %v1157
          %v1160 = vmul.f32 %v1150, %v1158
          %v1161 = vmul.f32 %v1151, %v1158
          %v1162 = vmul.f32 %v1152, %v1158
          %v1163 = vmul.f32 %v1153, %v1158
          %v1165 = vlaneseq
          %v1166 = vshrl.u32 %v1165, 7
          %v1167 = vsub.s32 0, %v1166
          %v1168 = vrot.slane %v1098, %v1167
          %v1170 = vadd.f32 %v1160, %v1168
          %v1171 = vadd.f32 %v1161, %v1168
          %v1172 = vadd.f32 %v1162, %v1168
          %v1173 = vadd.f32 %v1163, %v1168
          %1174 = vxpose.xlu0.b32.start [1/16] %v657, 128
          %1175 = vxpose.xlu0.b32.cont [2/16] %v658, 128
          %1176 = vxpose.xlu0.b32.cont [3/16] %v659, 128
          %1177 = vxpose.xlu0.b32.cont [4/16] %v660, 128
          %1178 = vxpose.xlu0.b32.cont [5/16] 0.0, 128
          %1179 = vxpose.xlu0.b32.cont [6/16] 0.0, 128
          %1180 = vxpose.xlu0.b32.cont [7/16] 0.0, 128
          %1181 = vxpose.xlu0.b32.cont [8/16] 0.0, 128
          %1182 = vxpose.xlu0.b32.cont [9/16] 0.0, 128
          %1183 = vxpose.xlu0.b32.cont [10/16] 0.0, 128
          %1184 = vxpose.xlu0.b32.cont [11/16] 0.0, 128
          %1185 = vxpose.xlu0.b32.cont [12/16] 0.0, 128
          %1186 = vxpose.xlu0.b32.cont [13/16] 0.0, 128
          %1187 = vxpose.xlu0.b32.cont [14/16] 0.0, 128
          %1188 = vxpose.xlu0.b32.cont [15/16] 0.0, 128
          %1189 = vxpose.xlu0.b32.end [16/16] 0.0, 128
          %v1190 = vpop.trf.xlu0
          %v1191 = vpop.trf.xlu0
          %v1192 = vpop.trf.xlu0
          %v1193 = vpop.trf.xlu0
          %v1194 = vpop.trf.xlu0
          %v1195 = vpop.trf.xlu0
          %v1196 = vpop.trf.xlu0
          %v1197 = vpop.trf.xlu0
          %v1198 = vpop.trf.xlu0
          %v1199 = vpop.trf.xlu0
          %v1200 = vpop.trf.xlu0
          %v1201 = vpop.trf.xlu0
          %v1202 = vpop.trf.xlu0
          %v1203 = vpop.trf.xlu0
          %v1204 = vpop.trf.xlu0
          %v1205 = vpop.trf.xlu0
          %vm1206 = vcmask 261120
          %v1208 = vsel %vm1206, %v1190, 0
          %1210 = vmatprep.subr.mxu0 0.0
          %1211 = vmatpush1.msra.mxu0 0.0
          %1212 = vmatprep.subr.mxu0 0.0
          %1213 = vmatpush1.msra.mxu0 0.0
          %1214 = vmatprep.subr.mxu0 0.0
          %1215 = vmatpush1.msra.mxu0 0.0
          %1216 = vmatprep.subr.mxu0 0.0
          %1217 = vmatpush1.msra.mxu0 0.0
          %1218 = vmatprep.subr.mxu0 0.0
          %1219 = vmatpush1.msra.mxu0 0.0
          %1220 = vmatprep.subr.mxu0 0.0
          %1221 = vmatpush1.msra.mxu0 0.0
          %1222 = vmatprep.subr.mxu0 0.0
          %1223 = vmatpush1.msra.mxu0 0.0
          %1224 = vmatprep.subr.mxu0 0.0
          %1225 = vmatpush1.msra.mxu0 0.0
          %1226 = vmatprep.subr.mxu0 0.0
          %1227 = vmatpush1.msra.mxu0 0.0
          %1228 = vmatprep.subr.mxu0 0.0
          %1229 = vmatpush1.msra.mxu0 0.0
          %1230 = vmatprep.subr.mxu0 0.0
          %1231 = vmatpush1.msra.mxu0 0.0
          %1232 = vmatprep.subr.mxu0 0.0
          %1233 = vmatpush1.msra.mxu0 0.0
          %1234 = vmatprep.subr.mxu0 0.0
          %1235 = vmatpush1.msra.mxu0 %v1173
          %1236 = vmatprep.subr.mxu0 0.0
          %1237 = vmatpush1.msra.mxu0 %v1172
          %1238 = vmatprep.subr.mxu0 0.0
          %1239 = vmatpush1.msra.mxu0 %v1171
          %1240 = vmatprep.subr.mxu0 0.0
          %1241 = vmatpush1.msra.mxu0 %v1170
          %1242 = vmatprep.subr.mxu0 0.0
          %1243 = vmatpush2.msra.mxu0 0.0
          %1244 = vmatprep.subr.mxu0 0.0
          %1245 = vmatpush2.msra.mxu0 0.0
          %1246 = vmatprep.subr.mxu0 0.0
          %1247 = vmatpush2.msra.mxu0 0.0
          %1248 = vmatprep.subr.mxu0 0.0
          %1249 = vmatpush2.msra.mxu0 0.0
          %1250 = vmatprep.subr.mxu0 0.0
          %1251 = vmatpush2.msra.mxu0 0.0
          %1252 = vmatprep.subr.mxu0 0.0
          %1253 = vmatpush2.msra.mxu0 0.0
          %1254 = vmatprep.subr.mxu0 0.0
          %1255 = vmatpush2.msra.mxu0 0.0
          %1256 = vmatprep.subr.mxu0 0.0
          %1257 = vmatpush2.msra.mxu0 0.0
          %1258 = vmatprep.subr.mxu0 0.0
          %1259 = vmatpush2.msra.mxu0 0.0
          %1260 = vmatprep.subr.mxu0 0.0
          %1261 = vmatpush2.msra.mxu0 0.0
          %1262 = vmatprep.subr.mxu0 0.0
          %1263 = vmatpush2.msra.mxu0 0.0
          %1264 = vmatprep.subr.mxu0 0.0
          %1265 = vmatpush2.msra.mxu0 0.0
          %1266 = vmatprep.subr.mxu0 0.0
          %1267 = vmatpush2.msra.mxu0 0.0
          %1268 = vmatprep.subr.mxu0 0.0
          %1269 = vmatpush2.msra.mxu0 0.0
          %1270 = vmatprep.subr.mxu0 0.0
          %1271 = vmatpush2.msra.mxu0 0.0
          %1272 = vmatprep.subr.mxu0 0.0
          %1273 = vmatpush2.msra.mxu0 0.0
          %1274 = vmatprep.mubr.f32.mxu0 0.0
          %1275 = vmatmul.mubr.f32.gmra.mxu0 %v1208
          %v1276 = vpop.f32.mrf.mxu0
          %v1277 = vadd.f32 0.0, %v1276
          %v1278 = vpop.f32.mrf.mxu0
          %1279 = vdwg.mxu0
          %v1280 = vld [vmem:[%s510] sm:$0xff]
          %v1281 = vadd.f32 %v1280, %v1277
          %1282 = vst [vmem:[%s510] sm:$0xff] %v1281
        $region88: #{tpu_custom_call.1} parent=71 // pred_fallthru
          _
        %s1283 = sand.u32 %s340, 1
        %s1284 = scalar_lea.sflag [#allocation5], %s1283
        %s1285 = sand.u32 %s340, 1
        %s1286 = smul.addr %s1285, 8
        %s1287 = scalar_lea.vmem [#allocation8], %s1286
        // Predicated region
        $region89: #{tpu_custom_call.1} parent=71 // pred_check
          %p1288 = pneg %p350
        $region90: #{tpu_custom_call.1} parent=71 // pred_check_branch
          %1290 = sbr.rel (%p1288) target = $region92
        $region91: #{tpu_custom_call.1} parent=71 // pred_region
          %s1292 = ssub.s32 128, 128
          %1293 = vsyncadd %s1284, %s1292
          %s1294 = smul.addr %s33, 128
          %s1295 = scalar_lea.hbm %s13, %s1294
          %s1297 = sshll.u32 %s1287, 4
          %s1298 = int_to_ptr.vmem [resolvable:$true] %s1297
          %1300 = dma.vmem_to_hbm [thread:$0]  %s1298, 128, %s1295, %s1284
        $region92: #{tpu_custom_call.1} parent=71 // pred_fallthru
          _
      $region72: #{tpu_custom_call.1} parent=5 // pred_fallthru
        _
      %p1301 = scmp.le.s32.totalorder 2, %s24
      // Predicated region
      $region93: #{tpu_custom_call.1} parent=5 // pred_check
        %p1302 = pneg %p1301
      $region94: #{tpu_custom_call.1} parent=5 // pred_check_branch
        %1304 = sbr.rel (%p1302) target = $region96
      $region95: #{tpu_custom_call.1} parent=5 // pred_region
        %s1305 = ssub.s32 %s24, 2
        // Predicated region
        $region97: #{tpu_custom_call.1} parent=95 // pred_check
          %p1306 = pneg %p356
        $region98: #{tpu_custom_call.1} parent=95 // pred_check_branch
          %1308 = sbr.rel (%p1306) target = $region100
        $region99: #{tpu_custom_call.1} parent=95 // pred_region
          %s1309 = sand.u32 %s341, 1
          %s1310 = scalar_lea.sflag [#allocation5], %s1309
          %s1311 = sand.u32 %s341, 1
          %s1312 = smul.addr %s1311, 8
          %s1313 = scalar_lea.vmem [#allocation8], %s1312
          %1314 = dma.done %s1310, 128
        $region100: #{tpu_custom_call.1} parent=95 // pred_fallthru
          _
      $region96: #{tpu_custom_call.1} parent=5 // pred_fallthru
        _
    $region6: #{tpu_custom_call.1} parent=1 // loop_footer
      %s28 = sadd.s32 1, %s24
    $region7: #{tpu_custom_call.1} parent=1 // loop_footer_branch
      %23 = sbr.rel target = $region3
    $region8: #{tpu_custom_call.1} parent=1 // loop_exit
      _
    %1315 = vsyncpa [#allocation4], 1
    %s1316 = scalar_lea.sflag [#allocation4], 1
    %1317 = vsyncpa %s1316, 1
    %1318 = vsyncpa [#allocation7], 1
    %1319 = vsyncpa [#allocation5], 1
    %s1320 = scalar_lea.sflag [#allocation5], 1
    %1321 = vsyncpa %s1320, 1

// kernel: tpu_custom_call.1
$region0: #{tpu_custom_call.1}
  #allocation0 [shape = 'u32[]', space=smem, size = 0x4, offset = 0x4, fixed_abs, tag = 'smem constant byte address 0x4 - core index']
  #allocation1 [shape = 'u32[144,128]{1,0:T(1,128)}', space=vmem, size = 0x12000, scoped, tag = 'internal scratch']
  #allocation2 [shape = 'f32[8,128]{1,0:T(8,128)}', space=vmem, size = 0x1000, scoped, tag = 'scratch operand']
  %s0 = inlined_call_operand.vmem [shape: f32[128,8], index: 0, kind: input, shape index: {}]
  %s1 = inlined_call_operand.vmem [shape: s32[128,1], index: 1, kind: input, shape index: {}]
  %s2 = inlined_call_operand.vmem [shape: f32[8,128], index: 2, kind: input, shape index: {}]
  %s3 = inlined_call_operand.hbm [shape: f32[8,128], index: 3, kind: input, shape index: {}]
  %s4 = inlined_call_operand.vmem [shape: f32[128,128], index: 4, kind: input, shape index: {}]
  %s5 = inlined_call_operand.vmem [shape: f32[1,128], index: 5, kind: input, shape index: {}]
  %s6 = inlined_call_operand.vmem [shape: f32[128,128], index: 6, kind: input, shape index: {}]
  %s7 = inlined_call_operand.vmem [shape: f32[1,128], index: 7, kind: input, shape index: {}]
  %s8 = inlined_call_operand.hbm [shape: f32[128,128], index: 8, kind: input, shape index: {}]
  %s9 = inlined_call_operand.vmem [shape: f32[1,128], index: 9, kind: input, shape index: {}]
  %s10 = inlined_call_operand.vmem [shape: f32[1,128], index: 10, kind: input, shape index: {}]
  %s11 = inlined_call_operand.vmem [shape: f32[1,128], index: 11, kind: input, shape index: {}]
  %s12 = inlined_call_operand.vmem [shape: f32[1,128], index: 12, kind: input, shape index: {}]
  %s13 = inlined_call_operand.hbm [shape: f32[2,8,128], index: 13, kind: output, shape index: {}]
  %s14 = sld [smem:[#allocation0]]
  $region101: #{tpu_custom_call.1} parent=0
    _
  %s16 = ssub.s32 1, %s14
  %s17 = scalar_select 0, %s16, %s14
  $region1: #{tpu_custom_call.1} parent=0
    #allocation3 [shape = 'u8[4096]{0}', space=vmem, size = 0x1000, scoped, tag = 'input window, operand 3, single buffered']
    #allocation4 [shape = 's32[2]{0}', space=sflag, size = 0x8, scoped, tag = 'scoped memory for tpu_custom_call.1']
    #allocation5 [shape = 's32[2]{0}', space=sflag, size = 0x8, scoped, tag = 'scoped memory for tpu_custom_call.1']
    #allocation6 [shape = 'u8[65536]{0}', space=vmem, size = 0x10000, scoped, tag = 'input window, operand 8, single buffered']
    #allocation7 [shape = 's32[1]{0}', space=sflag, size = 0x4, scoped, tag = 'scoped memory for tpu_custom_call.1']
    #allocation8 [shape = 'u8[8192]{0}', space=vmem, size = 0x2000, scoped, tag = 'output window, operand 0']
    %18 = vsyncpa [#allocation4], 0
    %19 = vsyncpa [#allocation7], 0
    %20 = vsyncpa [#allocation5], 0
    %s21 = scalar_lea.sflag [#allocation5], 1
    %22 = vsyncpa %s21, 0
    loop: start=0, step=1, limit=6
    $region2: #{tpu_custom_call.1} parent=1 // loop_pre_header
      _
    $region3: #{tpu_custom_call.1} parent=1 // loop_header
      %s24 = sphi 0, %s28
      %p25 = scmp.ge.s32.totalorder %s24, 6
      %s31 = sphi 0, %s43
      %s32 = sphi 0, %s39
      %s33 = sphi 0, %s31
      %s34 = sphi 0, %s32
      %s35 = sphi 0, %s33
      %s36 = sphi 0, %s34
      %s50 = sphi 0, %s52
      %s53 = sphi 0, %s50
      %s54 = sphi 0, %s53
      %s70 = sphi 0, %s54
      %s80 = sphi 0, %s82
      %s83 = sphi 0, %s80
      %s84 = sphi 0, %s83
      %s100 = sphi 0, %s84
      %s104 = sphi 0, %s104
      %s106 = sphi 0, %s104
      %s107 = sphi 0, %s106
      %s121 = sphi 0, %s107
      %s125 = sphi 0, %s125
      %s127 = sphi 0, %s125
      %s128 = sphi 0, %s127
      %s142 = sphi 0, %s128
      %s146 = sphi 0, %s146
      %s148 = sphi 0, %s146
      %s149 = sphi 0, %s148
      %s163 = sphi 0, %s149
      %s167 = sphi 0, %s167
      %s169 = sphi 0, %s167
      %s170 = sphi 0, %s169
      %s184 = sphi 0, %s170
      %s188 = sphi 0, %s188
      %s190 = sphi 0, %s188
      %s191 = sphi 0, %s190
      %s205 = sphi 0, %s191
      %s209 = sphi 0, %s209
      %s211 = sphi 0, %s209
      %s212 = sphi 0, %s211
      %s226 = sphi 0, %s212
      %s230 = sphi 0, %s230
      %s232 = sphi 0, %s230
      %s233 = sphi 0, %s232
      %s247 = sphi 0, %s233
      %s251 = sphi 0, %s251
      %s253 = sphi 0, %s251
      %s254 = sphi 0, %s253
      %s268 = sphi 0, %s254
      %s272 = sphi 0, %s272
      %s274 = sphi 0, %s272
      %s275 = sphi 0, %s274
      %s289 = sphi 0, %s275
      %s293 = sphi 0, %s293
      %s295 = sphi 0, %s293
      %s296 = sphi 0, %s295
      %s310 = sphi 0, %s296
      %s314 = sphi 0, %s314
      %s316 = sphi 0, %s314
      %s317 = sphi 0, %s316
      %s331 = sphi 0, %s317
      %s337 = sphi 0, %s339
      %s340 = sphi 0, %s337
      %s341 = sphi 0, %s340
      %s357 = sphi 0, %s341
    $region4: #{tpu_custom_call.1} parent=1 // loop_header_branch
      %27 = sbr.rel (%p25) target = $region8
    $region5: #{tpu_custom_call.1} parent=1 // loop_body
      %s29 = ssub.s32 %s24, 1
      %s30 = ssub.s32 %s24, 2
      %s37 = sadd.s32 1, %s32
      %p38 = scmp.ge.s32.totalorder %s37, 2
      %s39 = scalar_select %p38, 0, %s37
      %s40 = sadd.s32 1, %s31
      %s41 = scalar_select %p38, %s40, %s31
      %p42 = scmp.ge.s32.totalorder %s41, 2
      %s43 = scalar_select %p42, 0, %s41
      %s44 = smul.u32 %s31, 2
      %s45 = sadd.s32 %s44, %s32
      %s46 = smul.u32 %s43, 2
      %s47 = sadd.s32 %s46, %s39
      %s48 = ssub.s32 %s45, %s47
      %p49 = scmp.eq.s32.totalorder %s48, 0
      %s51 = sadd.s32 %s50, 1
      %s52 = scalar_select %p49, %s50, %s51
      %p55 = pneg %p49
      %p56 = scmp.eq.s32.totalorder %s24, 3
      %p57 = por %p55, %p56
      %p58 = scmp.ne.s32.totalorder %s50, %s53
      %p59 = scmp.eq.s32.totalorder %s24, 0
      %p60 = por %p58, %p59
      %p61 = scmp.ne.s32.totalorder %s50, %s53
      %p62 = scmp.eq.s32.totalorder %s29, 3
      %p63 = por %p61, %p62
      %p64 = scmp.ne.s32.totalorder %s53, %s54
      %p65 = scmp.eq.s32.totalorder %s29, 0
      %p66 = por %p64, %p65
      %p67 = scmp.ne.s32.totalorder %s53, %s54
      %p68 = scmp.eq.s32.totalorder %s30, 3
      %p69 = por %p67, %p68
      %p71 = scmp.ne.s32.totalorder %s54, %s70
      %p72 = scmp.eq.s32.totalorder %s30, 0
      %p73 = por %p71, %p72
      %s74 = smul.u32 %s31, 2
      %s75 = sadd.s32 %s74, %s32
      %s76 = smul.u32 %s43, 2
      %s77 = sadd.s32 %s76, %s39
      %s78 = ssub.s32 %s75, %s77
      %p79 = scmp.eq.s32.totalorder %s78, 0
      %s81 = sadd.s32 %s80, 1
      %s82 = scalar_select %p79, %s80, %s81
      %p85 = pneg %p79
      %p86 = scmp.eq.s32.totalorder %s24, 3
      %p87 = por %p85, %p86
      %p88 = scmp.ne.s32.totalorder %s80, %s83
      %p89 = scmp.eq.s32.totalorder %s24, 0
      %p90 = por %p88, %p89
      %p91 = scmp.ne.s32.totalorder %s80, %s83
      %p92 = scmp.eq.s32.totalorder %s29, 3
      %p93 = por %p91, %p92
      %p94 = scmp.ne.s32.totalorder %s83, %s84
      %p95 = scmp.eq.s32.totalorder %s29, 0
      %p96 = por %p94, %p95
      %p97 = scmp.ne.s32.totalorder %s83, %s84
      %p98 = scmp.eq.s32.totalorder %s30, 3
      %p99 = por %p97, %p98
      %p101 = scmp.ne.s32.totalorder %s84, %s100
      %p102 = scmp.eq.s32.totalorder %s30, 0
      %p103 = por %p101, %p102
      %s105 = sadd.s32 %s104, 1
      %p108 = scmp.eq.s32.totalorder %s24, 3
      %p109 = scmp.ne.s32.totalorder %s104, %s106
      %p110 = scmp.eq.s32.totalorder %s24, 0
      %p111 = por %p109, %p110
      %p112 = scmp.ne.s32.totalorder %s104, %s106
      %p113 = scmp.eq.s32.totalorder %s29, 3
      %p114 = por %p112, %p113
      %p115 = scmp.ne.s32.totalorder %s106, %s107
      %p116 = scmp.eq.s32.totalorder %s29, 0
      %p117 = por %p115, %p116
      %p118 = scmp.ne.s32.totalorder %s106, %s107
      %p119 = scmp.eq.s32.totalorder %s30, 3
      %p120 = por %p118, %p119
      %p122 = scmp.ne.s32.totalorder %s107, %s121
      %p123 = scmp.eq.s32.totalorder %s30, 0
      %p124 = por %p122, %p123
      %s126 = sadd.s32 %s125, 1
      %p129 = scmp.eq.s32.totalorder %s24, 3
      %p130 = scmp.ne.s32.totalorder %s125, %s127
      %p131 = scmp.eq.s32.totalorder %s24, 0
      %p132 = por %p130, %p131
      %p133 = scmp.ne.s32.totalorder %s125, %s127
      %p134 = scmp.eq.s32.totalorder %s29, 3
      %p135 = por %p133, %p134
      %p136 = scmp.ne.s32.totalorder %s127, %s128
      %p137 = scmp.eq.s32.totalorder %s29, 0
      %p138 = por %p136, %p137
      %p139 = scmp.ne.s32.totalorder %s127, %s128
      %p140 = scmp.eq.s32.totalorder %s30, 3
      %p141 = por %p139, %p140
      %p143 = scmp.ne.s32.totalorder %s128, %s142
      %p144 = scmp.eq.s32.totalorder %s30, 0
      %p145 = por %p143, %p144
      %s147 = sadd.s32 %s146, 1
      %p150 = scmp.eq.s32.totalorder %s24, 3
      %p151 = scmp.ne.s32.totalorder %s146, %s148
      %p152 = scmp.eq.s32.totalorder %s24, 0
      %p153 = por %p151, %p152
      %p154 = scmp.ne.s32.totalorder %s146, %s148
      %p155 = scmp.eq.s32.totalorder %s29, 3
      %p156 = por %p154, %p155
      %p157 = scmp.ne.s32.totalorder %s148, %s149
      %p158 = scmp.eq.s32.totalorder %s29, 0
      %p159 = por %p157, %p158
      %p160 = scmp.ne.s32.totalorder %s148, %s149
      %p161 = scmp.eq.s32.totalorder %s30, 3
      %p162 = por %p160, %p161
      %p164 = scmp.ne.s32.totalorder %s149, %s163
      %p165 = scmp.eq.s32.totalorder %s30, 0
      %p166 = por %p164, %p165
      %s168 = sadd.s32 %s167, 1
      %p171 = scmp.eq.s32.totalorder %s24, 3
      %p172 = scmp.ne.s32.totalorder %s167, %s169
      %p173 = scmp.eq.s32.totalorder %s24, 0
      %p174 = por %p172, %p173
      %p175 = scmp.ne.s32.totalorder %s167, %s169
      %p176 = scmp.eq.s32.totalorder %s29, 3
      %p177 = por %p175, %p176
      %p178 = scmp.ne.s32.totalorder %s169, %s170
      %p179 = scmp.eq.s32.totalorder %s29, 0
      %p180 = por %p178, %p179
      %p181 = scmp.ne.s32.totalorder %s169, %s170
      %p182 = scmp.eq.s32.totalorder %s30, 3
      %p183 = por %p181, %p182
      %p185 = scmp.ne.s32.totalorder %s170, %s184
      %p186 = scmp.eq.s32.totalorder %s30, 0
      %p187 = por %p185, %p186
      %s189 = sadd.s32 %s188, 1
      %p192 = scmp.eq.s32.totalorder %s24, 3
      %p193 = scmp.ne.s32.totalorder %s188, %s190
      %p194 = scmp.eq.s32.totalorder %s24, 0
      %p195 = por %p193, %p194
      %p196 = scmp.ne.s32.totalorder %s188, %s190
      %p197 = scmp.eq.s32.totalorder %s29, 3
      %p198 = por %p196, %p197
      %p199 = scmp.ne.s32.totalorder %s190, %s191
      %p200 = scmp.eq.s32.totalorder %s29, 0
      %p201 = por %p199, %p200
      %p202 = scmp.ne.s32.totalorder %s190, %s191
      %p203 = scmp.eq.s32.totalorder %s30, 3
      %p204 = por %p202, %p203
      %p206 = scmp.ne.s32.totalorder %s191, %s205
      %p207 = scmp.eq.s32.totalorder %s30, 0
      %p208 = por %p206, %p207
      %s210 = sadd.s32 %s209, 1
      %p213 = scmp.eq.s32.totalorder %s24, 3
      %p214 = scmp.ne.s32.totalorder %s209, %s211
      %p215 = scmp.eq.s32.totalorder %s24, 0
      %p216 = por %p214, %p215
      %p217 = scmp.ne.s32.totalorder %s209, %s211
      %p218 = scmp.eq.s32.totalorder %s29, 3
      %p219 = por %p217, %p218
      %p220 = scmp.ne.s32.totalorder %s211, %s212
      %p221 = scmp.eq.s32.totalorder %s29, 0
      %p222 = por %p220, %p221
      %p223 = scmp.ne.s32.totalorder %s211, %s212
      %p224 = scmp.eq.s32.totalorder %s30, 3
      %p225 = por %p223, %p224
      %p227 = scmp.ne.s32.totalorder %s212, %s226
      %p228 = scmp.eq.s32.totalorder %s30, 0
      %p229 = por %p227, %p228
      %s231 = sadd.s32 %s230, 1
      %p234 = scmp.eq.s32.totalorder %s24, 3
      %p235 = scmp.ne.s32.totalorder %s230, %s232
      %p236 = scmp.eq.s32.totalorder %s24, 0
      %p237 = por %p235, %p236
      %p238 = scmp.ne.s32.totalorder %s230, %s232
      %p239 = scmp.eq.s32.totalorder %s29, 3
      %p240 = por %p238, %p239
      %p241 = scmp.ne.s32.totalorder %s232, %s233
      %p242 = scmp.eq.s32.totalorder %s29, 0
      %p243 = por %p241, %p242
      %p244 = scmp.ne.s32.totalorder %s232, %s233
      %p245 = scmp.eq.s32.totalorder %s30, 3
      %p246 = por %p244, %p245
      %p248 = scmp.ne.s32.totalorder %s233, %s247
      %p249 = scmp.eq.s32.totalorder %s30, 0
      %p250 = por %p248, %p249
      %s252 = sadd.s32 %s251, 1
      %p255 = scmp.eq.s32.totalorder %s24, 3
      %p256 = scmp.ne.s32.totalorder %s251, %s253
      %p257 = scmp.eq.s32.totalorder %s24, 0
      %p258 = por %p256, %p257
      %p259 = scmp.ne.s32.totalorder %s251, %s253
      %p260 = scmp.eq.s32.totalorder %s29, 3
      %p261 = por %p259, %p260
      %p262 = scmp.ne.s32.totalorder %s253, %s254
      %p263 = scmp.eq.s32.totalorder %s29, 0
      %p264 = por %p262, %p263
      %p265 = scmp.ne.s32.totalorder %s253, %s254
      %p266 = scmp.eq.s32.totalorder %s30, 3
      %p267 = por %p265, %p266
      %p269 = scmp.ne.s32.totalorder %s254, %s268
      %p270 = scmp.eq.s32.totalorder %s30, 0
      %p271 = por %p269, %p270
      %s273 = sadd.s32 %s272, 1
      %p276 = scmp.eq.s32.totalorder %s24, 3
      %p277 = scmp.ne.s32.totalorder %s272, %s274
      %p278 = scmp.eq.s32.totalorder %s24, 0
      %p279 = por %p277, %p278
      %p280 = scmp.ne.s32.totalorder %s272, %s274
      %p281 = scmp.eq.s32.totalorder %s29, 3
      %p282 = por %p280, %p281
      %p283 = scmp.ne.s32.totalorder %s274, %s275
      %p284 = scmp.eq.s32.totalorder %s29, 0
      %p285 = por %p283, %p284
      %p286 = scmp.ne.s32.totalorder %s274, %s275
      %p287 = scmp.eq.s32.totalorder %s30, 3
      %p288 = por %p286, %p287
      %p290 = scmp.ne.s32.totalorder %s275, %s289
      %p291 = scmp.eq.s32.totalorder %s30, 0
      %p292 = por %p290, %p291
      %s294 = sadd.s32 %s293, 1
      %p297 = scmp.eq.s32.totalorder %s24, 3
      %p298 = scmp.ne.s32.totalorder %s293, %s295
      %p299 = scmp.eq.s32.totalorder %s24, 0
      %p300 = por %p298, %p299
      %p301 = scmp.ne.s32.totalorder %s293, %s295
      %p302 = scmp.eq.s32.totalorder %s29, 3
      %p303 = por %p301, %p302
      %p304 = scmp.ne.s32.totalorder %s295, %s296
      %p305 = scmp.eq.s32.totalorder %s29, 0
      %p306 = por %p304, %p305
      %p307 = scmp.ne.s32.totalorder %s295, %s296
      %p308 = scmp.eq.s32.totalorder %s30, 3
      %p309 = por %p307, %p308
      %p311 = scmp.ne.s32.totalorder %s296, %s310
      %p312 = scmp.eq.s32.totalorder %s30, 0
      %p313 = por %p311, %p312
      %s315 = sadd.s32 %s314, 1
      %p318 = scmp.eq.s32.totalorder %s24, 3
      %p319 = scmp.ne.s32.totalorder %s314, %s316
      %p320 = scmp.eq.s32.totalorder %s24, 0
      %p321 = por %p319, %p320
      %p322 = scmp.ne.s32.totalorder %s314, %s316
      %p323 = scmp.eq.s32.totalorder %s29, 3
      %p324 = por %p322, %p323
      %p325 = scmp.ne.s32.totalorder %s316, %s317
      %p326 = scmp.eq.s32.totalorder %s29, 0
      %p327 = por %p325, %p326
      %p328 = scmp.ne.s32.totalorder %s316, %s317
      %p329 = scmp.eq.s32.totalorder %s30, 3
      %p330 = por %p328, %p329
      %p332 = scmp.ne.s32.totalorder %s317, %s331
      %p333 = scmp.eq.s32.totalorder %s30, 0
      %p334 = por %p332, %p333
      %s335 = ssub.s32 %s31, %s43
      %p336 = scmp.eq.s32.totalorder %s335, 0
      %s338 = sadd.s32 %s337, 1
      %s339 = scalar_select %p336, %s337, %s338
      %p342 = pneg %p336
      %p343 = scmp.eq.s32.totalorder %s24, 3
      %p344 = por %p342, %p343
      %p345 = scmp.ne.s32.totalorder %s337, %s340
      %p346 = scmp.eq.s32.totalorder %s24, 0
      %p347 = por %p345, %p346
      %p348 = scmp.ne.s32.totalorder %s337, %s340
      %p349 = scmp.eq.s32.totalorder %s29, 3
      %p350 = por %p348, %p349
      %p351 = scmp.ne.s32.totalorder %s340, %s341
      %p352 = scmp.eq.s32.totalorder %s29, 0
      %p353 = por %p351, %p352
      %p354 = scmp.ne.s32.totalorder %s340, %s341
      %p355 = scmp.eq.s32.totalorder %s30, 3
      %p356 = por %p354, %p355
      %p358 = scmp.ne.s32.totalorder %s341, %s357
      %p359 = scmp.eq.s32.totalorder %s30, 0
      %p360 = por %p358, %p359
      %p361 = scmp.le.s32.totalorder 1, %s24
      %p362 = scmp.lt.s32.totalorder %s24, 5
      %p363 = pnand %p361, %p362
      %p364 = pneg %p363
      // Predicated region
      $region9: #{tpu_custom_call.1} parent=5 // pred_check
        _
      $region10: #{tpu_custom_call.1} parent=5 // pred_check_branch
        %366 = sbr.rel (%p363) target = $region12
      $region11: #{tpu_custom_call.1} parent=5 // pred_region
        %s367 = ssub.s32 %s24, 1
        // Predicated region
        $region13: #{tpu_custom_call.1} parent=11 // pred_check
          %p368 = pneg %p117
        $region14: #{tpu_custom_call.1} parent=11 // pred_check_branch
          %370 = sbr.rel (%p368) target = $region16
        $region15: #{tpu_custom_call.1} parent=11 // pred_region
          _
        $region16: #{tpu_custom_call.1} parent=11 // pred_fallthru
          _
        // Predicated region
        $region17: #{tpu_custom_call.1} parent=11 // pred_check
          %p371 = pneg %p138
        $region18: #{tpu_custom_call.1} parent=11 // pred_check_branch
          %373 = sbr.rel (%p371) target = $region20
        $region19: #{tpu_custom_call.1} parent=11 // pred_region
          %s375 = ssub.s32 128, 128
          %376 = vsyncadd [#allocation4], %s375
          %s378 = sshll.u32 [#allocation3], 4
          %s379 = int_to_ptr.vmem [resolvable:$true] %s378
          %381 = dma.hbm_to_vmem [thread:$0]  %s3, 128, %s379, [#allocation4]
        $region20: #{tpu_custom_call.1} parent=11 // pred_fallthru
          _
        // Predicated region
        $region21: #{tpu_custom_call.1} parent=11 // pred_check
          %p382 = pneg %p159
        $region22: #{tpu_custom_call.1} parent=11 // pred_check_branch
          %384 = sbr.rel (%p382) target = $region24
        $region23: #{tpu_custom_call.1} parent=11 // pred_region
          _
        $region24: #{tpu_custom_call.1} parent=11 // pred_fallthru
          _
        // Predicated region
        $region25: #{tpu_custom_call.1} parent=11 // pred_check
          %p385 = pneg %p180
        $region26: #{tpu_custom_call.1} parent=11 // pred_check_branch
          %387 = sbr.rel (%p385) target = $region28
        $region27: #{tpu_custom_call.1} parent=11 // pred_region
          _
        $region28: #{tpu_custom_call.1} parent=11 // pred_fallthru
          _
        // Predicated region
        $region29: #{tpu_custom_call.1} parent=11 // pred_check
          %p388 = pneg %p201
        $region30: #{tpu_custom_call.1} parent=11 // pred_check_branch
          %390 = sbr.rel (%p388) target = $region32
        $region31: #{tpu_custom_call.1} parent=11 // pred_region
          _
        $region32: #{tpu_custom_call.1} parent=11 // pred_fallthru
          _
        // Predicated region
        $region33: #{tpu_custom_call.1} parent=11 // pred_check
          %p391 = pneg %p222
        $region34: #{tpu_custom_call.1} parent=11 // pred_check_branch
          %393 = sbr.rel (%p391) target = $region36
        $region35: #{tpu_custom_call.1} parent=11 // pred_region
          _
        $region36: #{tpu_custom_call.1} parent=11 // pred_fallthru
          _
        // Predicated region
        $region37: #{tpu_custom_call.1} parent=11 // pred_check
          %p394 = pneg %p243
        $region38: #{tpu_custom_call.1} parent=11 // pred_check_branch
          %396 = sbr.rel (%p394) target = $region40
        $region39: #{tpu_custom_call.1} parent=11 // pred_region
          %s398 = ssub.s32 2048, 2048
          %399 = vsyncadd [#allocation7], %s398
          %s400 = sshll.u32 [#allocation6], 4
          %s401 = int_to_ptr.vmem [resolvable:$true] %s400
          %406 = dma.hbm_to_vmem [thread:$0]  %s8, 2048, %s401, [#allocation7], 128, 128, 8
        $region40: #{tpu_custom_call.1} parent=11 // pred_fallthru
          _
        // Predicated region
        $region41: #{tpu_custom_call.1} parent=11 // pred_check
          %p407 = pneg %p264
        $region42: #{tpu_custom_call.1} parent=11 // pred_check_branch
          %409 = sbr.rel (%p407) target = $region44
        $region43: #{tpu_custom_call.1} parent=11 // pred_region
          _
        $region44: #{tpu_custom_call.1} parent=11 // pred_fallthru
          _
        // Predicated region
        $region45: #{tpu_custom_call.1} parent=11 // pred_check
          %p410 = pneg %p285
        $region46: #{tpu_custom_call.1} parent=11 // pred_check_branch
          %412 = sbr.rel (%p410) target = $region48
        $region47: #{tpu_custom_call.1} parent=11 // pred_region
          _
        $region48: #{tpu_custom_call.1} parent=11 // pred_fallthru
          _
        // Predicated region
        $region49: #{tpu_custom_call.1} parent=11 // pred_check
          %p413 = pneg %p306
        $region50: #{tpu_custom_call.1} parent=11 // pred_check_branch
          %415 = sbr.rel (%p413) target = $region52
        $region51: #{tpu_custom_call.1} parent=11 // pred_region
          _
        $region52: #{tpu_custom_call.1} parent=11 // pred_fallthru
          _
        // Predicated region
        $region53: #{tpu_custom_call.1} parent=11 // pred_check
          %p416 = pneg %p327
        $region54: #{tpu_custom_call.1} parent=11 // pred_check_branch
          %418 = sbr.rel (%p416) target = $region56
        $region55: #{tpu_custom_call.1} parent=11 // pred_region
          _
        $region56: #{tpu_custom_call.1} parent=11 // pred_fallthru
          _
      $region12: #{tpu_custom_call.1} parent=5 // pred_fallthru
        _
      %p419 = scmp.lt.s32.totalorder %s24, 4
      // Predicated region
      $region57: #{tpu_custom_call.1} parent=5 // pred_check
        %p420 = pneg %p419
      $region58: #{tpu_custom_call.1} parent=5 // pred_check_branch
        %422 = sbr.rel (%p420) target = $region60
      $region59: #{tpu_custom_call.1} parent=5 // pred_region
        // Predicated region
        $region61: #{tpu_custom_call.1} parent=59 // pred_check
          %p423 = pneg %p60
        $region62: #{tpu_custom_call.1} parent=59 // pred_check_branch
          %425 = sbr.rel (%p423) target = $region64
        $region63: #{tpu_custom_call.1} parent=59 // pred_region
          %s426 = smul.u32 %s31, 2
          %s427 = sadd.s32 %s426, %s32
          %s428 = smul.u32 4, %s427
          %p429 = scmp.lt.s32.totalorder %s428, 15
          %s430 = scalar_select %p429, %s428, 15
          %s431 = smul.addr %s430, 8
          %s432 = scalar_lea.vmem %s0, %s431
          %s433 = smul.u32 %s31, 2
          %s434 = sadd.s32 %s433, %s32
          %s435 = smul.u32 4, %s434
        $region64: #{tpu_custom_call.1} parent=59 // pred_fallthru
          _
        // Predicated region
        $region65: #{tpu_custom_call.1} parent=59 // pred_check
          %p436 = pneg %p90
        $region66: #{tpu_custom_call.1} parent=59 // pred_check_branch
          %438 = sbr.rel (%p436) target = $region68
        $region67: #{tpu_custom_call.1} parent=59 // pred_region
          %s439 = smul.u32 %s31, 2
          %s440 = sadd.s32 %s439, %s32
          %s441 = smul.u32 4, %s440
          %p442 = scmp.lt.s32.totalorder %s441, 15
          %s443 = scalar_select %p442, %s441, 15
          %s444 = smul.addr %s443, 8
          %s445 = scalar_lea.vmem %s1, %s444
          %s446 = smul.u32 %s31, 2
          %s447 = sadd.s32 %s446, %s32
          %s448 = smul.u32 4, %s447
        $region68: #{tpu_custom_call.1} parent=59 // pred_fallthru
          _
      $region60: #{tpu_custom_call.1} parent=5 // pred_fallthru
        _
      %p449 = scmp.le.s32.totalorder 1, %s24
      %p450 = scmp.lt.s32.totalorder %s24, 5
      %p451 = pnand %p449, %p450
      %p452 = pneg %p451
      // Predicated region
      $region69: #{tpu_custom_call.1} parent=5 // pred_check
        _
      $region70: #{tpu_custom_call.1} parent=5 // pred_check_branch
        %454 = sbr.rel (%p451) target = $region72
      $region71: #{tpu_custom_call.1} parent=5 // pred_region
        %s455 = ssub.s32 %s24, 1
        // Predicated region
        $region73: #{tpu_custom_call.1} parent=71 // pred_check
          %p456 = pneg %p138
        $region74: #{tpu_custom_call.1} parent=71 // pred_check_branch
          %458 = sbr.rel (%p456) target = $region76
        $region75: #{tpu_custom_call.1} parent=71 // pred_region
          %459 = dma.done [#allocation4], 128
        $region76: #{tpu_custom_call.1} parent=71 // pred_fallthru
          _
        // Predicated region
        $region77: #{tpu_custom_call.1} parent=71 // pred_check
          %p460 = pneg %p243
        $region78: #{tpu_custom_call.1} parent=71 // pred_check_branch
          %462 = sbr.rel (%p460) target = $region80
        $region79: #{tpu_custom_call.1} parent=71 // pred_region
          %463 = dma.done [#allocation7], 2048
        $region80: #{tpu_custom_call.1} parent=71 // pred_fallthru
          _
        %s464 = smul.u32 %s33, 2
        %s465 = sadd.s32 %s464, %s34
        %s466 = smul.u32 4, %s465
        %p467 = scmp.lt.s32.totalorder %s466, 15
        %s468 = scalar_select %p467, %s466, 15
        %s469 = smul.addr %s468, 8
        %s470 = scalar_lea.vmem %s0, %s469
        %p471 = pneg %p66
        %p472 = pneg %p63
        %s473 = smul.u32 %s33, 2
        %s474 = sadd.s32 %s473, %s34
        %s475 = smul.u32 4, %s474
        %p476 = scmp.lt.s32.totalorder %s475, 15
        %s477 = scalar_select %p476, %s475, 15
        %s478 = smul.addr %s477, 8
        %s479 = scalar_lea.vmem %s1, %s478
        %p480 = pneg %p96
        %p481 = pneg %p93
        %p482 = pneg %p117
        %p483 = pneg %p114
        %p484 = pneg %p138
        %p485 = pneg %p135
        %p486 = pneg %p159
        %p487 = pneg %p156
        %p488 = pneg %p180
        %p489 = pneg %p177
        %p490 = pneg %p201
        %p491 = pneg %p198
        %p492 = pneg %p222
        %p493 = pneg %p219
        %p494 = pneg %p243
        %p495 = pneg %p240
        %p496 = pneg %p264
        %p497 = pneg %p261
        %p498 = pneg %p285
        %p499 = pneg %p282
        %p500 = pneg %p306
        %p501 = pneg %p303
        %p502 = pneg %p327
        %p503 = pneg %p324
        %p504 = pneg %p353
        %p505 = pneg %p350
        %s506 = sand.u32 %s340, 1
        %s507 = scalar_lea.sflag [#allocation5], %s506
        %s508 = sand.u32 %s340, 1
        %s509 = smul.addr %s508, 8
        %s510 = scalar_lea.vmem [#allocation8], %s509
        %s511 = smul.u32 %s33, 2
        %s512 = sadd.s32 %s511, %s34
        %s513 = smul.u32 4, %s512
        %p514 = scmp.lt.s32.totalorder %s513, 15
        %s515 = scalar_select %p514, %s513, 15
        %s516 = smul.addr %s515, 8
        %s517 = scalar_lea.vmem %s0, %s516
        %s518 = smul.u32 %s33, 2
        %s519 = sadd.s32 %s518, %s34
        %s520 = smul.u32 4, %s519
        %s521 = smul.u32 %s33, 2
        %s522 = sadd.s32 %s521, %s34
        %s523 = smul.u32 4, %s522
        %p524 = scmp.lt.s32.totalorder %s523, 15
        %s525 = scalar_select %p524, %s523, 15
        %s526 = smul.addr %s525, 8
        %s527 = scalar_lea.vmem %s1, %s526
        %s528 = smul.u32 %s33, 2
        %s529 = sadd.s32 %s528, %s34
        %s530 = smul.u32 4, %s529
        %p531 = scmp.eq.s32.totalorder %s34, 0
        // Predicated region
        $region81: #{tpu_custom_call.1} parent=71 // pred_check
          %p532 = pneg %p531
        $region82: #{tpu_custom_call.1} parent=71 // pred_check_branch
          %534 = sbr.rel (%p532) target = $region84
        $region83: #{tpu_custom_call.1} parent=71 // pred_region
          %535 = vst [vmem:[%s510] sm:$0xff] 0.0
          %v536 = vld [vmem:[%s2] sm:$0xff]
          %v537 = vld [vmem:[%s4] sm:$0xff]
          %v538 = vld [vmem:[%s4 + $0x8] sm:$0xff]
          %v539 = vld [vmem:[%s4 + $0x10] sm:$0xff]
          %v540 = vld [vmem:[%s4 + $0x18] sm:$0xff]
          %v541 = vld [vmem:[%s4 + $0x20] sm:$0xff]
          %v542 = vld [vmem:[%s4 + $0x28] sm:$0xff]
          %v543 = vld [vmem:[%s4 + $0x30] sm:$0xff]
          %v544 = vld [vmem:[%s4 + $0x38] sm:$0xff]
          %v545 = vld [vmem:[%s4 + $0x40] sm:$0xff]
          %v546 = vld [vmem:[%s4 + $0x48] sm:$0xff]
          %v547 = vld [vmem:[%s4 + $0x50] sm:$0xff]
          %v548 = vld [vmem:[%s4 + $0x58] sm:$0xff]
          %v549 = vld [vmem:[%s4 + $0x60] sm:$0xff]
          %v550 = vld [vmem:[%s4 + $0x68] sm:$0xff]
          %v551 = vld [vmem:[%s4 + $0x70] sm:$0xff]
          %v552 = vld [vmem:[%s4 + $0x78] sm:$0xff]
          %553 = vmatprep.subr.mxu0 0.0
          %554 = vmatpush1.msra.mxu0 %v552
          %555 = vmatprep.subr.mxu0 0.0
          %556 = vmatpush1.msra.mxu0 %v551
          %557 = vmatprep.subr.mxu0 0.0
          %558 = vmatpush1.msra.mxu0 %v550
          %559 = vmatprep.subr.mxu0 0.0
          %560 = vmatpush1.msra.mxu0 %v549
          %561 = vmatprep.subr.mxu0 0.0
          %562 = vmatpush1.msra.mxu0 %v548
          %563 = vmatprep.subr.mxu0 0.0
          %564 = vmatpush1.msra.mxu0 %v547
          %565 = vmatprep.subr.mxu0 0.0
          %566 = vmatpush1.msra.mxu0 %v546
          %567 = vmatprep.subr.mxu0 0.0
          %568 = vmatpush1.msra.mxu0 %v545
          %569 = vmatprep.subr.mxu0 0.0
          %570 = vmatpush1.msra.mxu0 %v544
          %571 = vmatprep.subr.mxu0 0.0
          %572 = vmatpush1.msra.mxu0 %v543
          %573 = vmatprep.subr.mxu0 0.0
          %574 = vmatpush1.msra.mxu0 %v542
          %575 = vmatprep.subr.mxu0 0.0
          %576 = vmatpush1.msra.mxu0 %v541
          %577 = vmatprep.subr.mxu0 0.0
          %578 = vmatpush1.msra.mxu0 %v540
          %579 = vmatprep.subr.mxu0 0.0
          %580 = vmatpush1.msra.mxu0 %v539
          %581 = vmatprep.subr.mxu0 0.0
          %582 = vmatpush1.msra.mxu0 %v538
          %583 = vmatprep.subr.mxu0 0.0
          %584 = vmatpush1.msra.mxu0 %v537
          %585 = vmatprep.subr.mxu0 0.0
          %586 = vmatpush2.msra.mxu0 0.0
          %587 = vmatprep.subr.mxu0 0.0
          %588 = vmatpush2.msra.mxu0 0.0
          %589 = vmatprep.subr.mxu0 0.0
          %590 = vmatpush2.msra.mxu0 0.0
          %591 = vmatprep.subr.mxu0 0.0
          %592 = vmatpush2.msra.mxu0 0.0
          %593 = vmatprep.subr.mxu0 0.0
          %594 = vmatpush2.msra.mxu0 0.0
          %595 = vmatprep.subr.mxu0 0.0
          %596 = vmatpush2.msra.mxu0 0.0
          %597 = vmatprep.subr.mxu0 0.0
          %598 = vmatpush2.msra.mxu0 0.0
          %599 = vmatprep.subr.mxu0 0.0
          %600 = vmatpush2.msra.mxu0 0.0
          %601 = vmatprep.subr.mxu0 0.0
          %602 = vmatpush2.msra.mxu0 0.0
          %603 = vmatprep.subr.mxu0 0.0
          %604 = vmatpush2.msra.mxu0 0.0
          %605 = vmatprep.subr.mxu0 0.0
          %606 = vmatpush2.msra.mxu0 0.0
          %607 = vmatprep.subr.mxu0 0.0
          %608 = vmatpush2.msra.mxu0 0.0
          %609 = vmatprep.subr.mxu0 0.0
          %610 = vmatpush2.msra.mxu0 0.0
          %611 = vmatprep.subr.mxu0 0.0
          %612 = vmatpush2.msra.mxu0 0.0
          %613 = vmatprep.subr.mxu0 0.0
          %614 = vmatpush2.msra.mxu0 0.0
          %615 = vmatprep.subr.mxu0 0.0
          %616 = vmatpush2.msra.mxu0 0.0
          %617 = vmatprep.mubr.f32.mxu0 0.0
          %618 = vmatmul.mubr.f32.gmra.mxu0 %v536
          %v619 = vpop.f32.mrf.mxu0
          %v620 = vadd.f32 0.0, %v619
          %v621 = vpop.f32.mrf.mxu0
          %622 = vdwg.mxu0
          %623 = vst [vmem:[#allocation2] sm:$0xff] %v620
        $region84: #{tpu_custom_call.1} parent=71 // pred_fallthru
          _
        %s624 = smul.u32 %s33, 2
        %s625 = sadd.s32 %s624, %s34
        %s626 = smul.u32 %s625, 32
        %p627 = scmp.lt.s32.totalorder %s626, 100
        // Predicated region
        $region85: #{tpu_custom_call.1} parent=71 // pred_check
          %p628 = pneg %p627
        $region86: #{tpu_custom_call.1} parent=71 // pred_check_branch
          %630 = sbr.rel (%p628) target = $region88
        $region87: #{tpu_custom_call.1} parent=71 // pred_region
          %v631 = vld [vmem:[%s527] sm:$0xff]
          %v632 = vld [vmem:[%s527 + $0x8] sm:$0xff]
          %v633 = vld [vmem:[%s527 + $0x10] sm:$0xff]
          %v634 = vld [vmem:[%s527 + $0x18] sm:$0xff]
          %v635 = vlaneseq
          %v636 = vand.u32 %v635, 127
          %637 = vset.pattern.permute.xlu0 0
          %638 = vperm.xlu0 %637, %v631
          %v639 = vpop.permute.xlu0 %638
          %640 = vset.pattern.permute.xlu0 0
          %641 = vperm.xlu0 %640, %v632
          %v642 = vpop.permute.xlu0 %641
          %643 = vset.pattern.permute.xlu0 0
          %644 = vperm.xlu0 %643, %v633
          %v645 = vpop.permute.xlu0 %644
          %646 = vset.pattern.permute.xlu0 0
          %647 = vperm.xlu0 %646, %v634
          %v648 = vpop.permute.xlu0 %647
          %vm649 = vcmp.eq.s32.totalorder %v639, %v636
          %vm650 = vcmp.eq.s32.totalorder %v642, %v636
          %vm651 = vcmp.eq.s32.totalorder %v645, %v636
          %vm652 = vcmp.eq.s32.totalorder %v648, %v636
          %v653 = vsel %vm649, 1, 0
          %v654 = vsel %vm650, 1, 0
          %v655 = vsel %vm651, 1, 0
          %v656 = vsel %vm652, 1, 0
          %v657 = vcvt.s32.f32 %v653
          %v658 = vcvt.s32.f32 %v654
          %v659 = vcvt.s32.f32 %v655
          %v660 = vcvt.s32.f32 %v656
          %v661 = vld [vmem:[#allocation2] sm:$0xff]
          %vm662 = vcmask 64512
          %v664 = vsel %vm662, %v657, 0
          %v667 = vsel %vm662, %v658, 0
          %v670 = vsel %vm662, %v659, 0
          %v673 = vsel %vm662, %v660, 0
          %675 = vmatprep.subr.mxu0 0.0
          %676 = vmatpush1.msra.mxu0 0.0
          %677 = vmatprep.subr.mxu0 0.0
          %678 = vmatpush1.msra.mxu0 0.0
          %679 = vmatprep.subr.mxu0 0.0
          %680 = vmatpush1.msra.mxu0 0.0
          %681 = vmatprep.subr.mxu0 0.0
          %682 = vmatpush1.msra.mxu0 0.0
          %683 = vmatprep.subr.mxu0 0.0
          %684 = vmatpush1.msra.mxu0 0.0
          %685 = vmatprep.subr.mxu0 0.0
          %686 = vmatpush1.msra.mxu0 0.0
          %687 = vmatprep.subr.mxu0 0.0
          %688 = vmatpush1.msra.mxu0 0.0
          %689 = vmatprep.subr.mxu0 0.0
          %690 = vmatpush1.msra.mxu0 0.0
          %691 = vmatprep.subr.mxu0 0.0
          %692 = vmatpush1.msra.mxu0 0.0
          %693 = vmatprep.subr.mxu0 0.0
          %694 = vmatpush1.msra.mxu0 0.0
          %695 = vmatprep.subr.mxu0 0.0
          %696 = vmatpush1.msra.mxu0 0.0
          %697 = vmatprep.subr.mxu0 0.0
          %698 = vmatpush1.msra.mxu0 0.0
          %699 = vmatprep.subr.mxu0 0.0
          %700 = vmatpush1.msra.mxu0 0.0
          %701 = vmatprep.subr.mxu0 0.0
          %702 = vmatpush1.msra.mxu0 0.0
          %703 = vmatprep.subr.mxu0 0.0
          %704 = vmatpush1.msra.mxu0 0.0
          %705 = vmatprep.subr.mxu0 0.0
          %706 = vmatpush1.msra.mxu0 %v661
          %707 = vmatprep.subr.mxu0 0.0
          %708 = vmatpush2.msra.mxu0 0.0
          %709 = vmatprep.subr.mxu0 0.0
          %710 = vmatpush2.msra.mxu0 0.0
          %711 = vmatprep.subr.mxu0 0.0
          %712 = vmatpush2.msra.mxu0 0.0
          %713 = vmatprep.subr.mxu0 0.0
          %714 = vmatpush2.msra.mxu0 0.0
          %715 = vmatprep.subr.mxu0 0.0
          %716 = vmatpush2.msra.mxu0 0.0
          %717 = vmatprep.subr.mxu0 0.0
          %718 = vmatpush2.msra.mxu0 0.0
          %719 = vmatprep.subr.mxu0 0.0
          %720 = vmatpush2.msra.mxu0 0.0
          %721 = vmatprep.subr.mxu0 0.0
          %722 = vmatpush2.msra.mxu0 0.0
          %723 = vmatprep.subr.mxu0 0.0
          %724 = vmatpush2.msra.mxu0 0.0
          %725 = vmatprep.subr.mxu0 0.0
          %726 = vmatpush2.msra.mxu0 0.0
          %727 = vmatprep.subr.mxu0 0.0
          %728 = vmatpush2.msra.mxu0 0.0
          %729 = vmatprep.subr.mxu0 0.0
          %730 = vmatpush2.msra.mxu0 0.0
          %731 = vmatprep.subr.mxu0 0.0
          %732 = vmatpush2.msra.mxu0 0.0
          %733 = vmatprep.subr.mxu0 0.0
          %734 = vmatpush2.msra.mxu0 0.0
          %735 = vmatprep.subr.mxu0 0.0
          %736 = vmatpush2.msra.mxu0 0.0
          %737 = vmatprep.subr.mxu0 0.0
          %738 = vmatpush2.msra.mxu0 0.0
          %739 = vmatprep.mubr.f32.mxu0 0.0
          %740 = vmatmul.mubr.f32.gmra.mxu0 %v664
          %v741 = vpop.f32.mrf.mxu0
          %v742 = vadd.f32 0.0, %v741
          %v743 = vpop.f32.mrf.mxu0
          %744 = vmatprep.mubr.f32.mxu0 0.0
          %745 = vmatmul.mubr.f32.gmra.mxu0 %v667
          %v746 = vpop.f32.mrf.mxu0
          %v747 = vadd.f32 0.0, %v746
          %v748 = vpop.f32.mrf.mxu0
          %749 = vmatprep.mubr.f32.mxu0 0.0
          %750 = vmatmul.mubr.f32.gmra.mxu0 %v670
          %v751 = vpop.f32.mrf.mxu0
          %v752 = vadd.f32 0.0, %v751
          %v753 = vpop.f32.mrf.mxu0
          %754 = vmatprep.mubr.f32.mxu0 0.0
          %755 = vmatmul.mubr.f32.gmra.mxu0 %v673
          %v756 = vpop.f32.mrf.mxu0
          %v757 = vadd.f32 0.0, %v756
          %v758 = vpop.f32.mrf.mxu0
          %759 = vdwg.mxu0
          %v760 = vld [vmem:[%s517] sm:$0xff]
          %v761 = vld [vmem:[%s517 + $0x8] sm:$0xff]
          %v762 = vld [vmem:[%s517 + $0x10] sm:$0xff]
          %v763 = vld [vmem:[%s517 + $0x18] sm:$0xff]
          %v764 = vld [vmem:[#allocation3] sm:$0xff]
          %v766 = vsel %vm662, %v760, 0
          %v769 = vsel %vm662, %v761, 0
          %v772 = vsel %vm662, %v762, 0
          %v775 = vsel %vm662, %v763, 0
          %777 = vmatprep.subr.mxu0 0.0
          %778 = vmatpush1.msra.mxu0 0.0
          %779 = vmatprep.subr.mxu0 0.0
          %780 = vmatpush1.msra.mxu0 0.0
          %781 = vmatprep.subr.mxu0 0.0
          %782 = vmatpush1.msra.mxu0 0.0
          %783 = vmatprep.subr.mxu0 0.0
          %784 = vmatpush1.msra.mxu0 0.0
          %785 = vmatprep.subr.mxu0 0.0
          %786 = vmatpush1.msra.mxu0 0.0
          %787 = vmatprep.subr.mxu0 0.0
          %788 = vmatpush1.msra.mxu0 0.0
          %789 = vmatprep.subr.mxu0 0.0
          %790 = vmatpush1.msra.mxu0 0.0
          %791 = vmatprep.subr.mxu0 0.0
          %792 = vmatpush1.msra.mxu0 0.0
          %793 = vmatprep.subr.mxu0 0.0
          %794 = vmatpush1.msra.mxu0 0.0
          %795 = vmatprep.subr.mxu0 0.0
          %796 = vmatpush1.msra.mxu0 0.0
          %797 = vmatprep.subr.mxu0 0.0
          %798 = vmatpush1.msra.mxu0 0.0
          %799 = vmatprep.subr.mxu0 0.0
          %800 = vmatpush1.msra.mxu0 0.0
          %801 = vmatprep.subr.mxu0 0.0
          %802 = vmatpush1.msra.mxu0 0.0
          %803 = vmatprep.subr.mxu0 0.0
          %804 = vmatpush1.msra.mxu0 0.0
          %805 = vmatprep.subr.mxu0 0.0
          %806 = vmatpush1.msra.mxu0 0.0
          %807 = vmatprep.subr.mxu0 0.0
          %808 = vmatpush1.msra.mxu0 %v764
          %809 = vmatprep.subr.mxu0 0.0
          %810 = vmatpush2.msra.mxu0 0.0
          %811 = vmatprep.subr.mxu0 0.0
          %812 = vmatpush2.msra.mxu0 0.0
          %813 = vmatprep.subr.mxu0 0.0
          %814 = vmatpush2.msra.mxu0 0.0
          %815 = vmatprep.subr.mxu0 0.0
          %816 = vmatpush2.msra.mxu0 0.0
          %817 = vmatprep.subr.mxu0 0.0
          %818 = vmatpush2.msra.mxu0 0.0
          %819 = vmatprep.subr.mxu0 0.0
          %820 = vmatpush2.msra.mxu0 0.0
          %821 = vmatprep.subr.mxu0 0.0
          %822 = vmatpush2.msra.mxu0 0.0
          %823 = vmatprep.subr.mxu0 0.0
          %824 = vmatpush2.msra.mxu0 0.0
          %825 = vmatprep.subr.mxu0 0.0
          %826 = vmatpush2.msra.mxu0 0.0
          %827 = vmatprep.subr.mxu0 0.0
          %828 = vmatpush2.msra.mxu0 0.0
          %829 = vmatprep.subr.mxu0 0.0
          %830 = vmatpush2.msra.mxu0 0.0
          %831 = vmatprep.subr.mxu0 0.0
          %832 = vmatpush2.msra.mxu0 0.0
          %833 = vmatprep.subr.mxu0 0.0
          %834 = vmatpush2.msra.mxu0 0.0
          %835 = vmatprep.subr.mxu0 0.0
          %836 = vmatpush2.msra.mxu0 0.0
          %837 = vmatprep.subr.mxu0 0.0
          %838 = vmatpush2.msra.mxu0 0.0
          %839 = vmatprep.subr.mxu0 0.0
          %840 = vmatpush2.msra.mxu0 0.0
          %841 = vmatprep.mubr.f32.mxu0 0.0
          %842 = vmatmul.mubr.f32.gmra.mxu0 %v766
          %v843 = vpop.f32.mrf.mxu0
          %v844 = vadd.f32 %v742, %v843
          %v845 = vpop.f32.mrf.mxu0
          %846 = vmatprep.mubr.f32.mxu0 0.0
          %847 = vmatmul.mubr.f32.gmra.mxu0 %v769
          %v848 = vpop.f32.mrf.mxu0
          %v849 = vadd.f32 %v747, %v848
          %v850 = vpop.f32.mrf.mxu0
          %851 = vmatprep.mubr.f32.mxu0 0.0
          %852 = vmatmul.mubr.f32.gmra.mxu0 %v772
          %v853 = vpop.f32.mrf.mxu0
          %v854 = vadd.f32 %v752, %v853
          %v855 = vpop.f32.mrf.mxu0
          %856 = vmatprep.mubr.f32.mxu0 0.0
          %857 = vmatmul.mubr.f32.gmra.mxu0 %v775
          %v858 = vpop.f32.mrf.mxu0
          %v859 = vadd.f32 %v757, %v858
          %v860 = vpop.f32.mrf.mxu0
          %861 = vdwg.mxu0
          %v862 = vld [vmem:[%s5] sm:$0x1]
          %v864 = vlaneseq
          %v865 = vshrl.u32 %v864, 7
          %v866 = vsub.s32 0, %v865
          %v867 = vrot.slane %v862, %v866
          %v869 = vadd.f32 %v844, %v867
          %v870 = vadd.f32 %v849, %v867
          %v871 = vadd.f32 %v854, %v867
          %v872 = vadd.f32 %v859, %v867
          %v873 = vmax.f32 %v869, 0.0
          %v874 = vmax.f32 %v870, 0.0
          %v875 = vmax.f32 %v871, 0.0
          %v876 = vmax.f32 %v872, 0.0
          %v877 = vld [vmem:[%s6] sm:$0xff]
          %v878 = vld [vmem:[%s6 + $0x8] sm:$0xff]
          %v879 = vld [vmem:[%s6 + $0x10] sm:$0xff]
          %v880 = vld [vmem:[%s6 + $0x18] sm:$0xff]
          %v881 = vld [vmem:[%s6 + $0x20] sm:$0xff]
          %v882 = vld [vmem:[%s6 + $0x28] sm:$0xff]
          %v883 = vld [vmem:[%s6 + $0x30] sm:$0xff]
          %v884 = vld [vmem:[%s6 + $0x38] sm:$0xff]
          %v885 = vld [vmem:[%s6 + $0x40] sm:$0xff]
          %v886 = vld [vmem:[%s6 + $0x48] sm:$0xff]
          %v887 = vld [vmem:[%s6 + $0x50] sm:$0xff]
          %v888 = vld [vmem:[%s6 + $0x58] sm:$0xff]
          %v889 = vld [vmem:[%s6 + $0x60] sm:$0xff]
          %v890 = vld [vmem:[%s6 + $0x68] sm:$0xff]
          %v891 = vld [vmem:[%s6 + $0x70] sm:$0xff]
          %v892 = vld [vmem:[%s6 + $0x78] sm:$0xff]
          %v893 = vld [vmem:[%s7] sm:$0x1]
          %v895 = vlaneseq
          %v896 = vshrl.u32 %v895, 7
          %v897 = vsub.s32 0, %v896
          %v898 = vrot.slane %v893, %v897
          %900 = vmatprep.subr.mxu0 0.0
          %901 = vmatpush1.msra.mxu0 %v892
          %902 = vmatprep.subr.mxu0 0.0
          %903 = vmatpush1.msra.mxu0 %v891
          %904 = vmatprep.subr.mxu0 0.0
          %905 = vmatpush1.msra.mxu0 %v890
          %906 = vmatprep.subr.mxu0 0.0
          %907 = vmatpush1.msra.mxu0 %v889
          %908 = vmatprep.subr.mxu0 0.0
          %909 = vmatpush1.msra.mxu0 %v888
          %910 = vmatprep.subr.mxu0 0.0
          %911 = vmatpush1.msra.mxu0 %v887
          %912 = vmatprep.subr.mxu0 0.0
          %913 = vmatpush1.msra.mxu0 %v886
          %914 = vmatprep.subr.mxu0 0.0
          %915 = vmatpush1.msra.mxu0 %v885
          %916 = vmatprep.subr.mxu0 0.0
          %917 = vmatpush1.msra.mxu0 %v884
          %918 = vmatprep.subr.mxu0 0.0
          %919 = vmatpush1.msra.mxu0 %v883
          %920 = vmatprep.subr.mxu0 0.0
          %921 = vmatpush1.msra.mxu0 %v882
          %922 = vmatprep.subr.mxu0 0.0
          %923 = vmatpush1.msra.mxu0 %v881
          %924 = vmatprep.subr.mxu0 0.0
          %925 = vmatpush1.msra.mxu0 %v880
          %926 = vmatprep.subr.mxu0 0.0
          %927 = vmatpush1.msra.mxu0 %v879
          %928 = vmatprep.subr.mxu0 0.0
          %929 = vmatpush1.msra.mxu0 %v878
          %930 = vmatprep.subr.mxu0 0.0
          %931 = vmatpush1.msra.mxu0 %v877
          %932 = vmatprep.subr.mxu0 0.0
          %933 = vmatpush2.msra.mxu0 0.0
          %934 = vmatprep.subr.mxu0 0.0
          %935 = vmatpush2.msra.mxu0 0.0
          %936 = vmatprep.subr.mxu0 0.0
          %937 = vmatpush2.msra.mxu0 0.0
          %938 = vmatprep.subr.mxu0 0.0
          %939 = vmatpush2.msra.mxu0 0.0
          %940 = vmatprep.subr.mxu0 0.0
          %941 = vmatpush2.msra.mxu0 0.0
          %942 = vmatprep.subr.mxu0 0.0
          %943 = vmatpush2.msra.mxu0 0.0
          %944 = vmatprep.subr.mxu0 0.0
          %945 = vmatpush2.msra.mxu0 0.0
          %946 = vmatprep.subr.mxu0 0.0
          %947 = vmatpush2.msra.mxu0 0.0
          %948 = vmatprep.subr.mxu0 0.0
          %949 = vmatpush2.msra.mxu0 0.0
          %950 = vmatprep.subr.mxu0 0.0
          %951 = vmatpush2.msra.mxu0 0.0
          %952 = vmatprep.subr.mxu0 0.0
          %953 = vmatpush2.msra.mxu0 0.0
          %954 = vmatprep.subr.mxu0 0.0
          %955 = vmatpush2.msra.mxu0 0.0
          %956 = vmatprep.subr.mxu0 0.0
          %957 = vmatpush2.msra.mxu0 0.0
          %958 = vmatprep.subr.mxu0 0.0
          %959 = vmatpush2.msra.mxu0 0.0
          %960 = vmatprep.subr.mxu0 0.0
          %961 = vmatpush2.msra.mxu0 0.0
          %962 = vmatprep.subr.mxu0 0.0
          %963 = vmatpush2.msra.mxu0 0.0
          %964 = vmatprep.mubr.f32.mxu0 0.0
          %965 = vmatmul.mubr.f32.gmra.mxu0 %v873
          %v966 = vpop.f32.mrf.mxu0
          %v967 = vadd.f32 %v898, %v966
          %v968 = vpop.f32.mrf.mxu0
          %969 = vmatprep.mubr.f32.mxu0 0.0
          %970 = vmatmul.mubr.f32.gmra.mxu0 %v874
          %v971 = vpop.f32.mrf.mxu0
          %v972 = vadd.f32 %v898, %v971
          %v973 = vpop.f32.mrf.mxu0
          %974 = vmatprep.mubr.f32.mxu0 0.0
          %975 = vmatmul.mubr.f32.gmra.mxu0 %v875
          %v976 = vpop.f32.mrf.mxu0
          %v977 = vadd.f32 %v898, %v976
          %v978 = vpop.f32.mrf.mxu0
          %979 = vmatprep.mubr.f32.mxu0 0.0
          %980 = vmatmul.mubr.f32.gmra.mxu0 %v876
          %v981 = vpop.f32.mrf.mxu0
          %v982 = vadd.f32 %v898, %v981
          %v983 = vpop.f32.mrf.mxu0
          %984 = vdwg.mxu0
          %v985 = vmax.f32 %v967, 0.0
          %v986 = vmax.f32 %v972, 0.0
          %v987 = vmax.f32 %v977, 0.0
          %v988 = vmax.f32 %v982, 0.0
          %v989 = vld [vmem:[#allocation6] sm:$0xff]
          %v990 = vld [vmem:[#allocation6 + $0x8] sm:$0xff]
          %v991 = vld [vmem:[#allocation6 + $0x10] sm:$0xff]
          %v992 = vld [vmem:[#allocation6 + $0x18] sm:$0xff]
          %v993 = vld [vmem:[#allocation6 + $0x20] sm:$0xff]
          %v994 = vld [vmem:[#allocation6 + $0x28] sm:$0xff]
          %v995 = vld [vmem:[#allocation6 + $0x30] sm:$0xff]
          %v996 = vld [vmem:[#allocation6 + $0x38] sm:$0xff]
          %v997 = vld [vmem:[#allocation6 + $0x40] sm:$0xff]
          %v998 = vld [vmem:[#allocation6 + $0x48] sm:$0xff]
          %v999 = vld [vmem:[#allocation6 + $0x50] sm:$0xff]
          %v1000 = vld [vmem:[#allocation6 + $0x58] sm:$0xff]
          %v1001 = vld [vmem:[#allocation6 + $0x60] sm:$0xff]
          %v1002 = vld [vmem:[#allocation6 + $0x68] sm:$0xff]
          %v1003 = vld [vmem:[#allocation6 + $0x70] sm:$0xff]
          %v1004 = vld [vmem:[#allocation6 + $0x78] sm:$0xff]
          %v1005 = vld [vmem:[%s9] sm:$0x1]
          %v1007 = vlaneseq
          %v1008 = vshrl.u32 %v1007, 7
          %v1009 = vsub.s32 0, %v1008
          %v1010 = vrot.slane %v1005, %v1009
          %1012 = vmatprep.subr.mxu0 0.0
          %1013 = vmatpush1.msra.mxu0 %v1004
          %1014 = vmatprep.subr.mxu0 0.0
          %1015 = vmatpush1.msra.mxu0 %v1003
          %1016 = vmatprep.subr.mxu0 0.0
          %1017 = vmatpush1.msra.mxu0 %v1002
          %1018 = vmatprep.subr.mxu0 0.0
          %1019 = vmatpush1.msra.mxu0 %v1001
          %1020 = vmatprep.subr.mxu0 0.0
          %1021 = vmatpush1.msra.mxu0 %v1000
          %1022 = vmatprep.subr.mxu0 0.0
          %1023 = vmatpush1.msra.mxu0 %v999
          %1024 = vmatprep.subr.mxu0 0.0
          %1025 = vmatpush1.msra.mxu0 %v998
          %1026 = vmatprep.subr.mxu0 0.0
          %1027 = vmatpush1.msra.mxu0 %v997
          %1028 = vmatprep.subr.mxu0 0.0
          %1029 = vmatpush1.msra.mxu0 %v996
          %1030 = vmatprep.subr.mxu0 0.0
          %1031 = vmatpush1.msra.mxu0 %v995
          %1032 = vmatprep.subr.mxu0 0.0
          %1033 = vmatpush1.msra.mxu0 %v994
          %1034 = vmatprep.subr.mxu0 0.0
          %1035 = vmatpush1.msra.mxu0 %v993
          %1036 = vmatprep.subr.mxu0 0.0
          %1037 = vmatpush1.msra.mxu0 %v992
          %1038 = vmatprep.subr.mxu0 0.0
          %1039 = vmatpush1.msra.mxu0 %v991
          %1040 = vmatprep.subr.mxu0 0.0
          %1041 = vmatpush1.msra.mxu0 %v990
          %1042 = vmatprep.subr.mxu0 0.0
          %1043 = vmatpush1.msra.mxu0 %v989
          %1044 = vmatprep.subr.mxu0 0.0
          %1045 = vmatpush2.msra.mxu0 0.0
          %1046 = vmatprep.subr.mxu0 0.0
          %1047 = vmatpush2.msra.mxu0 0.0
          %1048 = vmatprep.subr.mxu0 0.0
          %1049 = vmatpush2.msra.mxu0 0.0
          %1050 = vmatprep.subr.mxu0 0.0
          %1051 = vmatpush2.msra.mxu0 0.0
          %1052 = vmatprep.subr.mxu0 0.0
          %1053 = vmatpush2.msra.mxu0 0.0
          %1054 = vmatprep.subr.mxu0 0.0
          %1055 = vmatpush2.msra.mxu0 0.0
          %1056 = vmatprep.subr.mxu0 0.0
          %1057 = vmatpush2.msra.mxu0 0.0
          %1058 = vmatprep.subr.mxu0 0.0
          %1059 = vmatpush2.msra.mxu0 0.0
          %1060 = vmatprep.subr.mxu0 0.0
          %1061 = vmatpush2.msra.mxu0 0.0
          %1062 = vmatprep.subr.mxu0 0.0
          %1063 = vmatpush2.msra.mxu0 0.0
          %1064 = vmatprep.subr.mxu0 0.0
          %1065 = vmatpush2.msra.mxu0 0.0
          %1066 = vmatprep.subr.mxu0 0.0
          %1067 = vmatpush2.msra.mxu0 0.0
          %1068 = vmatprep.subr.mxu0 0.0
          %1069 = vmatpush2.msra.mxu0 0.0
          %1070 = vmatprep.subr.mxu0 0.0
          %1071 = vmatpush2.msra.mxu0 0.0
          %1072 = vmatprep.subr.mxu0 0.0
          %1073 = vmatpush2.msra.mxu0 0.0
          %1074 = vmatprep.subr.mxu0 0.0
          %1075 = vmatpush2.msra.mxu0 0.0
          %1076 = vmatprep.mubr.f32.mxu0 0.0
          %1077 = vmatmul.mubr.f32.gmra.mxu0 %v985
          %v1078 = vpop.f32.mrf.mxu0
          %v1079 = vadd.f32 %v1010, %v1078
          %v1080 = vpop.f32.mrf.mxu0
          %1081 = vmatprep.mubr.f32.mxu0 0.0
          %1082 = vmatmul.mubr.f32.gmra.mxu0 %v986
          %v1083 = vpop.f32.mrf.mxu0
          %v1084 = vadd.f32 %v1010, %v1083
          %v1085 = vpop.f32.mrf.mxu0
          %1086 = vmatprep.mubr.f32.mxu0 0.0
          %1087 = vmatmul.mubr.f32.gmra.mxu0 %v987
          %v1088 = vpop.f32.mrf.mxu0
          %v1089 = vadd.f32 %v1010, %v1088
          %v1090 = vpop.f32.mrf.mxu0
          %1091 = vmatprep.mubr.f32.mxu0 0.0
          %1092 = vmatmul.mubr.f32.gmra.mxu0 %v988
          %v1093 = vpop.f32.mrf.mxu0
          %v1094 = vadd.f32 %v1010, %v1093
          %v1095 = vpop.f32.mrf.mxu0
          %1096 = vdwg.mxu0
          %v1097 = vld [vmem:[%s10] sm:$0x1]
          %v1098 = vld [vmem:[%s11] sm:$0x1]
          %v1099 = vld [vmem:[%s12] sm:$0x1]
          %1100 = vadd.xlane.f32.xlu0 %v1079
          %v1101 = vpop.xlane.xlu0 %1100
          %1102 = vadd.xlane.f32.xlu0 %v1084
          %v1103 = vpop.xlane.xlu0 %1102
          %1104 = vadd.xlane.f32.xlu0 %v1089
          %v1105 = vpop.xlane.xlu0 %1104
          %1106 = vadd.xlane.f32.xlu0 %v1094
          %v1107 = vpop.xlane.xlu0 %1106
          %v1108 = vmul.f32 %v1101, 0.0625
          %v1109 = vmul.f32 %v1103, 0.0625
          %v1110 = vmul.f32 %v1105, 0.0625
          %v1111 = vmul.f32 %v1107, 0.0625
          %v1112 = vsub.f32 %v1079, %v1108
          %v1113 = vsub.f32 %v1084, %v1109
          %v1114 = vsub.f32 %v1089, %v1110
          %v1115 = vsub.f32 %v1094, %v1111
          %v1117 = vlaneseq
          %v1118 = vshrl.u32 %v1117, 7
          %v1119 = vsub.s32 0, %v1118
          %v1120 = vrot.slane %v1099, %v1119
          %v1122 = vmul.f32 %v1112, %v1120
          %v1123 = vmul.f32 %v1113, %v1120
          %v1124 = vmul.f32 %v1114, %v1120
          %v1125 = vmul.f32 %v1115, %v1120
          %v1126 = vmul.f32 %v1122, %v1122
          %v1127 = vmul.f32 %v1123, %v1123
          %v1128 = vmul.f32 %v1124, %v1124
          %v1129 = vmul.f32 %v1125, %v1125
          %1130 = vadd.xlane.f32.xlu0 %v1126
          %v1131 = vpop.xlane.xlu0 %1130
          %1132 = vadd.xlane.f32.xlu0 %v1127
          %v1133 = vpop.xlane.xlu0 %1132
          %1134 = vadd.xlane.f32.xlu0 %v1128
          %v1135 = vpop.xlane.xlu0 %1134
          %1136 = vadd.xlane.f32.xlu0 %v1129
          %v1137 = vpop.xlane.xlu0 %1136
          %v1138 = vmul.f32 %v1131, 0.0625
          %v1139 = vmul.f32 %v1133, 0.0625
          %v1140 = vmul.f32 %v1135, 0.0625
          %v1141 = vmul.f32 %v1137, 0.0625
          %v1142 = vadd.f32 %v1138, 1e-05
          %v1143 = vadd.f32 %v1139, 1e-05
          %v1144 = vadd.f32 %v1140, 1e-05
          %v1145 = vadd.f32 %v1141, 1e-05
          %v1146 = vrsqrt.pop %v1142
          %v1147 = vrsqrt.pop %v1143
          %v1148 = vrsqrt.pop %v1144
          %v1149 = vrsqrt.pop %v1145
          %v1150 = vmul.f32 %v1122, %v1146
          %v1151 = vmul.f32 %v1123, %v1147
          %v1152 = vmul.f32 %v1124, %v1148
          %v1153 = vmul.f32 %v1125, %v1149
          %v1155 = vlaneseq
          %v1156 = vshrl.u32 %v1155, 7
          %v1157 = vsub.s32 0, %v1156
          %v1158 = vrot.slane %v1097, %v1157
          %v1160 = vmul.f32 %v1150, %v1158
          %v1161 = vmul.f32 %v1151, %v1158
          %v1162 = vmul.f32 %v1152, %v1158
          %v1163 = vmul.f32 %v1153, %v1158
          %v1165 = vlaneseq
          %v1166 = vshrl.u32 %v1165, 7
          %v1167 = vsub.s32 0, %v1166
          %v1168 = vrot.slane %v1098, %v1167
          %v1170 = vadd.f32 %v1160, %v1168
          %v1171 = vadd.f32 %v1161, %v1168
          %v1172 = vadd.f32 %v1162, %v1168
          %v1173 = vadd.f32 %v1163, %v1168
          %1174 = vxpose.xlu0.b32.start [1/16] %v657, 128
          %1175 = vxpose.xlu0.b32.cont [2/16] %v658, 128
          %1176 = vxpose.xlu0.b32.cont [3/16] %v659, 128
          %1177 = vxpose.xlu0.b32.cont [4/16] %v660, 128
          %1178 = vxpose.xlu0.b32.cont [5/16] 0.0, 128
          %1179 = vxpose.xlu0.b32.cont [6/16] 0.0, 128
          %1180 = vxpose.xlu0.b32.cont [7/16] 0.0, 128
          %1181 = vxpose.xlu0.b32.cont [8/16] 0.0, 128
          %1182 = vxpose.xlu0.b32.cont [9/16] 0.0, 128
          %1183 = vxpose.xlu0.b32.cont [10/16] 0.0, 128
          %1184 = vxpose.xlu0.b32.cont [11/16] 0.0, 128
          %1185 = vxpose.xlu0.b32.cont [12/16] 0.0, 128
          %1186 = vxpose.xlu0.b32.cont [13/16] 0.0, 128
          %1187 = vxpose.xlu0.b32.cont [14/16] 0.0, 128
          %1188 = vxpose.xlu0.b32.cont [15/16] 0.0, 128
          %1189 = vxpose.xlu0.b32.end [16/16] 0.0, 128
          %v1190 = vpop.trf.xlu0
          %v1191 = vpop.trf.xlu0
          %v1192 = vpop.trf.xlu0
          %v1193 = vpop.trf.xlu0
          %v1194 = vpop.trf.xlu0
          %v1195 = vpop.trf.xlu0
          %v1196 = vpop.trf.xlu0
          %v1197 = vpop.trf.xlu0
          %v1198 = vpop.trf.xlu0
          %v1199 = vpop.trf.xlu0
          %v1200 = vpop.trf.xlu0
          %v1201 = vpop.trf.xlu0
          %v1202 = vpop.trf.xlu0
          %v1203 = vpop.trf.xlu0
          %v1204 = vpop.trf.xlu0
          %v1205 = vpop.trf.xlu0
          %vm1206 = vcmask 261120
          %v1208 = vsel %vm1206, %v1190, 0
          %1210 = vmatprep.subr.mxu0 0.0
          %1211 = vmatpush1.msra.mxu0 0.0
          %1212 = vmatprep.subr.mxu0 0.0
          %1213 = vmatpush1.msra.mxu0 0.0
          %1214 = vmatprep.subr.mxu0 0.0
          %1215 = vmatpush1.msra.mxu0 0.0
          %1216 = vmatprep.subr.mxu0 0.0
          %1217 = vmatpush1.msra.mxu0 0.0
          %1218 = vmatprep.subr.mxu0 0.0
          %1219 = vmatpush1.msra.mxu0 0.0
          %1220 = vmatprep.subr.mxu0 0.0
          %1221 = vmatpush1.msra.mxu0 0.0
          %1222 = vmatprep.subr.mxu0 0.0
          %1223 = vmatpush1.msra.mxu0 0.0
          %1224 = vmatprep.subr.mxu0 0.0
          %1225 = vmatpush1.msra.mxu0 0.0
          %1226 = vmatprep.subr.mxu0 0.0
          %1227 = vmatpush1.msra.mxu0 0.0
          %1228 = vmatprep.subr.mxu0 0.0
          %1229 = vmatpush1.msra.mxu0 0.0
          %1230 = vmatprep.subr.mxu0 0.0
          %1231 = vmatpush1.msra.mxu0 0.0
          %1232 = vmatprep.subr.mxu0 0.0
          %1233 = vmatpush1.msra.mxu0 0.0
          %1234 = vmatprep.subr.mxu0 0.0
          %1235 = vmatpush1.msra.mxu0 %v1173
          %1236 = vmatprep.subr.mxu0 0.0
          %1237 = vmatpush1.msra.mxu0 %v1172
          %1238 = vmatprep.subr.mxu0 0.0
          %1239 = vmatpush1.msra.mxu0 %v1171
          %1240 = vmatprep.subr.mxu0 0.0
          %1241 = vmatpush1.msra.mxu0 %v1170
          %1242 = vmatprep.subr.mxu0 0.0
          %1243 = vmatpush2.msra.mxu0 0.0
          %1244 = vmatprep.subr.mxu0 0.0
          %1245 = vmatpush2.msra.mxu0 0.0
          %1246 = vmatprep.subr.mxu0 0.0
          %1247 = vmatpush2.msra.mxu0 0.0
          %1248 = vmatprep.subr.mxu0 0.0
          %1249 = vmatpush2.msra.mxu0 0.0
          %1250 = vmatprep.subr.mxu0 0.0
          %1251 = vmatpush2.msra.mxu0 0.0
          %1252 = vmatprep.subr.mxu0 0.0
          %1253 = vmatpush2.msra.mxu0 0.0
          %1254 = vmatprep.subr.mxu0 0.0
          %1255 = vmatpush2.msra.mxu0 0.0
          %1256 = vmatprep.subr.mxu0 0.0
          %1257 = vmatpush2.msra.mxu0 0.0
          %1258 = vmatprep.subr.mxu0 0.0
          %1259 = vmatpush2.msra.mxu0 0.0
          %1260 = vmatprep.subr.mxu0 0.0
          %1261 = vmatpush2.msra.mxu0 0.0
          %1262 = vmatprep.subr.mxu0 0.0
          %1263 = vmatpush2.msra.mxu0 0.0
          %1264 = vmatprep.subr.mxu0 0.0
          %1265 = vmatpush2.msra.mxu0 0.0
          %1266 = vmatprep.subr.mxu0 0.0
          %1267 = vmatpush2.msra.mxu0 0.0
          %1268 = vmatprep.subr.mxu0 0.0
          %1269 = vmatpush2.msra.mxu0 0.0
          %1270 = vmatprep.subr.mxu0 0.0
          %1271 = vmatpush2.msra.mxu0 0.0
          %1272 = vmatprep.subr.mxu0 0.0
          %1273 = vmatpush2.msra.mxu0 0.0
          %1274 = vmatprep.mubr.f32.mxu0 0.0
          %1275 = vmatmul.mubr.f32.gmra.mxu0 %v1208
          %v1276 = vpop.f32.mrf.mxu0
          %v1277 = vadd.f32 0.0, %v1276
          %v1278 = vpop.f32.mrf.mxu0
          %1279 = vdwg.mxu0
          %v1280 = vld [vmem:[%s510] sm:$0xff]
          %v1281 = vadd.f32 %v1280, %v1277
          %1282 = vst [vmem:[%s510] sm:$0xff] %v1281
        $region88: #{tpu_custom_call.1} parent=71 // pred_fallthru
          _
        %s1283 = sand.u32 %s340, 1
        %s1284 = scalar_lea.sflag [#allocation5], %s1283
        %s1285 = sand.u32 %s340, 1
        %s1286 = smul.addr %s1285, 8
        %s1287 = scalar_lea.vmem [#allocation8], %s1286
        // Predicated region
        $region89: #{tpu_custom_call.1} parent=71 // pred_check
          %p1288 = pneg %p350
        $region90: #{tpu_custom_call.1} parent=71 // pred_check_branch
          %1290 = sbr.rel (%p1288) target = $region92
        $region91: #{tpu_custom_call.1} parent=71 // pred_region
          %s1292 = ssub.s32 128, 128
          %1293 = vsyncadd %s1284, %s1292
          %s1294 = smul.addr %s33, 128
          %s1295 = scalar_lea.hbm %s13, %s1294
          %s1297 = sshll.u32 %s1287, 4
          %s1298 = int_to_ptr.vmem [resolvable:$true] %s1297
          %1300 = dma.vmem_to_hbm [thread:$0]  %s1298, 128, %s1295, %s1284
        $region92: #{tpu_custom_call.1} parent=71 // pred_fallthru
          _
      $region72: #{tpu_custom_call.1} parent=5 // pred_fallthru
        _
      %p1301 = scmp.le.s32.totalorder 2, %s24
      // Predicated region
      $region93: #{tpu_custom_call.1} parent=5 // pred_check
        %p1302 = pneg %p1301
      $region94: #{tpu_custom_call.1} parent=5 // pred_check_branch
        %1304 = sbr.rel (%p1302) target = $region96
      $region95: #{tpu_custom_call.1} parent=5 // pred_region
        %s1305 = ssub.s32 %s24, 2
        // Predicated region
        $region97: #{tpu_custom_call.1} parent=95 // pred_check
          %p1306 = pneg %p356
        $region98: #{tpu_custom_call.1} parent=95 // pred_check_branch
          %1308 = sbr.rel (%p1306) target = $region100
        $region99: #{tpu_custom_call.1} parent=95 // pred_region
          %s1309 = sand.u32 %s341, 1
          %s1310 = scalar_lea.sflag [#allocation5], %s1309
          %s1311 = sand.u32 %s341, 1
          %s1312 = smul.addr %s1311, 8
          %s1313 = scalar_lea.vmem [#allocation8], %s1312
          %1314 = dma.done %s1310, 128
        $region100: #{tpu_custom_call.1} parent=95 // pred_fallthru
          _
      $region96: #{tpu_custom_call.1} parent=5 // pred_fallthru
        _
    $region6: #{tpu_custom_call.1} parent=1 // loop_footer
      %s28 = sadd.s32 1, %s24
    $region7: #{tpu_custom_call.1} parent=1 // loop_footer_branch
      %23 = sbr.rel target = $region3
    $region8: #{tpu_custom_call.1} parent=1 // loop_exit
      _
    %1315 = vsyncpa [#allocation4], 1
    %s1316 = scalar_lea.sflag [#allocation4], 1
    %1317 = vsyncpa %s1316, 1
    %1318 = vsyncpa [#allocation7], 1
    %1319 = vsyncpa [#allocation5], 1
    %s1320 = scalar_lea.sflag [#allocation5], 1
    %1321 = vsyncpa %s1320, 1

</llo_original>
